<compile_context>
chip_gen: v7x
topology: tpu7x:2x2x1
jax: 0.10.0
libtpu: 0.0.40
codegen_flags: <defaults>
</compile_context>

<pallas_src>
import jax
import jax.numpy as jnp
from jax import lax
from jax.experimental import pallas as pl
from jax.experimental.pallas import tpu as pltpu


def _make_kernel(D, H, W, Cin, Cout, TD, HPAD):
    HW = H * W
    B0 = W + 1  # interior start within the flat (H,W)-padded plane

    def kernel(x_ref, masks_ref, wdw_ref, wpw_ref, bias_ref, o_ref, xs_ref):
        # x_ref    : (1, Cin, D, HW)       full per-batch volume (revisited across slabs)
        # masks_ref: (2, HW)               wrap-column masks (VMEM)
        # wdw_ref  : (Cin, 27)             depthwise taps, BN-depth scale folded in (SMEM)
        # wpw_ref  : (Cin, Cout)           pointwise weights, BN-point scale folded in (SMEM)
        # bias_ref : (1, Cout)             fully folded bias (SMEM)
        # o_ref    : (1, Cout, TD, HW)     output D-slab, lane-dense stores
        # xs_ref   : (Cin, TD+2, HPAD)     VMEM scratch: ReLU'd flat H-padded slab (+D halo)
        d0 = pl.multiple_of(pl.program_id(1) * TD, TD)

        # ---- zero only the halo pads (tiny); interior + D-halo planes are fully
        #      rewritten below every step, so no full-scratch clear is needed. ----
        xs_ref[:, :, 0:B0] = jnp.zeros((Cin, TD + 2, B0), jnp.float32)
        xs_ref[:, :, B0 + HW:HPAD] = jnp.zeros(
            (Cin, TD + 2, HPAD - B0 - HW), jnp.float32)

        # ---- stage ReLU'd planes, lane-dense 256-wide rows.  relu(0)==0, so the
        #      zero halo doubles as the conv's zero padding. ----
        bulk = x_ref[0, :, pl.ds(d0, TD), :]                       # (Cin, TD, HW)
        xs_ref[:, 1:TD + 1, B0:B0 + HW] = jnp.maximum(bulk, 0.0)

        lo = x_ref[0, :, pl.ds(jnp.maximum(d0 - 1, 0), 1), :]      # (Cin, 1, HW)
        xs_ref[:, 0:1, B0:B0 + HW] = jnp.where(
            d0 - 1 >= 0, jnp.maximum(lo, 0.0), 0.0)

        hi = x_ref[0, :, pl.ds(jnp.minimum(d0 + TD, D - 1), 1), :]  # (Cin, 1, HW)
        xs_ref[:, TD + 1:TD + 2, B0:B0 + HW] = jnp.where(
            d0 + TD < D, jnp.maximum(hi, 0.0), 0.0)

        # ---- hoisted per-step constants (no dd loop; one broadcast each) ----
        mask_l = jnp.broadcast_to(masks_ref[0:1, :], (TD, HW))  # kills wrapped kw=0 taps (w==0)
        mask_r = jnp.broadcast_to(masks_ref[1:2, :], (TD, HW))  # kills wrapped kw=2 taps (w==W-1)
        out_acc = [jnp.full((TD, HW), bias_ref[0, co], jnp.float32)
                   for co in range(Cout)]

        # ---- fused depthwise 3x3x3 + pointwise 1x1x1 over the whole (TD, HW) slab ----
        # Tap (kd,kh,kw) for all (dd, h, w) at once is the slice
        #   xs_ref[ci, kd:kd+TD, kh*W+kw : kh*W+kw+HW]
        # of the flat H-padded plane; kw=0/kw=2 wrap columns are masked per channel.
        for ci in range(Cin):
            a0 = a1 = a2 = None                      # partial sums per kw group
            for kd in range(3):
                for kh in range(3):
                    off = kh * W
                    widx = kd * 9 + kh * 3
                    t0 = xs_ref[ci, kd:kd + TD, off + 0:off + 0 + HW] * wdw_ref[ci, widx + 0]
                    t1 = xs_ref[ci, kd:kd + TD, off + 1:off + 1 + HW] * wdw_ref[ci, widx + 1]
                    t2 = xs_ref[ci, kd:kd + TD, off + 2:off + 2 + HW] * wdw_ref[ci, widx + 2]
                    a0 = t0 if a0 is None else a0 + t0
                    a1 = t1 if a1 is None else a1 + t1
                    a2 = t2 if a2 is None else a2 + t2
            dw = a1 + mask_l * a0 + mask_r * a2      # depthwise result, BN-depth folded
            for co in range(Cout):                   # fused pointwise (VPU FMAs)
                out_acc[co] = out_acc[co] + dw * wpw_ref[ci, co]

        for co in range(Cout):                       # unmasked, lane-dense stores
            o_ref[0, co, :, :] = out_acc[co]

    return kernel


def separable_conv3d(x, params, eps=1e-5, slab_d=8):
    """SeparableConv3d forward (relu_first=True, BatchNorm in inference mode).

    x: (B, Cin, D, H, W) float32 (PyTorch NCDHW layout).
    Returns (B, Cout, D, H, W) float32.
    """
    (w_dw, g_d, b_d, rm_d, rv_d, w_pw, g_p, b_p, rm_p, rv_p) = params
    B, Cin, D, H, W = x.shape
    Cout = w_pw.shape[0]
    HW = H * W

    # ---- fold both inference-mode BatchNorms into the weights (wrapper side) ----
    sdw = g_d / jnp.sqrt(rv_d + eps)                 # BN-depth scale
    bdw = b_d - rm_d * sdw                           # BN-depth shift
    spw = g_p / jnp.sqrt(rv_p + eps)                 # BN-point scale
    bpw = b_p - rm_p * spw                           # BN-point shift

    wdw_f = (w_dw[:, 0].reshape(Cin, 27) * sdw[:, None]).astype(jnp.float32)
    wpw = jnp.transpose(w_pw[:, :, 0, 0, 0], (1, 0))                 # (Cin, Cout)
    wpw_f = (wpw * spw[None, :]).astype(jnp.float32)
    bias_f = ((bdw @ wpw) * spw + bpw).reshape(1, Cout).astype(jnp.float32)

    # ---- lane-dense I/O: free contiguous reshape (B,C,D,H,W) -> (B,C,D,H*W) ----
    x4 = x.reshape(B, Cin, D, HW).astype(jnp.float32)

    # wrap-column masks for the flattened W axis (computed once, tiny)
    col = jnp.arange(HW, dtype=jnp.int32) % W
    masks = jnp.stack([(col != 0), (col != (W - 1))], axis=0).astype(jnp.float32)

    # ---- D-slab tiling: TD multiple of 8 (sublane rule) or full D ----
    TD = slab_d if (slab_d % 8 == 0 and D % slab_d == 0) else D
    n_slabs = D // TD
    HPAD = HW + 2 * W + 2        # flat H/W-padded plane length (interior at [W+1, W+1+HW))

    kernel = _make_kernel(D, H, W, Cin, Cout, TD, HPAD)

    flops = 2 * B * D * HW * Cin * (27 + Cout)
    bytes_accessed = (x4.size + B * Cout * D * HW) * 4

    out = pl.pallas_call(
        kernel,
        out_shape=jax.ShapeDtypeStruct((B, Cout, D, HW), jnp.float32),
        grid=(B, n_slabs),
        in_specs=[
            # Full per-batch volume; index_map ignores the slab axis so the block
            # is revisited (DMA'd from HBM once per batch) across its slabs.
            pl.BlockSpec((1, Cin, D, HW), lambda b, s: (b, 0, 0, 0)),
            pl.BlockSpec((2, HW), lambda b, s: (0, 0)),              # wrap masks (VMEM)
            pl.BlockSpec(memory_space=pltpu.MemorySpace.SMEM),       # wdw_f  (Cin, 27)
            pl.BlockSpec(memory_space=pltpu.MemorySpace.SMEM),       # wpw_f  (Cin, Cout)
            pl.BlockSpec(memory_space=pltpu.MemorySpace.SMEM),       # bias_f (1, Cout)
        ],
        out_specs=pl.BlockSpec((1, Cout, TD, HW), lambda b, s: (b, 0, s, 0)),
        scratch_shapes=[
            pltpu.VMEM((Cin, TD + 2, HPAD), jnp.float32),            # staged ReLU'd slab
        ],
        compiler_params=pltpu.CompilerParams(
            dimension_semantics=("parallel", "parallel"),
            vmem_limit_bytes=64 * 1024 * 1024),
        cost_estimate=pl.CostEstimate(
            flops=flops, transcendentals=0, bytes_accessed=bytes_accessed),
    )(x4, masks, wdw_f, wpw_f, bias_f)

    return out.reshape(B, Cout, D, H, W)


def reference_jax(x_ncdhw, params, eps=1e-5):
    """Pure-JAX reference (lax conv) for correctness checking."""
    (w_dw, g_d, b_d, rm_d, rv_d, w_pw, g_p, b_p, rm_p, rv_p) = params
    B, Cin, D, H, W = x_ncdhw.shape
    x = jnp.maximum(jnp.transpose(x_ncdhw, (0, 2, 3, 4, 1)), 0.0)  # NDHWC, ReLU
    rhs = jnp.transpose(w_dw[:, 0], (1, 2, 3, 0))[:, :, :, None, :]  # (3,3,3,1,Cin)
    y = lax.conv_general_dilated(
        x, rhs, window_strides=(1, 1, 1), padding=[(1, 1)] * 3,
        rhs_dilation=(1, 1, 1), dimension_numbers=("NDHWC", "DHWIO", "NDHWC"),
        feature_group_count=Cin)
    y = (y - rm_d) / jnp.sqrt(rv_d + eps) * g_d + b_d
    wpw = jnp.transpose(w_pw[:, :, 0, 0, 0], (1, 0))  # (Cin, Cout)
    z = jnp.einsum("bdhwc,co->bdhwo", y, wpw)
    z = (z - rm_p) / jnp.sqrt(rv_p + eps) * g_p + b_p
    return jnp.transpose(z, (0, 4, 1, 2, 3))


if __name__ == "__main__":
    B, Cin, Cout, D, H, W = 2, 4, 8, 16, 16, 16
    key = jax.random.PRNGKey(0)
    ks = jax.random.split(key, 11)

    x = jax.random.normal(ks[0], (B, Cin, D, H, W), dtype=jnp.float32)

    # Deterministic synthetic parameters (shapes match the PyTorch module).
    w_dw = 0.1 * jax.random.normal(ks[1], (Cin, 1, 3, 3, 3), dtype=jnp.float32)
    g_d = 1.0 + 0.1 * jax.random.normal(ks[2], (Cin,), dtype=jnp.float32)
    b_d = 0.1 * jax.random.normal(ks[3], (Cin,), dtype=jnp.float32)
    rm_d = 0.1 * jax.random.normal(ks[4], (Cin,), dtype=jnp.float32)
    rv_d = jax.random.uniform(ks[5], (Cin,), minval=0.5, maxval=1.5, dtype=jnp.float32)
    w_pw = 0.1 * jax.random.normal(ks[6], (Cout, Cin, 1, 1, 1), dtype=jnp.float32)
    g_p = 1.0 + 0.1 * jax.random.normal(ks[7], (Cout,), dtype=jnp.float32)
    b_p = 0.1 * jax.random.normal(ks[8], (Cout,), dtype=jnp.float32)
    rm_p = 0.1 * jax.random.normal(ks[9], (Cout,), dtype=jnp.float32)
    rv_p = jax.random.uniform(ks[10], (Cout,), minval=0.5, maxval=1.5, dtype=jnp.float32)

    params = (w_dw, g_d, b_d, rm_d, rv_d, w_pw, g_p, b_p, rm_p, rv_p)

    out = jax.block_until_ready(separable_conv3d(x, params))
    ref = jax.block_until_ready(reference_jax(x, params))

    assert out.shape == (B, Cout, D, H, W)
    err = float(jnp.max(jnp.abs(out - ref)))
    assert jnp.allclose(out, ref, atol=1e-4, rtol=1e-4), err

    print("KERNEL_OK")
</pallas_src>

<mosaic_0001>
module attributes {stable_mosaic.version = 11 : i64} {
  func.func @kernel(%arg0: i32, %arg1: i32, %arg2: memref<1x4x16x256xf32, #tpu.memory_space<vmem>>, %arg3: memref<2x256xf32, #tpu.memory_space<vmem>>, %arg4: memref<4x27xf32, #tpu.memory_space<smem>>, %arg5: memref<4x8xf32, #tpu.memory_space<smem>>, %arg6: memref<1x8xf32, #tpu.memory_space<smem>>, %arg7: memref<1x8x8x256xf32, #tpu.memory_space<vmem>>, %arg8: memref<4x10x290xf32, #tpu.memory_space<vmem>>) attributes {dimension_semantics = [#tpu.dimension_semantics<parallel>, #tpu.dimension_semantics<parallel>], iteration_bounds = array<i64: 2, 2>, scalar_prefetch = 0 : i64, scratch_operands = 1 : i64, tpu.core_type = #tpu.core_type<tc>, window_params = [{transform_indices = @transform_0, window_bounds = array<i64: 1, 4, 16, 256>}, {pipeline_mode = #tpu.pipeline_mode<synchronous>, transform_indices = @transform_1, window_bounds = array<i64: 2, 256>}, {transform_indices = @transform_2, window_bounds = array<i64: 4, 27>}, {transform_indices = @transform_3, window_bounds = array<i64: 4, 8>}, {transform_indices = @transform_4, window_bounds = array<i64: 1, 8>}, {transform_indices = @transform_5, window_bounds = array<i64: 1, 8, 8, 256>}]} {
    %c8_i32 = arith.constant 8 : i32
    %0 = arith.muli %arg1, %c8_i32 : i32
    %1 = tpu.assume_multiple %0, 8 : i32
    %cst = arith.constant 0.000000e+00 : f32
    %2 = vector.broadcast %cst : f32 to vector<4x10x17xf32>
    %c0 = arith.constant 0 : index
    %c0_0 = arith.constant 0 : index
    %c0_1 = arith.constant 0 : index
    %3 = vector.load %arg8[%c0, %c0_0, %c0_1] : memref<4x10x290xf32, #tpu.memory_space<vmem>>, vector<4x10x17xf32>
    tpu.vector_store %arg8[%c0, %c0_0, %c0_1], %2 {strides = array<i32>} : memref<4x10x290xf32, #tpu.memory_space<vmem>>, vector<4x10x17xf32>,
    %cst_2 = arith.constant 0.000000e+00 : f32
    %4 = vector.broadcast %cst_2 : f32 to vector<4x10x17xf32>
    %c0_3 = arith.constant 0 : index
    %c0_4 = arith.constant 0 : index
    %c273 = arith.constant 273 : index
    %5 = vector.load %arg8[%c0_3, %c0_4, %c273] : memref<4x10x290xf32, #tpu.memory_space<vmem>>, vector<4x10x17xf32>
    tpu.vector_store %arg8[%c0_3, %c0_4, %c273], %4 {strides = array<i32>} : memref<4x10x290xf32, #tpu.memory_space<vmem>>, vector<4x10x17xf32>,
    %c0_5 = arith.constant 0 : index
    %c0_6 = arith.constant 0 : index
    %6 = arith.index_cast %1 : i32 to index
    %c0_7 = arith.constant 0 : index
    %7 = vector.load %arg2[%c0_5, %c0_6, %6, %c0_7] : memref<1x4x16x256xf32, #tpu.memory_space<vmem>>, vector<1x4x8x256xf32>
    %8 = vector.shape_cast %7 : vector<1x4x8x256xf32> to vector<4x8x256xf32>
    %cst_8 = arith.constant 0.000000e+00 : f32
    %9 = vector.broadcast %cst_8 : f32 to vector<4x8x256xf32>
    %10 = arith.maximumf %8, %9 : vector<4x8x256xf32>
    %c0_9 = arith.constant 0 : index
    %c1 = arith.constant 1 : index
    %c17 = arith.constant 17 : index
    %11 = vector.load %arg8[%c0_9, %c1, %c17] : memref<4x10x290xf32, #tpu.memory_space<vmem>>, vector<4x8x256xf32>
    tpu.vector_store %arg8[%c0_9, %c1, %c17], %10 {strides = array<i32>} : memref<4x10x290xf32, #tpu.memory_space<vmem>>, vector<4x8x256xf32>,
    %c1_i32 = arith.constant 1 : i32
    %12 = arith.subi %1, %c1_i32 : i32
    %c0_i32 = arith.constant 0 : i32
    %13 = arith.maxsi %12, %c0_i32 : i32
    %c0_10 = arith.constant 0 : index
    %c0_11 = arith.constant 0 : index
    %14 = arith.index_cast %13 : i32 to index
    %c0_12 = arith.constant 0 : index
    %15 = vector.load %arg2[%c0_10, %c0_11, %14, %c0_12] : memref<1x4x16x256xf32, #tpu.memory_space<vmem>>, vector<1x4x1x256xf32>
    %16 = vector.shape_cast %15 : vector<1x4x1x256xf32> to vector<4x1x256xf32>
    %c1_i32_13 = arith.constant 1 : i32
    %17 = arith.subi %1, %c1_i32_13 : i32
    %c0_i32_14 = arith.constant 0 : i32
    %18 = arith.cmpi sge, %17, %c0_i32_14 : i32
    %cst_15 = arith.constant 0.000000e+00 : f32
    %19 = vector.broadcast %cst_15 : f32 to vector<4x1x256xf32>
    %20 = arith.maximumf %16, %19 : vector<4x1x256xf32>
    %cst_16 = arith.constant 0.000000e+00 : f32
    %21 = vector.broadcast %cst_16 : f32 to vector<4x1x256xf32>
    %22 = arith.select %18, %20, %21 : vector<4x1x256xf32>
    %c0_17 = arith.constant 0 : index
    %c0_18 = arith.constant 0 : index
    %c17_19 = arith.constant 17 : index
    %23 = vector.load %arg8[%c0_17, %c0_18, %c17_19] : memref<4x10x290xf32, #tpu.memory_space<vmem>>, vector<4x1x256xf32>
    tpu.vector_store %arg8[%c0_17, %c0_18, %c17_19], %22 {strides = array<i32>} : memref<4x10x290xf32, #tpu.memory_space<vmem>>, vector<4x1x256xf32>,
    %c8_i32_20 = arith.constant 8 : i32
    %24 = arith.addi %1, %c8_i32_20 : i32
    %c15_i32 = arith.constant 15 : i32
    %25 = arith.minsi %24, %c15_i32 : i32
    %c0_21 = arith.constant 0 : index
    %c0_22 = arith.constant 0 : index
    %26 = arith.index_cast %25 : i32 to index
    %c0_23 = arith.constant 0 : index
    %27 = vector.load %arg2[%c0_21, %c0_22, %26, %c0_23] : memref<1x4x16x256xf32, #tpu.memory_space<vmem>>, vector<1x4x1x256xf32>
    %28 = vector.shape_cast %27 : vector<1x4x1x256xf32> to vector<4x1x256xf32>
    %c8_i32_24 = arith.constant 8 : i32
    %29 = arith.addi %1, %c8_i32_24 : i32
    %c16_i32 = arith.constant 16 : i32
    %30 = arith.cmpi slt, %29, %c16_i32 : i32
    %cst_25 = arith.constant 0.000000e+00 : f32
    %31 = vector.broadcast %cst_25 : f32 to vector<4x1x256xf32>
    %32 = arith.maximumf %28, %31 : vector<4x1x256xf32>
    %cst_26 = arith.constant 0.000000e+00 : f32
    %33 = vector.broadcast %cst_26 : f32 to vector<4x1x256xf32>
    %34 = arith.select %30, %32, %33 : vector<4x1x256xf32>
    %c0_27 = arith.constant 0 : index
    %c9 = arith.constant 9 : index
    %c17_28 = arith.constant 17 : index
    %35 = vector.load %arg8[%c0_27, %c9, %c17_28] : memref<4x10x290xf32, #tpu.memory_space<vmem>>, vector<4x1x256xf32>
    tpu.vector_store %arg8[%c0_27, %c9, %c17_28], %34 {strides = array<i32>} : memref<4x10x290xf32, #tpu.memory_space<vmem>>, vector<4x1x256xf32>,
    %c0_29 = arith.constant 0 : index
    %c0_30 = arith.constant 0 : index
    %36 = vector.load %arg3[%c0_29, %c0_30] : memref<2x256xf32, #tpu.memory_space<vmem>>, vector<1x256xf32>
    %37 = vector.shape_cast %36 : vector<1x256xf32> to vector<1x256xf32>
    %38 = vector.broadcast %37 : vector<1x256xf32> to vector<8x256xf32>
    %c1_31 = arith.constant 1 : index
    %c0_32 = arith.constant 0 : index
    %39 = vector.load %arg3[%c1_31, %c0_32] : memref<2x256xf32, #tpu.memory_space<vmem>>, vector<1x256xf32>
    %40 = vector.shape_cast %39 : vector<1x256xf32> to vector<1x256xf32>
    %41 = vector.broadcast %40 : vector<1x256xf32> to vector<8x256xf32>
    %c0_33 = arith.constant 0 : index
    %c0_34 = arith.constant 0 : index
    %42 = memref.load %arg6[%c0_33, %c0_34] : memref<1x8xf32, #tpu.memory_space<smem>>
    %43 = vector.broadcast %42 : f32 to vector<8x256xf32>
    %c0_35 = arith.constant 0 : index
    %c1_36 = arith.constant 1 : index
    %44 = memref.load %arg6[%c0_35, %c1_36] : memref<1x8xf32, #tpu.memory_space<smem>>
    %45 = vector.broadcast %44 : f32 to vector<8x256xf32>
    %c0_37 = arith.constant 0 : index
    %c2 = arith.constant 2 : index
    %46 = memref.load %arg6[%c0_37, %c2] : memref<1x8xf32, #tpu.memory_space<smem>>
    %47 = vector.broadcast %46 : f32 to vector<8x256xf32>
    %c0_38 = arith.constant 0 : index
    %c3 = arith.constant 3 : index
    %48 = memref.load %arg6[%c0_38, %c3] : memref<1x8xf32, #tpu.memory_space<smem>>
    %49 = vector.broadcast %48 : f32 to vector<8x256xf32>
    %c0_39 = arith.constant 0 : index
    %c4 = arith.constant 4 : index
    %50 = memref.load %arg6[%c0_39, %c4] : memref<1x8xf32, #tpu.memory_space<smem>>
    %51 = vector.broadcast %50 : f32 to vector<8x256xf32>
    %c0_40 = arith.constant 0 : index
    %c5 = arith.constant 5 : index
    %52 = memref.load %arg6[%c0_40, %c5] : memref<1x8xf32, #tpu.memory_space<smem>>
    %53 = vector.broadcast %52 : f32 to vector<8x256xf32>
    %c0_41 = arith.constant 0 : index
    %c6 = arith.constant 6 : index
    %54 = memref.load %arg6[%c0_41, %c6] : memref<1x8xf32, #tpu.memory_space<smem>>
    %55 = vector.broadcast %54 : f32 to vector<8x256xf32>
    %c0_42 = arith.constant 0 : index
    %c7 = arith.constant 7 : index
    %56 = memref.load %arg6[%c0_42, %c7] : memref<1x8xf32, #tpu.memory_space<smem>>
    %57 = vector.broadcast %56 : f32 to vector<8x256xf32>
    %c0_43 = arith.constant 0 : index
    %c0_44 = arith.constant 0 : index
    %c0_45 = arith.constant 0 : index
    %58 = vector.load %arg8[%c0_43, %c0_44, %c0_45] : memref<4x10x290xf32, #tpu.memory_space<vmem>>, vector<1x8x256xf32>
    %59 = vector.shape_cast %58 : vector<1x8x256xf32> to vector<8x256xf32>
    %c0_46 = arith.constant 0 : index
    %c0_47 = arith.constant 0 : index
    %60 = memref.load %arg4[%c0_46, %c0_47] : memref<4x27xf32, #tpu.memory_space<smem>>
    %61 = vector.broadcast %60 : f32 to vector<8x256xf32>
    %62 = arith.mulf %59, %61 : vector<8x256xf32>
    %c0_48 = arith.constant 0 : index
    %c0_49 = arith.constant 0 : index
    %c1_50 = arith.constant 1 : index
    %63 = vector.load %arg8[%c0_48, %c0_49, %c1_50] : memref<4x10x290xf32, #tpu.memory_space<vmem>>, vector<1x8x256xf32>
    %64 = vector.shape_cast %63 : vector<1x8x256xf32> to vector<8x256xf32>
    %c0_51 = arith.constant 0 : index
    %c1_52 = arith.constant 1 : index
    %65 = memref.load %arg4[%c0_51, %c1_52] : memref<4x27xf32, #tpu.memory_space<smem>>
    %66 = vector.broadcast %65 : f32 to vector<8x256xf32>
    %67 = arith.mulf %64, %66 : vector<8x256xf32>
    %c0_53 = arith.constant 0 : index
    %c0_54 = arith.constant 0 : index
    %c2_55 = arith.constant 2 : index
    %68 = vector.load %arg8[%c0_53, %c0_54, %c2_55] : memref<4x10x290xf32, #tpu.memory_space<vmem>>, vector<1x8x256xf32>
    %69 = vector.shape_cast %68 : vector<1x8x256xf32> to vector<8x256xf32>
    %c0_56 = arith.constant 0 : index
    %c2_57 = arith.constant 2 : index
    %70 = memref.load %arg4[%c0_56, %c2_57] : memref<4x27xf32, #tpu.memory_space<smem>>
    %71 = vector.broadcast %70 : f32 to vector<8x256xf32>
    %72 = arith.mulf %69, %71 : vector<8x256xf32>
    %c0_58 = arith.constant 0 : index
    %c0_59 = arith.constant 0 : index
    %c16 = arith.constant 16 : index
    %73 = vector.load %arg8[%c0_58, %c0_59, %c16] : memref<4x10x290xf32, #tpu.memory_space<vmem>>, vector<1x8x256xf32>
    %74 = vector.shape_cast %73 : vector<1x8x256xf32> to vector<8x256xf32>
    %c0_60 = arith.constant 0 : index
    %c3_61 = arith.constant 3 : index
    %75 = memref.load %arg4[%c0_60, %c3_61] : memref<4x27xf32, #tpu.memory_space<smem>>
    %76 = vector.broadcast %75 : f32 to vector<8x256xf32>
    %77 = arith.mulf %74, %76 : vector<8x256xf32>
    %c0_62 = arith.constant 0 : index
    %c0_63 = arith.constant 0 : index
    %c17_64 = arith.constant 17 : index
    %78 = vector.load %arg8[%c0_62, %c0_63, %c17_64] : memref<4x10x290xf32, #tpu.memory_space<vmem>>, vector<1x8x256xf32>
    %79 = vector.shape_cast %78 : vector<1x8x256xf32> to vector<8x256xf32>
    %c0_65 = arith.constant 0 : index
    %c4_66 = arith.constant 4 : index
    %80 = memref.load %arg4[%c0_65, %c4_66] : memref<4x27xf32, #tpu.memory_space<smem>>
    %81 = vector.broadcast %80 : f32 to vector<8x256xf32>
    %82 = arith.mulf %79, %81 : vector<8x256xf32>
    %c0_67 = arith.constant 0 : index
    %c0_68 = arith.constant 0 : index
    %c18 = arith.constant 18 : index
    %83 = vector.load %arg8[%c0_67, %c0_68, %c18] : memref<4x10x290xf32, #tpu.memory_space<vmem>>, vector<1x8x256xf32>
    %84 = vector.shape_cast %83 : vector<1x8x256xf32> to vector<8x256xf32>
    %c0_69 = arith.constant 0 : index
    %c5_70 = arith.constant 5 : index
    %85 = memref.load %arg4[%c0_69, %c5_70] : memref<4x27xf32, #tpu.memory_space<smem>>
    %86 = vector.broadcast %85 : f32 to vector<8x256xf32>
    %87 = arith.mulf %84, %86 : vector<8x256xf32>
    %88 = arith.addf %62, %77 : vector<8x256xf32>
    %89 = arith.addf %67, %82 : vector<8x256xf32>
    %90 = arith.addf %72, %87 : vector<8x256xf32>
    %c0_71 = arith.constant 0 : index
    %c0_72 = arith.constant 0 : index
    %c32 = arith.constant 32 : index
    %91 = vector.load %arg8[%c0_71, %c0_72, %c32] : memref<4x10x290xf32, #tpu.memory_space<vmem>>, vector<1x8x256xf32>
    %92 = vector.shape_cast %91 : vector<1x8x256xf32> to vector<8x256xf32>
    %c0_73 = arith.constant 0 : index
    %c6_74 = arith.constant 6 : index
    %93 = memref.load %arg4[%c0_73, %c6_74] : memref<4x27xf32, #tpu.memory_space<smem>>
    %94 = vector.broadcast %93 : f32 to vector<8x256xf32>
    %95 = arith.mulf %92, %94 : vector<8x256xf32>
    %c0_75 = arith.constant 0 : index
    %c0_76 = arith.constant 0 : index
    %c33 = arith.constant 33 : index
    %96 = vector.load %arg8[%c0_75, %c0_76, %c33] : memref<4x10x290xf32, #tpu.memory_space<vmem>>, vector<1x8x256xf32>
    %97 = vector.shape_cast %96 : vector<1x8x256xf32> to vector<8x256xf32>
    %c0_77 = arith.constant 0 : index
    %c7_78 = arith.constant 7 : index
    %98 = memref.load %arg4[%c0_77, %c7_78] : memref<4x27xf32, #tpu.memory_space<smem>>
    %99 = vector.broadcast %98 : f32 to vector<8x256xf32>
    %100 = arith.mulf %97, %99 : vector<8x256xf32>
    %c0_79 = arith.constant 0 : index
    %c0_80 = arith.constant 0 : index
    %c34 = arith.constant 34 : index
    %101 = vector.load %arg8[%c0_79, %c0_80, %c34] : memref<4x10x290xf32, #tpu.memory_space<vmem>>, vector<1x8x256xf32>
    %102 = vector.shape_cast %101 : vector<1x8x256xf32> to vector<8x256xf32>
    %c0_81 = arith.constant 0 : index
    %c8 = arith.constant 8 : index
    %103 = memref.load %arg4[%c0_81, %c8] : memref<4x27xf32, #tpu.memory_space<smem>>
    %104 = vector.broadcast %103 : f32 to vector<8x256xf32>
    %105 = arith.mulf %102, %104 : vector<8x256xf32>
    %106 = arith.addf %88, %95 : vector<8x256xf32>
    %107 = arith.addf %89, %100 : vector<8x256xf32>
    %108 = arith.addf %90, %105 : vector<8x256xf32>
    %c0_82 = arith.constant 0 : index
    %c1_83 = arith.constant 1 : index
    %c0_84 = arith.constant 0 : index
    %109 = vector.load %arg8[%c0_82, %c1_83, %c0_84] : memref<4x10x290xf32, #tpu.memory_space<vmem>>, vector<1x8x256xf32>
    %110 = vector.shape_cast %109 : vector<1x8x256xf32> to vector<8x256xf32>
    %c0_85 = arith.constant 0 : index
    %c9_86 = arith.constant 9 : index
    %111 = memref.load %arg4[%c0_85, %c9_86] : memref<4x27xf32, #tpu.memory_space<smem>>
    %112 = vector.broadcast %111 : f32 to vector<8x256xf32>
    %113 = arith.mulf %110, %112 : vector<8x256xf32>
    %c0_87 = arith.constant 0 : index
    %c1_88 = arith.constant 1 : index
    %c1_89 = arith.constant 1 : index
    %114 = vector.load %arg8[%c0_87, %c1_88, %c1_89] : memref<4x10x290xf32, #tpu.memory_space<vmem>>, vector<1x8x256xf32>
    %115 = vector.shape_cast %114 : vector<1x8x256xf32> to vector<8x256xf32>
    %c0_90 = arith.constant 0 : index
    %c10 = arith.constant 10 : index
    %116 = memref.load %arg4[%c0_90, %c10] : memref<4x27xf32, #tpu.memory_space<smem>>
    %117 = vector.broadcast %116 : f32 to vector<8x256xf32>
    %118 = arith.mulf %115, %117 : vector<8x256xf32>
    %c0_91 = arith.constant 0 : index
    %c1_92 = arith.constant 1 : index
    %c2_93 = arith.constant 2 : index
    %119 = vector.load %arg8[%c0_91, %c1_92, %c2_93] : memref<4x10x290xf32, #tpu.memory_space<vmem>>, vector<1x8x256xf32>
    %120 = vector.shape_cast %119 : vector<1x8x256xf32> to vector<8x256xf32>
    %c0_94 = arith.constant 0 : index
    %c11 = arith.constant 11 : index
    %121 = memref.load %arg4[%c0_94, %c11] : memref<4x27xf32, #tpu.memory_space<smem>>
    %122 = vector.broadcast %121 : f32 to vector<8x256xf32>
    %123 = arith.mulf %120, %122 : vector<8x256xf32>
    %124 = arith.addf %106, %113 : vector<8x256xf32>
    %125 = arith.addf %107, %118 : vector<8x256xf32>
    %126 = arith.addf %108, %123 : vector<8x256xf32>
    %c0_95 = arith.constant 0 : index
    %c1_96 = arith.constant 1 : index
    %c16_97 = arith.constant 16 : index
    %127 = vector.load %arg8[%c0_95, %c1_96, %c16_97] : memref<4x10x290xf32, #tpu.memory_space<vmem>>, vector<1x8x256xf32>
    %128 = vector.shape_cast %127 : vector<1x8x256xf32> to vector<8x256xf32>
    %c0_98 = arith.constant 0 : index
    %c12 = arith.constant 12 : index
    %129 = memref.load %arg4[%c0_98, %c12] : memref<4x27xf32, #tpu.memory_space<smem>>
    %130 = vector.broadcast %129 : f32 to vector<8x256xf32>
    %131 = arith.mulf %128, %130 : vector<8x256xf32>
    %c0_99 = arith.constant 0 : index
    %c1_100 = arith.constant 1 : index
    %c17_101 = arith.constant 17 : index
    %132 = vector.load %arg8[%c0_99, %c1_100, %c17_101] : memref<4x10x290xf32, #tpu.memory_space<vmem>>, vector<1x8x256xf32>
    %133 = vector.shape_cast %132 : vector<1x8x256xf32> to vector<8x256xf32>
    %c0_102 = arith.constant 0 : index
    %c13 = arith.constant 13 : index
    %134 = memref.load %arg4[%c0_102, %c13] : memref<4x27xf32, #tpu.memory_space<smem>>
    %135 = vector.broadcast %134 : f32 to vector<8x256xf32>
    %136 = arith.mulf %133, %135 : vector<8x256xf32>
    %c0_103 = arith.constant 0 : index
    %c1_104 = arith.constant 1 : index
    %c18_105 = arith.constant 18 : index
    %137 = vector.load %arg8[%c0_103, %c1_104, %c18_105] : memref<4x10x290xf32, #tpu.memory_space<vmem>>, vector<1x8x256xf32>
    %138 = vector.shape_cast %137 : vector<1x8x256xf32> to vector<8x256xf32>
    %c0_106 = arith.constant 0 : index
    %c14 = arith.constant 14 : index
    %139 = memref.load %arg4[%c0_106, %c14] : memref<4x27xf32, #tpu.memory_space<smem>>
    %140 = vector.broadcast %139 : f32 to vector<8x256xf32>
    %141 = arith.mulf %138, %140 : vector<8x256xf32>
    %142 = arith.addf %124, %131 : vector<8x256xf32>
    %143 = arith.addf %125, %136 : vector<8x256xf32>
    %144 = arith.addf %126, %141 : vector<8x256xf32>
    %c0_107 = arith.constant 0 : index
    %c1_108 = arith.constant 1 : index
    %c32_109 = arith.constant 32 : index
    %145 = vector.load %arg8[%c0_107, %c1_108, %c32_109] : memref<4x10x290xf32, #tpu.memory_space<vmem>>, vector<1x8x256xf32>
    %146 = vector.shape_cast %145 : vector<1x8x256xf32> to vector<8x256xf32>
    %c0_110 = arith.constant 0 : index
    %c15 = arith.constant 15 : index
    %147 = memref.load %arg4[%c0_110, %c15] : memref<4x27xf32, #tpu.memory_space<smem>>
    %148 = vector.broadcast %147 : f32 to vector<8x256xf32>
    %149 = arith.mulf %146, %148 : vector<8x256xf32>
    %c0_111 = arith.constant 0 : index
    %c1_112 = arith.constant 1 : index
    %c33_113 = arith.constant 33 : index
    %150 = vector.load %arg8[%c0_111, %c1_112, %c33_113] : memref<4x10x290xf32, #tpu.memory_space<vmem>>, vector<1x8x256xf32>
    %151 = vector.shape_cast %150 : vector<1x8x256xf32> to vector<8x256xf32>
    %c0_114 = arith.constant 0 : index
    %c16_115 = arith.constant 16 : index
    %152 = memref.load %arg4[%c0_114, %c16_115] : memref<4x27xf32, #tpu.memory_space<smem>>
    %153 = vector.broadcast %152 : f32 to vector<8x256xf32>
    %154 = arith.mulf %151, %153 : vector<8x256xf32>
    %c0_116 = arith.constant 0 : index
    %c1_117 = arith.constant 1 : index
    %c34_118 = arith.constant 34 : index
    %155 = vector.load %arg8[%c0_116, %c1_117, %c34_118] : memref<4x10x290xf32, #tpu.memory_space<vmem>>, vector<1x8x256xf32>
    %156 = vector.shape_cast %155 : vector<1x8x256xf32> to vector<8x256xf32>
    %c0_119 = arith.constant 0 : index
    %c17_120 = arith.constant 17 : index
    %157 = memref.load %arg4[%c0_119, %c17_120] : memref<4x27xf32, #tpu.memory_space<smem>>
    %158 = vector.broadcast %157 : f32 to vector<8x256xf32>
    %159 = arith.mulf %156, %158 : vector<8x256xf32>
    %160 = arith.addf %142, %149 : vector<8x256xf32>
    %161 = arith.addf %143, %154 : vector<8x256xf32>
    %162 = arith.addf %144, %159 : vector<8x256xf32>
    %c0_121 = arith.constant 0 : index
    %c2_122 = arith.constant 2 : index
    %c0_123 = arith.constant 0 : index
    %163 = vector.load %arg8[%c0_121, %c2_122, %c0_123] : memref<4x10x290xf32, #tpu.memory_space<vmem>>, vector<1x8x256xf32>
    %164 = vector.shape_cast %163 : vector<1x8x256xf32> to vector<8x256xf32>
    %c0_124 = arith.constant 0 : index
    %c18_125 = arith.constant 18 : index
    %165 = memref.load %arg4[%c0_124, %c18_125] : memref<4x27xf32, #tpu.memory_space<smem>>
    %166 = vector.broadcast %165 : f32 to vector<8x256xf32>
    %167 = arith.mulf %164, %166 : vector<8x256xf32>
    %c0_126 = arith.constant 0 : index
    %c2_127 = arith.constant 2 : index
    %c1_128 = arith.constant 1 : index
    %168 = vector.load %arg8[%c0_126, %c2_127, %c1_128] : memref<4x10x290xf32, #tpu.memory_space<vmem>>, vector<1x8x256xf32>
    %169 = vector.shape_cast %168 : vector<1x8x256xf32> to vector<8x256xf32>
    %c0_129 = arith.constant 0 : index
    %c19 = arith.constant 19 : index
    %170 = memref.load %arg4[%c0_129, %c19] : memref<4x27xf32, #tpu.memory_space<smem>>
    %171 = vector.broadcast %170 : f32 to vector<8x256xf32>
    %172 = arith.mulf %169, %171 : vector<8x256xf32>
    %c0_130 = arith.constant 0 : index
    %c2_131 = arith.constant 2 : index
    %c2_132 = arith.constant 2 : index
    %173 = vector.load %arg8[%c0_130, %c2_131, %c2_132] : memref<4x10x290xf32, #tpu.memory_space<vmem>>, vector<1x8x256xf32>
    %174 = vector.shape_cast %173 : vector<1x8x256xf32> to vector<8x256xf32>
    %c0_133 = arith.constant 0 : index
    %c20 = arith.constant 20 : index
    %175 = memref.load %arg4[%c0_133, %c20] : memref<4x27xf32, #tpu.memory_space<smem>>
    %176 = vector.broadcast %175 : f32 to vector<8x256xf32>
    %177 = arith.mulf %174, %176 : vector<8x256xf32>
    %178 = arith.addf %160, %167 : vector<8x256xf32>
    %179 = arith.addf %161, %172 : vector<8x256xf32>
    %180 = arith.addf %162, %177 : vector<8x256xf32>
    %c0_134 = arith.constant 0 : index
    %c2_135 = arith.constant 2 : index
    %c16_136 = arith.constant 16 : index
    %181 = vector.load %arg8[%c0_134, %c2_135, %c16_136] : memref<4x10x290xf32, #tpu.memory_space<vmem>>, vector<1x8x256xf32>
    %182 = vector.shape_cast %181 : vector<1x8x256xf32> to vector<8x256xf32>
    %c0_137 = arith.constant 0 : index
    %c21 = arith.constant 21 : index
    %183 = memref.load %arg4[%c0_137, %c21] : memref<4x27xf32, #tpu.memory_space<smem>>
    %184 = vector.broadcast %183 : f32 to vector<8x256xf32>
    %185 = arith.mulf %182, %184 : vector<8x256xf32>
    %c0_138 = arith.constant 0 : index
    %c2_139 = arith.constant 2 : index
    %c17_140 = arith.constant 17 : index
    %186 = vector.load %arg8[%c0_138, %c2_139, %c17_140] : memref<4x10x290xf32, #tpu.memory_space<vmem>>, vector<1x8x256xf32>
    %187 = vector.shape_cast %186 : vector<1x8x256xf32> to vector<8x256xf32>
    %c0_141 = arith.constant 0 : index
    %c22 = arith.constant 22 : index
    %188 = memref.load %arg4[%c0_141, %c22] : memref<4x27xf32, #tpu.memory_space<smem>>
    %189 = vector.broadcast %188 : f32 to vector<8x256xf32>
    %190 = arith.mulf %187, %189 : vector<8x256xf32>
    %c0_142 = arith.constant 0 : index
    %c2_143 = arith.constant 2 : index
    %c18_144 = arith.constant 18 : index
    %191 = vector.load %arg8[%c0_142, %c2_143, %c18_144] : memref<4x10x290xf32, #tpu.memory_space<vmem>>, vector<1x8x256xf32>
    %192 = vector.shape_cast %191 : vector<1x8x256xf32> to vector<8x256xf32>
    %c0_145 = arith.constant 0 : index
    %c23 = arith.constant 23 : index
    %193 = memref.load %arg4[%c0_145, %c23] : memref<4x27xf32, #tpu.memory_space<smem>>
    %194 = vector.broadcast %193 : f32 to vector<8x256xf32>
    %195 = arith.mulf %192, %194 : vector<8x256xf32>
    %196 = arith.addf %178, %185 : vector<8x256xf32>
    %197 = arith.addf %179, %190 : vector<8x256xf32>
    %198 = arith.addf %180, %195 : vector<8x256xf32>
    %c0_146 = arith.constant 0 : index
    %c2_147 = arith.constant 2 : index
    %c32_148 = arith.constant 32 : index
    %199 = vector.load %arg8[%c0_146, %c2_147, %c32_148] : memref<4x10x290xf32, #tpu.memory_space<vmem>>, vector<1x8x256xf32>
    %200 = vector.shape_cast %199 : vector<1x8x256xf32> to vector<8x256xf32>
    %c0_149 = arith.constant 0 : index
    %c24 = arith.constant 24 : index
    %201 = memref.load %arg4[%c0_149, %c24] : memref<4x27xf32, #tpu.memory_space<smem>>
    %202 = vector.broadcast %201 : f32 to vector<8x256xf32>
    %203 = arith.mulf %200, %202 : vector<8x256xf32>
    %c0_150 = arith.constant 0 : index
    %c2_151 = arith.constant 2 : index
    %c33_152 = arith.constant 33 : index
    %204 = vector.load %arg8[%c0_150, %c2_151, %c33_152] : memref<4x10x290xf32, #tpu.memory_space<vmem>>, vector<1x8x256xf32>
    %205 = vector.shape_cast %204 : vector<1x8x256xf32> to vector<8x256xf32>
    %c0_153 = arith.constant 0 : index
    %c25 = arith.constant 25 : index
    %206 = memref.load %arg4[%c0_153, %c25] : memref<4x27xf32, #tpu.memory_space<smem>>
    %207 = vector.broadcast %206 : f32 to vector<8x256xf32>
    %208 = arith.mulf %205, %207 : vector<8x256xf32>
    %c0_154 = arith.constant 0 : index
    %c2_155 = arith.constant 2 : index
    %c34_156 = arith.constant 34 : index
    %209 = vector.load %arg8[%c0_154, %c2_155, %c34_156] : memref<4x10x290xf32, #tpu.memory_space<vmem>>, vector<1x8x256xf32>
    %210 = vector.shape_cast %209 : vector<1x8x256xf32> to vector<8x256xf32>
    %c0_157 = arith.constant 0 : index
    %c26 = arith.constant 26 : index
    %211 = memref.load %arg4[%c0_157, %c26] : memref<4x27xf32, #tpu.memory_space<smem>>
    %212 = vector.broadcast %211 : f32 to vector<8x256xf32>
    %213 = arith.mulf %210, %212 : vector<8x256xf32>
    %214 = arith.addf %196, %203 : vector<8x256xf32>
    %215 = arith.addf %197, %208 : vector<8x256xf32>
    %216 = arith.addf %198, %213 : vector<8x256xf32>
    %217 = arith.mulf %38, %214 : vector<8x256xf32>
    %218 = arith.addf %215, %217 : vector<8x256xf32>
    %219 = arith.mulf %41, %216 : vector<8x256xf32>
    %220 = arith.addf %218, %219 : vector<8x256xf32>
    %c0_158 = arith.constant 0 : index
    %c0_159 = arith.constant 0 : index
    %221 = memref.load %arg5[%c0_158, %c0_159] : memref<4x8xf32, #tpu.memory_space<smem>>
    %222 = vector.broadcast %221 : f32 to vector<8x256xf32>
    %223 = arith.mulf %220, %222 : vector<8x256xf32>
    %224 = arith.addf %43, %223 : vector<8x256xf32>
    %c0_160 = arith.constant 0 : index
    %c1_161 = arith.constant 1 : index
    %225 = memref.load %arg5[%c0_160, %c1_161] : memref<4x8xf32, #tpu.memory_space<smem>>
    %226 = vector.broadcast %225 : f32 to vector<8x256xf32>
    %227 = arith.mulf %220, %226 : vector<8x256xf32>
    %228 = arith.addf %45, %227 : vector<8x256xf32>
    %c0_162 = arith.constant 0 : index
    %c2_163 = arith.constant 2 : index
    %229 = memref.load %arg5[%c0_162, %c2_163] : memref<4x8xf32, #tpu.memory_space<smem>>
    %230 = vector.broadcast %229 : f32 to vector<8x256xf32>
    %231 = arith.mulf %220, %230 : vector<8x256xf32>
    %232 = arith.addf %47, %231 : vector<8x256xf32>
    %c0_164 = arith.constant 0 : index
    %c3_165 = arith.constant 3 : index
    %233 = memref.load %arg5[%c0_164, %c3_165] : memref<4x8xf32, #tpu.memory_space<smem>>
    %234 = vector.broadcast %233 : f32 to vector<8x256xf32>
    %235 = arith.mulf %220, %234 : vector<8x256xf32>
    %236 = arith.addf %49, %235 : vector<8x256xf32>
    %c0_166 = arith.constant 0 : index
    %c4_167 = arith.constant 4 : index
    %237 = memref.load %arg5[%c0_166, %c4_167] : memref<4x8xf32, #tpu.memory_space<smem>>
    %238 = vector.broadcast %237 : f32 to vector<8x256xf32>
    %239 = arith.mulf %220, %238 : vector<8x256xf32>
    %240 = arith.addf %51, %239 : vector<8x256xf32>
    %c0_168 = arith.constant 0 : index
    %c5_169 = arith.constant 5 : index
    %241 = memref.load %arg5[%c0_168, %c5_169] : memref<4x8xf32, #tpu.memory_space<smem>>
    %242 = vector.broadcast %241 : f32 to vector<8x256xf32>
    %243 = arith.mulf %220, %242 : vector<8x256xf32>
    %244 = arith.addf %53, %243 : vector<8x256xf32>
    %c0_170 = arith.constant 0 : index
    %c6_171 = arith.constant 6 : index
    %245 = memref.load %arg5[%c0_170, %c6_171] : memref<4x8xf32, #tpu.memory_space<smem>>
    %246 = vector.broadcast %245 : f32 to vector<8x256xf32>
    %247 = arith.mulf %220, %246 : vector<8x256xf32>
    %248 = arith.addf %55, %247 : vector<8x256xf32>
    %c0_172 = arith.constant 0 : index
    %c7_173 = arith.constant 7 : index
    %249 = memref.load %arg5[%c0_172, %c7_173] : memref<4x8xf32, #tpu.memory_space<smem>>
    %250 = vector.broadcast %249 : f32 to vector<8x256xf32>
    %251 = arith.mulf %220, %250 : vector<8x256xf32>
    %252 = arith.addf %57, %251 : vector<8x256xf32>
    %c1_174 = arith.constant 1 : index
    %c0_175 = arith.constant 0 : index
    %c0_176 = arith.constant 0 : index
    %253 = vector.load %arg8[%c1_174, %c0_175, %c0_176] : memref<4x10x290xf32, #tpu.memory_space<vmem>>, vector<1x8x256xf32>
    %254 = vector.shape_cast %253 : vector<1x8x256xf32> to vector<8x256xf32>
    %c1_177 = arith.constant 1 : index
    %c0_178 = arith.constant 0 : index
    %255 = memref.load %arg4[%c1_177, %c0_178] : memref<4x27xf32, #tpu.memory_space<smem>>
    %256 = vector.broadcast %255 : f32 to vector<8x256xf32>
    %257 = arith.mulf %254, %256 : vector<8x256xf32>
    %c1_179 = arith.constant 1 : index
    %c0_180 = arith.constant 0 : index
    %c1_181 = arith.constant 1 : index
    %258 = vector.load %arg8[%c1_179, %c0_180, %c1_181] : memref<4x10x290xf32, #tpu.memory_space<vmem>>, vector<1x8x256xf32>
    %259 = vector.shape_cast %258 : vector<1x8x256xf32> to vector<8x256xf32>
    %c1_182 = arith.constant 1 : index
    %c1_183 = arith.constant 1 : index
    %260 = memref.load %arg4[%c1_182, %c1_183] : memref<4x27xf32, #tpu.memory_space<smem>>
    %261 = vector.broadcast %260 : f32 to vector<8x256xf32>
    %262 = arith.mulf %259, %261 : vector<8x256xf32>
    %c1_184 = arith.constant 1 : index
    %c0_185 = arith.constant 0 : index
    %c2_186 = arith.constant 2 : index
    %263 = vector.load %arg8[%c1_184, %c0_185, %c2_186] : memref<4x10x290xf32, #tpu.memory_space<vmem>>, vector<1x8x256xf32>
    %264 = vector.shape_cast %263 : vector<1x8x256xf32> to vector<8x256xf32>
    %c1_187 = arith.constant 1 : index
    %c2_188 = arith.constant 2 : index
    %265 = memref.load %arg4[%c1_187, %c2_188] : memref<4x27xf32, #tpu.memory_space<smem>>
    %266 = vector.broadcast %265 : f32 to vector<8x256xf32>
    %267 = arith.mulf %264, %266 : vector<8x256xf32>
    %c1_189 = arith.constant 1 : index
    %c0_190 = arith.constant 0 : index
    %c16_191 = arith.constant 16 : index
    %268 = vector.load %arg8[%c1_189, %c0_190, %c16_191] : memref<4x10x290xf32, #tpu.memory_space<vmem>>, vector<1x8x256xf32>
    %269 = vector.shape_cast %268 : vector<1x8x256xf32> to vector<8x256xf32>
    %c1_192 = arith.constant 1 : index
    %c3_193 = arith.constant 3 : index
    %270 = memref.load %arg4[%c1_192, %c3_193] : memref<4x27xf32, #tpu.memory_space<smem>>
    %271 = vector.broadcast %270 : f32 to vector<8x256xf32>
    %272 = arith.mulf %269, %271 : vector<8x256xf32>
    %c1_194 = arith.constant 1 : index
    %c0_195 = arith.constant 0 : index
    %c17_196 = arith.constant 17 : index
    %273 = vector.load %arg8[%c1_194, %c0_195, %c17_196] : memref<4x10x290xf32, #tpu.memory_space<vmem>>, vector<1x8x256xf32>
    %274 = vector.shape_cast %273 : vector<1x8x256xf32> to vector<8x256xf32>
    %c1_197 = arith.constant 1 : index
    %c4_198 = arith.constant 4 : index
    %275 = memref.load %arg4[%c1_197, %c4_198] : memref<4x27xf32, #tpu.memory_space<smem>>
    %276 = vector.broadcast %275 : f32 to vector<8x256xf32>
    %277 = arith.mulf %274, %276 : vector<8x256xf32>
    %c1_199 = arith.constant 1 : index
    %c0_200 = arith.constant 0 : index
    %c18_201 = arith.constant 18 : index
    %278 = vector.load %arg8[%c1_199, %c0_200, %c18_201] : memref<4x10x290xf32, #tpu.memory_space<vmem>>, vector<1x8x256xf32>
    %279 = vector.shape_cast %278 : vector<1x8x256xf32> to vector<8x256xf32>
    %c1_202 = arith.constant 1 : index
    %c5_203 = arith.constant 5 : index
    %280 = memref.load %arg4[%c1_202, %c5_203] : memref<4x27xf32, #tpu.memory_space<smem>>
    %281 = vector.broadcast %280 : f32 to vector<8x256xf32>
    %282 = arith.mulf %279, %281 : vector<8x256xf32>
    %283 = arith.addf %257, %272 : vector<8x256xf32>
    %284 = arith.addf %262, %277 : vector<8x256xf32>
    %285 = arith.addf %267, %282 : vector<8x256xf32>
    %c1_204 = arith.constant 1 : index
    %c0_205 = arith.constant 0 : index
    %c32_206 = arith.constant 32 : index
    %286 = vector.load %arg8[%c1_204, %c0_205, %c32_206] : memref<4x10x290xf32, #tpu.memory_space<vmem>>, vector<1x8x256xf32>
    %287 = vector.shape_cast %286 : vector<1x8x256xf32> to vector<8x256xf32>
    %c1_207 = arith.constant 1 : index
    %c6_208 = arith.constant 6 : index
    %288 = memref.load %arg4[%c1_207, %c6_208] : memref<4x27xf32, #tpu.memory_space<smem>>
    %289 = vector.broadcast %288 : f32 to vector<8x256xf32>
    %290 = arith.mulf %287, %289 : vector<8x256xf32>
    %c1_209 = arith.constant 1 : index
    %c0_210 = arith.constant 0 : index
    %c33_211 = arith.constant 33 : index
    %291 = vector.load %arg8[%c1_209, %c0_210, %c33_211] : memref<4x10x290xf32, #tpu.memory_space<vmem>>, vector<1x8x256xf32>
    %292 = vector.shape_cast %291 : vector<1x8x256xf32> to vector<8x256xf32>
    %c1_212 = arith.constant 1 : index
    %c7_213 = arith.constant 7 : index
    %293 = memref.load %arg4[%c1_212, %c7_213] : memref<4x27xf32, #tpu.memory_space<smem>>
    %294 = vector.broadcast %293 : f32 to vector<8x256xf32>
    %295 = arith.mulf %292, %294 : vector<8x256xf32>
    %c1_214 = arith.constant 1 : index
    %c0_215 = arith.constant 0 : index
    %c34_216 = arith.constant 34 : index
    %296 = vector.load %arg8[%c1_214, %c0_215, %c34_216] : memref<4x10x290xf32, #tpu.memory_space<vmem>>, vector<1x8x256xf32>
    %297 = vector.shape_cast %296 : vector<1x8x256xf32> to vector<8x256xf32>
    %c1_217 = arith.constant 1 : index
    %c8_218 = arith.constant 8 : index
    %298 = memref.load %arg4[%c1_217, %c8_218] : memref<4x27xf32, #tpu.memory_space<smem>>
    %299 = vector.broadcast %298 : f32 to vector<8x256xf32>
    %300 = arith.mulf %297, %299 : vector<8x256xf32>
    %301 = arith.addf %283, %290 : vector<8x256xf32>
    %302 = arith.addf %284, %295 : vector<8x256xf32>
    %303 = arith.addf %285, %300 : vector<8x256xf32>
    %c1_219 = arith.constant 1 : index
    %c1_220 = arith.constant 1 : index
    %c0_221 = arith.constant 0 : index
    %304 = vector.load %arg8[%c1_219, %c1_220, %c0_221] : memref<4x10x290xf32, #tpu.memory_space<vmem>>, vector<1x8x256xf32>
    %305 = vector.shape_cast %304 : vector<1x8x256xf32> to vector<8x256xf32>
    %c1_222 = arith.constant 1 : index
    %c9_223 = arith.constant 9 : index
    %306 = memref.load %arg4[%c1_222, %c9_223] : memref<4x27xf32, #tpu.memory_space<smem>>
    %307 = vector.broadcast %306 : f32 to vector<8x256xf32>
    %308 = arith.mulf %305, %307 : vector<8x256xf32>
    %c1_224 = arith.constant 1 : index
    %c1_225 = arith.constant 1 : index
    %c1_226 = arith.constant 1 : index
    %309 = vector.load %arg8[%c1_224, %c1_225, %c1_226] : memref<4x10x290xf32, #tpu.memory_space<vmem>>, vector<1x8x256xf32>
    %310 = vector.shape_cast %309 : vector<1x8x256xf32> to vector<8x256xf32>
    %c1_227 = arith.constant 1 : index
    %c10_228 = arith.constant 10 : index
    %311 = memref.load %arg4[%c1_227, %c10_228] : memref<4x27xf32, #tpu.memory_space<smem>>
    %312 = vector.broadcast %311 : f32 to vector<8x256xf32>
    %313 = arith.mulf %310, %312 : vector<8x256xf32>
    %c1_229 = arith.constant 1 : index
    %c1_230 = arith.constant 1 : index
    %c2_231 = arith.constant 2 : index
    %314 = vector.load %arg8[%c1_229, %c1_230, %c2_231] : memref<4x10x290xf32, #tpu.memory_space<vmem>>, vector<1x8x256xf32>
    %315 = vector.shape_cast %314 : vector<1x8x256xf32> to vector<8x256xf32>
    %c1_232 = arith.constant 1 : index
    %c11_233 = arith.constant 11 : index
    %316 = memref.load %arg4[%c1_232, %c11_233] : memref<4x27xf32, #tpu.memory_space<smem>>
    %317 = vector.broadcast %316 : f32 to vector<8x256xf32>
    %318 = arith.mulf %315, %317 : vector<8x256xf32>
    %319 = arith.addf %301, %308 : vector<8x256xf32>
    %320 = arith.addf %302, %313 : vector<8x256xf32>
    %321 = arith.addf %303, %318 : vector<8x256xf32>
    %c1_234 = arith.constant 1 : index
    %c1_235 = arith.constant 1 : index
    %c16_236 = arith.constant 16 : index
    %322 = vector.load %arg8[%c1_234, %c1_235, %c16_236] : memref<4x10x290xf32, #tpu.memory_space<vmem>>, vector<1x8x256xf32>
    %323 = vector.shape_cast %322 : vector<1x8x256xf32> to vector<8x256xf32>
    %c1_237 = arith.constant 1 : index
    %c12_238 = arith.constant 12 : index
    %324 = memref.load %arg4[%c1_237, %c12_238] : memref<4x27xf32, #tpu.memory_space<smem>>
    %325 = vector.broadcast %324 : f32 to vector<8x256xf32>
    %326 = arith.mulf %323, %325 : vector<8x256xf32>
    %c1_239 = arith.constant 1 : index
    %c1_240 = arith.constant 1 : index
    %c17_241 = arith.constant 17 : index
    %327 = vector.load %arg8[%c1_239, %c1_240, %c17_241] : memref<4x10x290xf32, #tpu.memory_space<vmem>>, vector<1x8x256xf32>
    %328 = vector.shape_cast %327 : vector<1x8x256xf32> to vector<8x256xf32>
    %c1_242 = arith.constant 1 : index
    %c13_243 = arith.constant 13 : index
    %329 = memref.load %arg4[%c1_242, %c13_243] : memref<4x27xf32, #tpu.memory_space<smem>>
    %330 = vector.broadcast %329 : f32 to vector<8x256xf32>
    %331 = arith.mulf %328, %330 : vector<8x256xf32>
    %c1_244 = arith.constant 1 : index
    %c1_245 = arith.constant 1 : index
    %c18_246 = arith.constant 18 : index
    %332 = vector.load %arg8[%c1_244, %c1_245, %c18_246] : memref<4x10x290xf32, #tpu.memory_space<vmem>>, vector<1x8x256xf32>
    %333 = vector.shape_cast %332 : vector<1x8x256xf32> to vector<8x256xf32>
    %c1_247 = arith.constant 1 : index
    %c14_248 = arith.constant 14 : index
    %334 = memref.load %arg4[%c1_247, %c14_248] : memref<4x27xf32, #tpu.memory_space<smem>>
    %335 = vector.broadcast %334 : f32 to vector<8x256xf32>
    %336 = arith.mulf %333, %335 : vector<8x256xf32>
    %337 = arith.addf %319, %326 : vector<8x256xf32>
    %338 = arith.addf %320, %331 : vector<8x256xf32>
    %339 = arith.addf %321, %336 : vector<8x256xf32>
    %c1_249 = arith.constant 1 : index
    %c1_250 = arith.constant 1 : index
    %c32_251 = arith.constant 32 : index
    %340 = vector.load %arg8[%c1_249, %c1_250, %c32_251] : memref<4x10x290xf32, #tpu.memory_space<vmem>>, vector<1x8x256xf32>
    %341 = vector.shape_cast %340 : vector<1x8x256xf32> to vector<8x256xf32>
    %c1_252 = arith.constant 1 : index
    %c15_253 = arith.constant 15 : index
    %342 = memref.load %arg4[%c1_252, %c15_253] : memref<4x27xf32, #tpu.memory_space<smem>>
    %343 = vector.broadcast %342 : f32 to vector<8x256xf32>
    %344 = arith.mulf %341, %343 : vector<8x256xf32>
    %c1_254 = arith.constant 1 : index
    %c1_255 = arith.constant 1 : index
    %c33_256 = arith.constant 33 : index
    %345 = vector.load %arg8[%c1_254, %c1_255, %c33_256] : memref<4x10x290xf32, #tpu.memory_space<vmem>>, vector<1x8x256xf32>
    %346 = vector.shape_cast %345 : vector<1x8x256xf32> to vector<8x256xf32>
    %c1_257 = arith.constant 1 : index
    %c16_258 = arith.constant 16 : index
    %347 = memref.load %arg4[%c1_257, %c16_258] : memref<4x27xf32, #tpu.memory_space<smem>>
    %348 = vector.broadcast %347 : f32 to vector<8x256xf32>
    %349 = arith.mulf %346, %348 : vector<8x256xf32>
    %c1_259 = arith.constant 1 : index
    %c1_260 = arith.constant 1 : index
    %c34_261 = arith.constant 34 : index
    %350 = vector.load %arg8[%c1_259, %c1_260, %c34_261] : memref<4x10x290xf32, #tpu.memory_space<vmem>>, vector<1x8x256xf32>
    %351 = vector.shape_cast %350 : vector<1x8x256xf32> to vector<8x256xf32>
    %c1_262 = arith.constant 1 : index
    %c17_263 = arith.constant 17 : index
    %352 = memref.load %arg4[%c1_262, %c17_263] : memref<4x27xf32, #tpu.memory_space<smem>>
    %353 = vector.broadcast %352 : f32 to vector<8x256xf32>
    %354 = arith.mulf %351, %353 : vector<8x256xf32>
    %355 = arith.addf %337, %344 : vector<8x256xf32>
    %356 = arith.addf %338, %349 : vector<8x256xf32>
    %357 = arith.addf %339, %354 : vector<8x256xf32>
    %c1_264 = arith.constant 1 : index
    %c2_265 = arith.constant 2 : index
    %c0_266 = arith.constant 0 : index
    %358 = vector.load %arg8[%c1_264, %c2_265, %c0_266] : memref<4x10x290xf32, #tpu.memory_space<vmem>>, vector<1x8x256xf32>
    %359 = vector.shape_cast %358 : vector<1x8x256xf32> to vector<8x256xf32>
    %c1_267 = arith.constant 1 : index
    %c18_268 = arith.constant 18 : index
    %360 = memref.load %arg4[%c1_267, %c18_268] : memref<4x27xf32, #tpu.memory_space<smem>>
    %361 = vector.broadcast %360 : f32 to vector<8x256xf32>
    %362 = arith.mulf %359, %361 : vector<8x256xf32>
    %c1_269 = arith.constant 1 : index
    %c2_270 = arith.constant 2 : index
    %c1_271 = arith.constant 1 : index
    %363 = vector.load %arg8[%c1_269, %c2_270, %c1_271] : memref<4x10x290xf32, #tpu.memory_space<vmem>>, vector<1x8x256xf32>
    %364 = vector.shape_cast %363 : vector<1x8x256xf32> to vector<8x256xf32>
    %c1_272 = arith.constant 1 : index
    %c19_273 = arith.constant 19 : index
    %365 = memref.load %arg4[%c1_272, %c19_273] : memref<4x27xf32, #tpu.memory_space<smem>>
    %366 = vector.broadcast %365 : f32 to vector<8x256xf32>
    %367 = arith.mulf %364, %366 : vector<8x256xf32>
    %c1_274 = arith.constant 1 : index
    %c2_275 = arith.constant 2 : index
    %c2_276 = arith.constant 2 : index
    %368 = vector.load %arg8[%c1_274, %c2_275, %c2_276] : memref<4x10x290xf32, #tpu.memory_space<vmem>>, vector<1x8x256xf32>
    %369 = vector.shape_cast %368 : vector<1x8x256xf32> to vector<8x256xf32>
    %c1_277 = arith.constant 1 : index
    %c20_278 = arith.constant 20 : index
    %370 = memref.load %arg4[%c1_277, %c20_278] : memref<4x27xf32, #tpu.memory_space<smem>>
    %371 = vector.broadcast %370 : f32 to vector<8x256xf32>
    %372 = arith.mulf %369, %371 : vector<8x256xf32>
    %373 = arith.addf %355, %362 : vector<8x256xf32>
    %374 = arith.addf %356, %367 : vector<8x256xf32>
    %375 = arith.addf %357, %372 : vector<8x256xf32>
    %c1_279 = arith.constant 1 : index
    %c2_280 = arith.constant 2 : index
    %c16_281 = arith.constant 16 : index
    %376 = vector.load %arg8[%c1_279, %c2_280, %c16_281] : memref<4x10x290xf32, #tpu.memory_space<vmem>>, vector<1x8x256xf32>
    %377 = vector.shape_cast %376 : vector<1x8x256xf32> to vector<8x256xf32>
    %c1_282 = arith.constant 1 : index
    %c21_283 = arith.constant 21 : index
    %378 = memref.load %arg4[%c1_282, %c21_283] : memref<4x27xf32, #tpu.memory_space<smem>>
    %379 = vector.broadcast %378 : f32 to vector<8x256xf32>
    %380 = arith.mulf %377, %379 : vector<8x256xf32>
    %c1_284 = arith.constant 1 : index
    %c2_285 = arith.constant 2 : index
    %c17_286 = arith.constant 17 : index
    %381 = vector.load %arg8[%c1_284, %c2_285, %c17_286] : memref<4x10x290xf32, #tpu.memory_space<vmem>>, vector<1x8x256xf32>
    %382 = vector.shape_cast %381 : vector<1x8x256xf32> to vector<8x256xf32>
    %c1_287 = arith.constant 1 : index
    %c22_288 = arith.constant 22 : index
    %383 = memref.load %arg4[%c1_287, %c22_288] : memref<4x27xf32, #tpu.memory_space<smem>>
    %384 = vector.broadcast %383 : f32 to vector<8x256xf32>
    %385 = arith.mulf %382, %384 : vector<8x256xf32>
    %c1_289 = arith.constant 1 : index
    %c2_290 = arith.constant 2 : index
    %c18_291 = arith.constant 18 : index
    %386 = vector.load %arg8[%c1_289, %c2_290, %c18_291] : memref<4x10x290xf32, #tpu.memory_space<vmem>>, vector<1x8x256xf32>
    %387 = vector.shape_cast %386 : vector<1x8x256xf32> to vector<8x256xf32>
    %c1_292 = arith.constant 1 : index
    %c23_293 = arith.constant 23 : index
    %388 = memref.load %arg4[%c1_292, %c23_293] : memref<4x27xf32, #tpu.memory_space<smem>>
    %389 = vector.broadcast %388 : f32 to vector<8x256xf32>
    %390 = arith.mulf %387, %389 : vector<8x256xf32>
    %391 = arith.addf %373, %380 : vector<8x256xf32>
    %392 = arith.addf %374, %385 : vector<8x256xf32>
    %393 = arith.addf %375, %390 : vector<8x256xf32>
    %c1_294 = arith.constant 1 : index
    %c2_295 = arith.constant 2 : index
    %c32_296 = arith.constant 32 : index
    %394 = vector.load %arg8[%c1_294, %c2_295, %c32_296] : memref<4x10x290xf32, #tpu.memory_space<vmem>>, vector<1x8x256xf32>
    %395 = vector.shape_cast %394 : vector<1x8x256xf32> to vector<8x256xf32>
    %c1_297 = arith.constant 1 : index
    %c24_298 = arith.constant 24 : index
    %396 = memref.load %arg4[%c1_297, %c24_298] : memref<4x27xf32, #tpu.memory_space<smem>>
    %397 = vector.broadcast %396 : f32 to vector<8x256xf32>
    %398 = arith.mulf %395, %397 : vector<8x256xf32>
    %c1_299 = arith.constant 1 : index
    %c2_300 = arith.constant 2 : index
    %c33_301 = arith.constant 33 : index
    %399 = vector.load %arg8[%c1_299, %c2_300, %c33_301] : memref<4x10x290xf32, #tpu.memory_space<vmem>>, vector<1x8x256xf32>
    %400 = vector.shape_cast %399 : vector<1x8x256xf32> to vector<8x256xf32>
    %c1_302 = arith.constant 1 : index
    %c25_303 = arith.constant 25 : index
    %401 = memref.load %arg4[%c1_302, %c25_303] : memref<4x27xf32, #tpu.memory_space<smem>>
    %402 = vector.broadcast %401 : f32 to vector<8x256xf32>
    %403 = arith.mulf %400, %402 : vector<8x256xf32>
    %c1_304 = arith.constant 1 : index
    %c2_305 = arith.constant 2 : index
    %c34_306 = arith.constant 34 : index
    %404 = vector.load %arg8[%c1_304, %c2_305, %c34_306] : memref<4x10x290xf32, #tpu.memory_space<vmem>>, vector<1x8x256xf32>
    %405 = vector.shape_cast %404 : vector<1x8x256xf32> to vector<8x256xf32>
    %c1_307 = arith.constant 1 : index
    %c26_308 = arith.constant 26 : index
    %406 = memref.load %arg4[%c1_307, %c26_308] : memref<4x27xf32, #tpu.memory_space<smem>>
    %407 = vector.broadcast %406 : f32 to vector<8x256xf32>
    %408 = arith.mulf %405, %407 : vector<8x256xf32>
    %409 = arith.addf %391, %398 : vector<8x256xf32>
    %410 = arith.addf %392, %403 : vector<8x256xf32>
    %411 = arith.addf %393, %408 : vector<8x256xf32>
    %412 = arith.mulf %38, %409 : vector<8x256xf32>
    %413 = arith.addf %410, %412 : vector<8x256xf32>
    %414 = arith.mulf %41, %411 : vector<8x256xf32>
    %415 = arith.addf %413, %414 : vector<8x256xf32>
    %c1_309 = arith.constant 1 : index
    %c0_310 = arith.constant 0 : index
    %416 = memref.load %arg5[%c1_309, %c0_310] : memref<4x8xf32, #tpu.memory_space<smem>>
    %417 = vector.broadcast %416 : f32 to vector<8x256xf32>
    %418 = arith.mulf %415, %417 : vector<8x256xf32>
    %419 = arith.addf %224, %418 : vector<8x256xf32>
    %c1_311 = arith.constant 1 : index
    %c1_312 = arith.constant 1 : index
    %420 = memref.load %arg5[%c1_311, %c1_312] : memref<4x8xf32, #tpu.memory_space<smem>>
    %421 = vector.broadcast %420 : f32 to vector<8x256xf32>
    %422 = arith.mulf %415, %421 : vector<8x256xf32>
    %423 = arith.addf %228, %422 : vector<8x256xf32>
    %c1_313 = arith.constant 1 : index
    %c2_314 = arith.constant 2 : index
    %424 = memref.load %arg5[%c1_313, %c2_314] : memref<4x8xf32, #tpu.memory_space<smem>>
    %425 = vector.broadcast %424 : f32 to vector<8x256xf32>
    %426 = arith.mulf %415, %425 : vector<8x256xf32>
    %427 = arith.addf %232, %426 : vector<8x256xf32>
    %c1_315 = arith.constant 1 : index
    %c3_316 = arith.constant 3 : index
    %428 = memref.load %arg5[%c1_315, %c3_316] : memref<4x8xf32, #tpu.memory_space<smem>>
    %429 = vector.broadcast %428 : f32 to vector<8x256xf32>
    %430 = arith.mulf %415, %429 : vector<8x256xf32>
    %431 = arith.addf %236, %430 : vector<8x256xf32>
    %c1_317 = arith.constant 1 : index
    %c4_318 = arith.constant 4 : index
    %432 = memref.load %arg5[%c1_317, %c4_318] : memref<4x8xf32, #tpu.memory_space<smem>>
    %433 = vector.broadcast %432 : f32 to vector<8x256xf32>
    %434 = arith.mulf %415, %433 : vector<8x256xf32>
    %435 = arith.addf %240, %434 : vector<8x256xf32>
    %c1_319 = arith.constant 1 : index
    %c5_320 = arith.constant 5 : index
    %436 = memref.load %arg5[%c1_319, %c5_320] : memref<4x8xf32, #tpu.memory_space<smem>>
    %437 = vector.broadcast %436 : f32 to vector<8x256xf32>
    %438 = arith.mulf %415, %437 : vector<8x256xf32>
    %439 = arith.addf %244, %438 : vector<8x256xf32>
    %c1_321 = arith.constant 1 : index
    %c6_322 = arith.constant 6 : index
    %440 = memref.load %arg5[%c1_321, %c6_322] : memref<4x8xf32, #tpu.memory_space<smem>>
    %441 = vector.broadcast %440 : f32 to vector<8x256xf32>
    %442 = arith.mulf %415, %441 : vector<8x256xf32>
    %443 = arith.addf %248, %442 : vector<8x256xf32>
    %c1_323 = arith.constant 1 : index
    %c7_324 = arith.constant 7 : index
    %444 = memref.load %arg5[%c1_323, %c7_324] : memref<4x8xf32, #tpu.memory_space<smem>>
    %445 = vector.broadcast %444 : f32 to vector<8x256xf32>
    %446 = arith.mulf %415, %445 : vector<8x256xf32>
    %447 = arith.addf %252, %446 : vector<8x256xf32>
    %c2_325 = arith.constant 2 : index
    %c0_326 = arith.constant 0 : index
    %c0_327 = arith.constant 0 : index
    %448 = vector.load %arg8[%c2_325, %c0_326, %c0_327] : memref<4x10x290xf32, #tpu.memory_space<vmem>>, vector<1x8x256xf32>
    %449 = vector.shape_cast %448 : vector<1x8x256xf32> to vector<8x256xf32>
    %c2_328 = arith.constant 2 : index
    %c0_329 = arith.constant 0 : index
    %450 = memref.load %arg4[%c2_328, %c0_329] : memref<4x27xf32, #tpu.memory_space<smem>>
    %451 = vector.broadcast %450 : f32 to vector<8x256xf32>
    %452 = arith.mulf %449, %451 : vector<8x256xf32>
    %c2_330 = arith.constant 2 : index
    %c0_331 = arith.constant 0 : index
    %c1_332 = arith.constant 1 : index
    %453 = vector.load %arg8[%c2_330, %c0_331, %c1_332] : memref<4x10x290xf32, #tpu.memory_space<vmem>>, vector<1x8x256xf32>
    %454 = vector.shape_cast %453 : vector<1x8x256xf32> to vector<8x256xf32>
    %c2_333 = arith.constant 2 : index
    %c1_334 = arith.constant 1 : index
    %455 = memref.load %arg4[%c2_333, %c1_334] : memref<4x27xf32, #tpu.memory_space<smem>>
    %456 = vector.broadcast %455 : f32 to vector<8x256xf32>
    %457 = arith.mulf %454, %456 : vector<8x256xf32>
    %c2_335 = arith.constant 2 : index
    %c0_336 = arith.constant 0 : index
    %c2_337 = arith.constant 2 : index
    %458 = vector.load %arg8[%c2_335, %c0_336, %c2_337] : memref<4x10x290xf32, #tpu.memory_space<vmem>>, vector<1x8x256xf32>
    %459 = vector.shape_cast %458 : vector<1x8x256xf32> to vector<8x256xf32>
    %c2_338 = arith.constant 2 : index
    %c2_339 = arith.constant 2 : index
    %460 = memref.load %arg4[%c2_338, %c2_339] : memref<4x27xf32, #tpu.memory_space<smem>>
    %461 = vector.broadcast %460 : f32 to vector<8x256xf32>
    %462 = arith.mulf %459, %461 : vector<8x256xf32>
    %c2_340 = arith.constant 2 : index
    %c0_341 = arith.constant 0 : index
    %c16_342 = arith.constant 16 : index
    %463 = vector.load %arg8[%c2_340, %c0_341, %c16_342] : memref<4x10x290xf32, #tpu.memory_space<vmem>>, vector<1x8x256xf32>
    %464 = vector.shape_cast %463 : vector<1x8x256xf32> to vector<8x256xf32>
    %c2_343 = arith.constant 2 : index
    %c3_344 = arith.constant 3 : index
    %465 = memref.load %arg4[%c2_343, %c3_344] : memref<4x27xf32, #tpu.memory_space<smem>>
    %466 = vector.broadcast %465 : f32 to vector<8x256xf32>
    %467 = arith.mulf %464, %466 : vector<8x256xf32>
    %c2_345 = arith.constant 2 : index
    %c0_346 = arith.constant 0 : index
    %c17_347 = arith.constant 17 : index
    %468 = vector.load %arg8[%c2_345, %c0_346, %c17_347] : memref<4x10x290xf32, #tpu.memory_space<vmem>>, vector<1x8x256xf32>
    %469 = vector.shape_cast %468 : vector<1x8x256xf32> to vector<8x256xf32>
    %c2_348 = arith.constant 2 : index
    %c4_349 = arith.constant 4 : index
    %470 = memref.load %arg4[%c2_348, %c4_349] : memref<4x27xf32, #tpu.memory_space<smem>>
    %471 = vector.broadcast %470 : f32 to vector<8x256xf32>
    %472 = arith.mulf %469, %471 : vector<8x256xf32>
    %c2_350 = arith.constant 2 : index
    %c0_351 = arith.constant 0 : index
    %c18_352 = arith.constant 18 : index
    %473 = vector.load %arg8[%c2_350, %c0_351, %c18_352] : memref<4x10x290xf32, #tpu.memory_space<vmem>>, vector<1x8x256xf32>
    %474 = vector.shape_cast %473 : vector<1x8x256xf32> to vector<8x256xf32>
    %c2_353 = arith.constant 2 : index
    %c5_354 = arith.constant 5 : index
    %475 = memref.load %arg4[%c2_353, %c5_354] : memref<4x27xf32, #tpu.memory_space<smem>>
    %476 = vector.broadcast %475 : f32 to vector<8x256xf32>
    %477 = arith.mulf %474, %476 : vector<8x256xf32>
    %478 = arith.addf %452, %467 : vector<8x256xf32>
    %479 = arith.addf %457, %472 : vector<8x256xf32>
    %480 = arith.addf %462, %477 : vector<8x256xf32>
    %c2_355 = arith.constant 2 : index
    %c0_356 = arith.constant 0 : index
    %c32_357 = arith.constant 32 : index
    %481 = vector.load %arg8[%c2_355, %c0_356, %c32_357] : memref<4x10x290xf32, #tpu.memory_space<vmem>>, vector<1x8x256xf32>
    %482 = vector.shape_cast %481 : vector<1x8x256xf32> to vector<8x256xf32>
    %c2_358 = arith.constant 2 : index
    %c6_359 = arith.constant 6 : index
    %483 = memref.load %arg4[%c2_358, %c6_359] : memref<4x27xf32, #tpu.memory_space<smem>>
    %484 = vector.broadcast %483 : f32 to vector<8x256xf32>
    %485 = arith.mulf %482, %484 : vector<8x256xf32>
    %c2_360 = arith.constant 2 : index
    %c0_361 = arith.constant 0 : index
    %c33_362 = arith.constant 33 : index
    %486 = vector.load %arg8[%c2_360, %c0_361, %c33_362] : memref<4x10x290xf32, #tpu.memory_space<vmem>>, vector<1x8x256xf32>
    %487 = vector.shape_cast %486 : vector<1x8x256xf32> to vector<8x256xf32>
    %c2_363 = arith.constant 2 : index
    %c7_364 = arith.constant 7 : index
    %488 = memref.load %arg4[%c2_363, %c7_364] : memref<4x27xf32, #tpu.memory_space<smem>>
    %489 = vector.broadcast %488 : f32 to vector<8x256xf32>
    %490 = arith.mulf %487, %489 : vector<8x256xf32>
    %c2_365 = arith.constant 2 : index
    %c0_366 = arith.constant 0 : index
    %c34_367 = arith.constant 34 : index
    %491 = vector.load %arg8[%c2_365, %c0_366, %c34_367] : memref<4x10x290xf32, #tpu.memory_space<vmem>>, vector<1x8x256xf32>
    %492 = vector.shape_cast %491 : vector<1x8x256xf32> to vector<8x256xf32>
    %c2_368 = arith.constant 2 : index
    %c8_369 = arith.constant 8 : index
    %493 = memref.load %arg4[%c2_368, %c8_369] : memref<4x27xf32, #tpu.memory_space<smem>>
    %494 = vector.broadcast %493 : f32 to vector<8x256xf32>
    %495 = arith.mulf %492, %494 : vector<8x256xf32>
    %496 = arith.addf %478, %485 : vector<8x256xf32>
    %497 = arith.addf %479, %490 : vector<8x256xf32>
    %498 = arith.addf %480, %495 : vector<8x256xf32>
    %c2_370 = arith.constant 2 : index
    %c1_371 = arith.constant 1 : index
    %c0_372 = arith.constant 0 : index
    %499 = vector.load %arg8[%c2_370, %c1_371, %c0_372] : memref<4x10x290xf32, #tpu.memory_space<vmem>>, vector<1x8x256xf32>
    %500 = vector.shape_cast %499 : vector<1x8x256xf32> to vector<8x256xf32>
    %c2_373 = arith.constant 2 : index
    %c9_374 = arith.constant 9 : index
    %501 = memref.load %arg4[%c2_373, %c9_374] : memref<4x27xf32, #tpu.memory_space<smem>>
    %502 = vector.broadcast %501 : f32 to vector<8x256xf32>
    %503 = arith.mulf %500, %502 : vector<8x256xf32>
    %c2_375 = arith.constant 2 : index
    %c1_376 = arith.constant 1 : index
    %c1_377 = arith.constant 1 : index
    %504 = vector.load %arg8[%c2_375, %c1_376, %c1_377] : memref<4x10x290xf32, #tpu.memory_space<vmem>>, vector<1x8x256xf32>
    %505 = vector.shape_cast %504 : vector<1x8x256xf32> to vector<8x256xf32>
    %c2_378 = arith.constant 2 : index
    %c10_379 = arith.constant 10 : index
    %506 = memref.load %arg4[%c2_378, %c10_379] : memref<4x27xf32, #tpu.memory_space<smem>>
    %507 = vector.broadcast %506 : f32 to vector<8x256xf32>
    %508 = arith.mulf %505, %507 : vector<8x256xf32>
    %c2_380 = arith.constant 2 : index
    %c1_381 = arith.constant 1 : index
    %c2_382 = arith.constant 2 : index
    %509 = vector.load %arg8[%c2_380, %c1_381, %c2_382] : memref<4x10x290xf32, #tpu.memory_space<vmem>>, vector<1x8x256xf32>
    %510 = vector.shape_cast %509 : vector<1x8x256xf32> to vector<8x256xf32>
    %c2_383 = arith.constant 2 : index
    %c11_384 = arith.constant 11 : index
    %511 = memref.load %arg4[%c2_383, %c11_384] : memref<4x27xf32, #tpu.memory_space<smem>>
    %512 = vector.broadcast %511 : f32 to vector<8x256xf32>
    %513 = arith.mulf %510, %512 : vector<8x256xf32>
    %514 = arith.addf %496, %503 : vector<8x256xf32>
    %515 = arith.addf %497, %508 : vector<8x256xf32>
    %516 = arith.addf %498, %513 : vector<8x256xf32>
    %c2_385 = arith.constant 2 : index
    %c1_386 = arith.constant 1 : index
    %c16_387 = arith.constant 16 : index
    %517 = vector.load %arg8[%c2_385, %c1_386, %c16_387] : memref<4x10x290xf32, #tpu.memory_space<vmem>>, vector<1x8x256xf32>
    %518 = vector.shape_cast %517 : vector<1x8x256xf32> to vector<8x256xf32>
    %c2_388 = arith.constant 2 : index
    %c12_389 = arith.constant 12 : index
    %519 = memref.load %arg4[%c2_388, %c12_389] : memref<4x27xf32, #tpu.memory_space<smem>>
    %520 = vector.broadcast %519 : f32 to vector<8x256xf32>
    %521 = arith.mulf %518, %520 : vector<8x256xf32>
    %c2_390 = arith.constant 2 : index
    %c1_391 = arith.constant 1 : index
    %c17_392 = arith.constant 17 : index
    %522 = vector.load %arg8[%c2_390, %c1_391, %c17_392] : memref<4x10x290xf32, #tpu.memory_space<vmem>>, vector<1x8x256xf32>
    %523 = vector.shape_cast %522 : vector<1x8x256xf32> to vector<8x256xf32>
    %c2_393 = arith.constant 2 : index
    %c13_394 = arith.constant 13 : index
    %524 = memref.load %arg4[%c2_393, %c13_394] : memref<4x27xf32, #tpu.memory_space<smem>>
    %525 = vector.broadcast %524 : f32 to vector<8x256xf32>
    %526 = arith.mulf %523, %525 : vector<8x256xf32>
    %c2_395 = arith.constant 2 : index
    %c1_396 = arith.constant 1 : index
    %c18_397 = arith.constant 18 : index
    %527 = vector.load %arg8[%c2_395, %c1_396, %c18_397] : memref<4x10x290xf32, #tpu.memory_space<vmem>>, vector<1x8x256xf32>
    %528 = vector.shape_cast %527 : vector<1x8x256xf32> to vector<8x256xf32>
    %c2_398 = arith.constant 2 : index
    %c14_399 = arith.constant 14 : index
    %529 = memref.load %arg4[%c2_398, %c14_399] : memref<4x27xf32, #tpu.memory_space<smem>>
    %530 = vector.broadcast %529 : f32 to vector<8x256xf32>
    %531 = arith.mulf %528, %530 : vector<8x256xf32>
    %532 = arith.addf %514, %521 : vector<8x256xf32>
    %533 = arith.addf %515, %526 : vector<8x256xf32>
    %534 = arith.addf %516, %531 : vector<8x256xf32>
    %c2_400 = arith.constant 2 : index
    %c1_401 = arith.constant 1 : index
    %c32_402 = arith.constant 32 : index
    %535 = vector.load %arg8[%c2_400, %c1_401, %c32_402] : memref<4x10x290xf32, #tpu.memory_space<vmem>>, vector<1x8x256xf32>
    %536 = vector.shape_cast %535 : vector<1x8x256xf32> to vector<8x256xf32>
    %c2_403 = arith.constant 2 : index
    %c15_404 = arith.constant 15 : index
    %537 = memref.load %arg4[%c2_403, %c15_404] : memref<4x27xf32, #tpu.memory_space<smem>>
    %538 = vector.broadcast %537 : f32 to vector<8x256xf32>
    %539 = arith.mulf %536, %538 : vector<8x256xf32>
    %c2_405 = arith.constant 2 : index
    %c1_406 = arith.constant 1 : index
    %c33_407 = arith.constant 33 : index
    %540 = vector.load %arg8[%c2_405, %c1_406, %c33_407] : memref<4x10x290xf32, #tpu.memory_space<vmem>>, vector<1x8x256xf32>
    %541 = vector.shape_cast %540 : vector<1x8x256xf32> to vector<8x256xf32>
    %c2_408 = arith.constant 2 : index
    %c16_409 = arith.constant 16 : index
    %542 = memref.load %arg4[%c2_408, %c16_409] : memref<4x27xf32, #tpu.memory_space<smem>>
    %543 = vector.broadcast %542 : f32 to vector<8x256xf32>
    %544 = arith.mulf %541, %543 : vector<8x256xf32>
    %c2_410 = arith.constant 2 : index
    %c1_411 = arith.constant 1 : index
    %c34_412 = arith.constant 34 : index
    %545 = vector.load %arg8[%c2_410, %c1_411, %c34_412] : memref<4x10x290xf32, #tpu.memory_space<vmem>>, vector<1x8x256xf32>
    %546 = vector.shape_cast %545 : vector<1x8x256xf32> to vector<8x256xf32>
    %c2_413 = arith.constant 2 : index
    %c17_414 = arith.constant 17 : index
    %547 = memref.load %arg4[%c2_413, %c17_414] : memref<4x27xf32, #tpu.memory_space<smem>>
    %548 = vector.broadcast %547 : f32 to vector<8x256xf32>
    %549 = arith.mulf %546, %548 : vector<8x256xf32>
    %550 = arith.addf %532, %539 : vector<8x256xf32>
    %551 = arith.addf %533, %544 : vector<8x256xf32>
    %552 = arith.addf %534, %549 : vector<8x256xf32>
    %c2_415 = arith.constant 2 : index
    %c2_416 = arith.constant 2 : index
    %c0_417 = arith.constant 0 : index
    %553 = vector.load %arg8[%c2_415, %c2_416, %c0_417] : memref<4x10x290xf32, #tpu.memory_space<vmem>>, vector<1x8x256xf32>
    %554 = vector.shape_cast %553 : vector<1x8x256xf32> to vector<8x256xf32>
    %c2_418 = arith.constant 2 : index
    %c18_419 = arith.constant 18 : index
    %555 = memref.load %arg4[%c2_418, %c18_419] : memref<4x27xf32, #tpu.memory_space<smem>>
    %556 = vector.broadcast %555 : f32 to vector<8x256xf32>
    %557 = arith.mulf %554, %556 : vector<8x256xf32>
    %c2_420 = arith.constant 2 : index
    %c2_421 = arith.constant 2 : index
    %c1_422 = arith.constant 1 : index
    %558 = vector.load %arg8[%c2_420, %c2_421, %c1_422] : memref<4x10x290xf32, #tpu.memory_space<vmem>>, vector<1x8x256xf32>
    %559 = vector.shape_cast %558 : vector<1x8x256xf32> to vector<8x256xf32>
    %c2_423 = arith.constant 2 : index
    %c19_424 = arith.constant 19 : index
    %560 = memref.load %arg4[%c2_423, %c19_424] : memref<4x27xf32, #tpu.memory_space<smem>>
    %561 = vector.broadcast %560 : f32 to vector<8x256xf32>
    %562 = arith.mulf %559, %561 : vector<8x256xf32>
    %c2_425 = arith.constant 2 : index
    %c2_426 = arith.constant 2 : index
    %c2_427 = arith.constant 2 : index
    %563 = vector.load %arg8[%c2_425, %c2_426, %c2_427] : memref<4x10x290xf32, #tpu.memory_space<vmem>>, vector<1x8x256xf32>
    %564 = vector.shape_cast %563 : vector<1x8x256xf32> to vector<8x256xf32>
    %c2_428 = arith.constant 2 : index
    %c20_429 = arith.constant 20 : index
    %565 = memref.load %arg4[%c2_428, %c20_429] : memref<4x27xf32, #tpu.memory_space<smem>>
    %566 = vector.broadcast %565 : f32 to vector<8x256xf32>
    %567 = arith.mulf %564, %566 : vector<8x256xf32>
    %568 = arith.addf %550, %557 : vector<8x256xf32>
    %569 = arith.addf %551, %562 : vector<8x256xf32>
    %570 = arith.addf %552, %567 : vector<8x256xf32>
    %c2_430 = arith.constant 2 : index
    %c2_431 = arith.constant 2 : index
    %c16_432 = arith.constant 16 : index
    %571 = vector.load %arg8[%c2_430, %c2_431, %c16_432] : memref<4x10x290xf32, #tpu.memory_space<vmem>>, vector<1x8x256xf32>
    %572 = vector.shape_cast %571 : vector<1x8x256xf32> to vector<8x256xf32>
    %c2_433 = arith.constant 2 : index
    %c21_434 = arith.constant 21 : index
    %573 = memref.load %arg4[%c2_433, %c21_434] : memref<4x27xf32, #tpu.memory_space<smem>>
    %574 = vector.broadcast %573 : f32 to vector<8x256xf32>
    %575 = arith.mulf %572, %574 : vector<8x256xf32>
    %c2_435 = arith.constant 2 : index
    %c2_436 = arith.constant 2 : index
    %c17_437 = arith.constant 17 : index
    %576 = vector.load %arg8[%c2_435, %c2_436, %c17_437] : memref<4x10x290xf32, #tpu.memory_space<vmem>>, vector<1x8x256xf32>
    %577 = vector.shape_cast %576 : vector<1x8x256xf32> to vector<8x256xf32>
    %c2_438 = arith.constant 2 : index
    %c22_439 = arith.constant 22 : index
    %578 = memref.load %arg4[%c2_438, %c22_439] : memref<4x27xf32, #tpu.memory_space<smem>>
    %579 = vector.broadcast %578 : f32 to vector<8x256xf32>
    %580 = arith.mulf %577, %579 : vector<8x256xf32>
    %c2_440 = arith.constant 2 : index
    %c2_441 = arith.constant 2 : index
    %c18_442 = arith.constant 18 : index
    %581 = vector.load %arg8[%c2_440, %c2_441, %c18_442] : memref<4x10x290xf32, #tpu.memory_space<vmem>>, vector<1x8x256xf32>
    %582 = vector.shape_cast %581 : vector<1x8x256xf32> to vector<8x256xf32>
    %c2_443 = arith.constant 2 : index
    %c23_444 = arith.constant 23 : index
    %583 = memref.load %arg4[%c2_443, %c23_444] : memref<4x27xf32, #tpu.memory_space<smem>>
    %584 = vector.broadcast %583 : f32 to vector<8x256xf32>
    %585 = arith.mulf %582, %584 : vector<8x256xf32>
    %586 = arith.addf %568, %575 : vector<8x256xf32>
    %587 = arith.addf %569, %580 : vector<8x256xf32>
    %588 = arith.addf %570, %585 : vector<8x256xf32>
    %c2_445 = arith.constant 2 : index
    %c2_446 = arith.constant 2 : index
    %c32_447 = arith.constant 32 : index
    %589 = vector.load %arg8[%c2_445, %c2_446, %c32_447] : memref<4x10x290xf32, #tpu.memory_space<vmem>>, vector<1x8x256xf32>
    %590 = vector.shape_cast %589 : vector<1x8x256xf32> to vector<8x256xf32>
    %c2_448 = arith.constant 2 : index
    %c24_449 = arith.constant 24 : index
    %591 = memref.load %arg4[%c2_448, %c24_449] : memref<4x27xf32, #tpu.memory_space<smem>>
    %592 = vector.broadcast %591 : f32 to vector<8x256xf32>
    %593 = arith.mulf %590, %592 : vector<8x256xf32>
    %c2_450 = arith.constant 2 : index
    %c2_451 = arith.constant 2 : index
    %c33_452 = arith.constant 33 : index
    %594 = vector.load %arg8[%c2_450, %c2_451, %c33_452] : memref<4x10x290xf32, #tpu.memory_space<vmem>>, vector<1x8x256xf32>
    %595 = vector.shape_cast %594 : vector<1x8x256xf32> to vector<8x256xf32>
    %c2_453 = arith.constant 2 : index
    %c25_454 = arith.constant 25 : index
    %596 = memref.load %arg4[%c2_453, %c25_454] : memref<4x27xf32, #tpu.memory_space<smem>>
    %597 = vector.broadcast %596 : f32 to vector<8x256xf32>
    %598 = arith.mulf %595, %597 : vector<8x256xf32>
    %c2_455 = arith.constant 2 : index
    %c2_456 = arith.constant 2 : index
    %c34_457 = arith.constant 34 : index
    %599 = vector.load %arg8[%c2_455, %c2_456, %c34_457] : memref<4x10x290xf32, #tpu.memory_space<vmem>>, vector<1x8x256xf32>
    %600 = vector.shape_cast %599 : vector<1x8x256xf32> to vector<8x256xf32>
    %c2_458 = arith.constant 2 : index
    %c26_459 = arith.constant 26 : index
    %601 = memref.load %arg4[%c2_458, %c26_459] : memref<4x27xf32, #tpu.memory_space<smem>>
    %602 = vector.broadcast %601 : f32 to vector<8x256xf32>
    %603 = arith.mulf %600, %602 : vector<8x256xf32>
    %604 = arith.addf %586, %593 : vector<8x256xf32>
    %605 = arith.addf %587, %598 : vector<8x256xf32>
    %606 = arith.addf %588, %603 : vector<8x256xf32>
    %607 = arith.mulf %38, %604 : vector<8x256xf32>
    %608 = arith.addf %605, %607 : vector<8x256xf32>
    %609 = arith.mulf %41, %606 : vector<8x256xf32>
    %610 = arith.addf %608, %609 : vector<8x256xf32>
    %c2_460 = arith.constant 2 : index
    %c0_461 = arith.constant 0 : index
    %611 = memref.load %arg5[%c2_460, %c0_461] : memref<4x8xf32, #tpu.memory_space<smem>>
    %612 = vector.broadcast %611 : f32 to vector<8x256xf32>
    %613 = arith.mulf %610, %612 : vector<8x256xf32>
    %614 = arith.addf %419, %613 : vector<8x256xf32>
    %c2_462 = arith.constant 2 : index
    %c1_463 = arith.constant 1 : index
    %615 = memref.load %arg5[%c2_462, %c1_463] : memref<4x8xf32, #tpu.memory_space<smem>>
    %616 = vector.broadcast %615 : f32 to vector<8x256xf32>
    %617 = arith.mulf %610, %616 : vector<8x256xf32>
    %618 = arith.addf %423, %617 : vector<8x256xf32>
    %c2_464 = arith.constant 2 : index
    %c2_465 = arith.constant 2 : index
    %619 = memref.load %arg5[%c2_464, %c2_465] : memref<4x8xf32, #tpu.memory_space<smem>>
    %620 = vector.broadcast %619 : f32 to vector<8x256xf32>
    %621 = arith.mulf %610, %620 : vector<8x256xf32>
    %622 = arith.addf %427, %621 : vector<8x256xf32>
    %c2_466 = arith.constant 2 : index
    %c3_467 = arith.constant 3 : index
    %623 = memref.load %arg5[%c2_466, %c3_467] : memref<4x8xf32, #tpu.memory_space<smem>>
    %624 = vector.broadcast %623 : f32 to vector<8x256xf32>
    %625 = arith.mulf %610, %624 : vector<8x256xf32>
    %626 = arith.addf %431, %625 : vector<8x256xf32>
    %c2_468 = arith.constant 2 : index
    %c4_469 = arith.constant 4 : index
    %627 = memref.load %arg5[%c2_468, %c4_469] : memref<4x8xf32, #tpu.memory_space<smem>>
    %628 = vector.broadcast %627 : f32 to vector<8x256xf32>
    %629 = arith.mulf %610, %628 : vector<8x256xf32>
    %630 = arith.addf %435, %629 : vector<8x256xf32>
    %c2_470 = arith.constant 2 : index
    %c5_471 = arith.constant 5 : index
    %631 = memref.load %arg5[%c2_470, %c5_471] : memref<4x8xf32, #tpu.memory_space<smem>>
    %632 = vector.broadcast %631 : f32 to vector<8x256xf32>
    %633 = arith.mulf %610, %632 : vector<8x256xf32>
    %634 = arith.addf %439, %633 : vector<8x256xf32>
    %c2_472 = arith.constant 2 : index
    %c6_473 = arith.constant 6 : index
    %635 = memref.load %arg5[%c2_472, %c6_473] : memref<4x8xf32, #tpu.memory_space<smem>>
    %636 = vector.broadcast %635 : f32 to vector<8x256xf32>
    %637 = arith.mulf %610, %636 : vector<8x256xf32>
    %638 = arith.addf %443, %637 : vector<8x256xf32>
    %c2_474 = arith.constant 2 : index
    %c7_475 = arith.constant 7 : index
    %639 = memref.load %arg5[%c2_474, %c7_475] : memref<4x8xf32, #tpu.memory_space<smem>>
    %640 = vector.broadcast %639 : f32 to vector<8x256xf32>
    %641 = arith.mulf %610, %640 : vector<8x256xf32>
    %642 = arith.addf %447, %641 : vector<8x256xf32>
    %c3_476 = arith.constant 3 : index
    %c0_477 = arith.constant 0 : index
    %c0_478 = arith.constant 0 : index
    %643 = vector.load %arg8[%c3_476, %c0_477, %c0_478] : memref<4x10x290xf32, #tpu.memory_space<vmem>>, vector<1x8x256xf32>
    %644 = vector.shape_cast %643 : vector<1x8x256xf32> to vector<8x256xf32>
    %c3_479 = arith.constant 3 : index
    %c0_480 = arith.constant 0 : index
    %645 = memref.load %arg4[%c3_479, %c0_480] : memref<4x27xf32, #tpu.memory_space<smem>>
    %646 = vector.broadcast %645 : f32 to vector<8x256xf32>
    %647 = arith.mulf %644, %646 : vector<8x256xf32>
    %c3_481 = arith.constant 3 : index
    %c0_482 = arith.constant 0 : index
    %c1_483 = arith.constant 1 : index
    %648 = vector.load %arg8[%c3_481, %c0_482, %c1_483] : memref<4x10x290xf32, #tpu.memory_space<vmem>>, vector<1x8x256xf32>
    %649 = vector.shape_cast %648 : vector<1x8x256xf32> to vector<8x256xf32>
    %c3_484 = arith.constant 3 : index
    %c1_485 = arith.constant 1 : index
    %650 = memref.load %arg4[%c3_484, %c1_485] : memref<4x27xf32, #tpu.memory_space<smem>>
    %651 = vector.broadcast %650 : f32 to vector<8x256xf32>
    %652 = arith.mulf %649, %651 : vector<8x256xf32>
    %c3_486 = arith.constant 3 : index
    %c0_487 = arith.constant 0 : index
    %c2_488 = arith.constant 2 : index
    %653 = vector.load %arg8[%c3_486, %c0_487, %c2_488] : memref<4x10x290xf32, #tpu.memory_space<vmem>>, vector<1x8x256xf32>
    %654 = vector.shape_cast %653 : vector<1x8x256xf32> to vector<8x256xf32>
    %c3_489 = arith.constant 3 : index
    %c2_490 = arith.constant 2 : index
    %655 = memref.load %arg4[%c3_489, %c2_490] : memref<4x27xf32, #tpu.memory_space<smem>>
    %656 = vector.broadcast %655 : f32 to vector<8x256xf32>
    %657 = arith.mulf %654, %656 : vector<8x256xf32>
    %c3_491 = arith.constant 3 : index
    %c0_492 = arith.constant 0 : index
    %c16_493 = arith.constant 16 : index
    %658 = vector.load %arg8[%c3_491, %c0_492, %c16_493] : memref<4x10x290xf32, #tpu.memory_space<vmem>>, vector<1x8x256xf32>
    %659 = vector.shape_cast %658 : vector<1x8x256xf32> to vector<8x256xf32>
    %c3_494 = arith.constant 3 : index
    %c3_495 = arith.constant 3 : index
    %660 = memref.load %arg4[%c3_494, %c3_495] : memref<4x27xf32, #tpu.memory_space<smem>>
    %661 = vector.broadcast %660 : f32 to vector<8x256xf32>
    %662 = arith.mulf %659, %661 : vector<8x256xf32>
    %c3_496 = arith.constant 3 : index
    %c0_497 = arith.constant 0 : index
    %c17_498 = arith.constant 17 : index
    %663 = vector.load %arg8[%c3_496, %c0_497, %c17_498] : memref<4x10x290xf32, #tpu.memory_space<vmem>>, vector<1x8x256xf32>
    %664 = vector.shape_cast %663 : vector<1x8x256xf32> to vector<8x256xf32>
    %c3_499 = arith.constant 3 : index
    %c4_500 = arith.constant 4 : index
    %665 = memref.load %arg4[%c3_499, %c4_500] : memref<4x27xf32, #tpu.memory_space<smem>>
    %666 = vector.broadcast %665 : f32 to vector<8x256xf32>
    %667 = arith.mulf %664, %666 : vector<8x256xf32>
    %c3_501 = arith.constant 3 : index
    %c0_502 = arith.constant 0 : index
    %c18_503 = arith.constant 18 : index
    %668 = vector.load %arg8[%c3_501, %c0_502, %c18_503] : memref<4x10x290xf32, #tpu.memory_space<vmem>>, vector<1x8x256xf32>
    %669 = vector.shape_cast %668 : vector<1x8x256xf32> to vector<8x256xf32>
    %c3_504 = arith.constant 3 : index
    %c5_505 = arith.constant 5 : index
    %670 = memref.load %arg4[%c3_504, %c5_505] : memref<4x27xf32, #tpu.memory_space<smem>>
    %671 = vector.broadcast %670 : f32 to vector<8x256xf32>
    %672 = arith.mulf %669, %671 : vector<8x256xf32>
    %673 = arith.addf %647, %662 : vector<8x256xf32>
    %674 = arith.addf %652, %667 : vector<8x256xf32>
    %675 = arith.addf %657, %672 : vector<8x256xf32>
    %c3_506 = arith.constant 3 : index
    %c0_507 = arith.constant 0 : index
    %c32_508 = arith.constant 32 : index
    %676 = vector.load %arg8[%c3_506, %c0_507, %c32_508] : memref<4x10x290xf32, #tpu.memory_space<vmem>>, vector<1x8x256xf32>
    %677 = vector.shape_cast %676 : vector<1x8x256xf32> to vector<8x256xf32>
    %c3_509 = arith.constant 3 : index
    %c6_510 = arith.constant 6 : index
    %678 = memref.load %arg4[%c3_509, %c6_510] : memref<4x27xf32, #tpu.memory_space<smem>>
    %679 = vector.broadcast %678 : f32 to vector<8x256xf32>
    %680 = arith.mulf %677, %679 : vector<8x256xf32>
    %c3_511 = arith.constant 3 : index
    %c0_512 = arith.constant 0 : index
    %c33_513 = arith.constant 33 : index
    %681 = vector.load %arg8[%c3_511, %c0_512, %c33_513] : memref<4x10x290xf32, #tpu.memory_space<vmem>>, vector<1x8x256xf32>
    %682 = vector.shape_cast %681 : vector<1x8x256xf32> to vector<8x256xf32>
    %c3_514 = arith.constant 3 : index
    %c7_515 = arith.constant 7 : index
    %683 = memref.load %arg4[%c3_514, %c7_515] : memref<4x27xf32, #tpu.memory_space<smem>>
    %684 = vector.broadcast %683 : f32 to vector<8x256xf32>
    %685 = arith.mulf %682, %684 : vector<8x256xf32>
    %c3_516 = arith.constant 3 : index
    %c0_517 = arith.constant 0 : index
    %c34_518 = arith.constant 34 : index
    %686 = vector.load %arg8[%c3_516, %c0_517, %c34_518] : memref<4x10x290xf32, #tpu.memory_space<vmem>>, vector<1x8x256xf32>
    %687 = vector.shape_cast %686 : vector<1x8x256xf32> to vector<8x256xf32>
    %c3_519 = arith.constant 3 : index
    %c8_520 = arith.constant 8 : index
    %688 = memref.load %arg4[%c3_519, %c8_520] : memref<4x27xf32, #tpu.memory_space<smem>>
    %689 = vector.broadcast %688 : f32 to vector<8x256xf32>
    %690 = arith.mulf %687, %689 : vector<8x256xf32>
    %691 = arith.addf %673, %680 : vector<8x256xf32>
    %692 = arith.addf %674, %685 : vector<8x256xf32>
    %693 = arith.addf %675, %690 : vector<8x256xf32>
    %c3_521 = arith.constant 3 : index
    %c1_522 = arith.constant 1 : index
    %c0_523 = arith.constant 0 : index
    %694 = vector.load %arg8[%c3_521, %c1_522, %c0_523] : memref<4x10x290xf32, #tpu.memory_space<vmem>>, vector<1x8x256xf32>
    %695 = vector.shape_cast %694 : vector<1x8x256xf32> to vector<8x256xf32>
    %c3_524 = arith.constant 3 : index
    %c9_525 = arith.constant 9 : index
    %696 = memref.load %arg4[%c3_524, %c9_525] : memref<4x27xf32, #tpu.memory_space<smem>>
    %697 = vector.broadcast %696 : f32 to vector<8x256xf32>
    %698 = arith.mulf %695, %697 : vector<8x256xf32>
    %c3_526 = arith.constant 3 : index
    %c1_527 = arith.constant 1 : index
    %c1_528 = arith.constant 1 : index
    %699 = vector.load %arg8[%c3_526, %c1_527, %c1_528] : memref<4x10x290xf32, #tpu.memory_space<vmem>>, vector<1x8x256xf32>
    %700 = vector.shape_cast %699 : vector<1x8x256xf32> to vector<8x256xf32>
    %c3_529 = arith.constant 3 : index
    %c10_530 = arith.constant 10 : index
    %701 = memref.load %arg4[%c3_529, %c10_530] : memref<4x27xf32, #tpu.memory_space<smem>>
    %702 = vector.broadcast %701 : f32 to vector<8x256xf32>
    %703 = arith.mulf %700, %702 : vector<8x256xf32>
    %c3_531 = arith.constant 3 : index
    %c1_532 = arith.constant 1 : index
    %c2_533 = arith.constant 2 : index
    %704 = vector.load %arg8[%c3_531, %c1_532, %c2_533] : memref<4x10x290xf32, #tpu.memory_space<vmem>>, vector<1x8x256xf32>
    %705 = vector.shape_cast %704 : vector<1x8x256xf32> to vector<8x256xf32>
    %c3_534 = arith.constant 3 : index
    %c11_535 = arith.constant 11 : index
    %706 = memref.load %arg4[%c3_534, %c11_535] : memref<4x27xf32, #tpu.memory_space<smem>>
    %707 = vector.broadcast %706 : f32 to vector<8x256xf32>
    %708 = arith.mulf %705, %707 : vector<8x256xf32>
    %709 = arith.addf %691, %698 : vector<8x256xf32>
    %710 = arith.addf %692, %703 : vector<8x256xf32>
    %711 = arith.addf %693, %708 : vector<8x256xf32>
    %c3_536 = arith.constant 3 : index
    %c1_537 = arith.constant 1 : index
    %c16_538 = arith.constant 16 : index
    %712 = vector.load %arg8[%c3_536, %c1_537, %c16_538] : memref<4x10x290xf32, #tpu.memory_space<vmem>>, vector<1x8x256xf32>
    %713 = vector.shape_cast %712 : vector<1x8x256xf32> to vector<8x256xf32>
    %c3_539 = arith.constant 3 : index
    %c12_540 = arith.constant 12 : index
    %714 = memref.load %arg4[%c3_539, %c12_540] : memref<4x27xf32, #tpu.memory_space<smem>>
    %715 = vector.broadcast %714 : f32 to vector<8x256xf32>
    %716 = arith.mulf %713, %715 : vector<8x256xf32>
    %c3_541 = arith.constant 3 : index
    %c1_542 = arith.constant 1 : index
    %c17_543 = arith.constant 17 : index
    %717 = vector.load %arg8[%c3_541, %c1_542, %c17_543] : memref<4x10x290xf32, #tpu.memory_space<vmem>>, vector<1x8x256xf32>
    %718 = vector.shape_cast %717 : vector<1x8x256xf32> to vector<8x256xf32>
    %c3_544 = arith.constant 3 : index
    %c13_545 = arith.constant 13 : index
    %719 = memref.load %arg4[%c3_544, %c13_545] : memref<4x27xf32, #tpu.memory_space<smem>>
    %720 = vector.broadcast %719 : f32 to vector<8x256xf32>
    %721 = arith.mulf %718, %720 : vector<8x256xf32>
    %c3_546 = arith.constant 3 : index
    %c1_547 = arith.constant 1 : index
    %c18_548 = arith.constant 18 : index
    %722 = vector.load %arg8[%c3_546, %c1_547, %c18_548] : memref<4x10x290xf32, #tpu.memory_space<vmem>>, vector<1x8x256xf32>
    %723 = vector.shape_cast %722 : vector<1x8x256xf32> to vector<8x256xf32>
    %c3_549 = arith.constant 3 : index
    %c14_550 = arith.constant 14 : index
    %724 = memref.load %arg4[%c3_549, %c14_550] : memref<4x27xf32, #tpu.memory_space<smem>>
    %725 = vector.broadcast %724 : f32 to vector<8x256xf32>
    %726 = arith.mulf %723, %725 : vector<8x256xf32>
    %727 = arith.addf %709, %716 : vector<8x256xf32>
    %728 = arith.addf %710, %721 : vector<8x256xf32>
    %729 = arith.addf %711, %726 : vector<8x256xf32>
    %c3_551 = arith.constant 3 : index
    %c1_552 = arith.constant 1 : index
    %c32_553 = arith.constant 32 : index
    %730 = vector.load %arg8[%c3_551, %c1_552, %c32_553] : memref<4x10x290xf32, #tpu.memory_space<vmem>>, vector<1x8x256xf32>
    %731 = vector.shape_cast %730 : vector<1x8x256xf32> to vector<8x256xf32>
    %c3_554 = arith.constant 3 : index
    %c15_555 = arith.constant 15 : index
    %732 = memref.load %arg4[%c3_554, %c15_555] : memref<4x27xf32, #tpu.memory_space<smem>>
    %733 = vector.broadcast %732 : f32 to vector<8x256xf32>
    %734 = arith.mulf %731, %733 : vector<8x256xf32>
    %c3_556 = arith.constant 3 : index
    %c1_557 = arith.constant 1 : index
    %c33_558 = arith.constant 33 : index
    %735 = vector.load %arg8[%c3_556, %c1_557, %c33_558] : memref<4x10x290xf32, #tpu.memory_space<vmem>>, vector<1x8x256xf32>
    %736 = vector.shape_cast %735 : vector<1x8x256xf32> to vector<8x256xf32>
    %c3_559 = arith.constant 3 : index
    %c16_560 = arith.constant 16 : index
    %737 = memref.load %arg4[%c3_559, %c16_560] : memref<4x27xf32, #tpu.memory_space<smem>>
    %738 = vector.broadcast %737 : f32 to vector<8x256xf32>
    %739 = arith.mulf %736, %738 : vector<8x256xf32>
    %c3_561 = arith.constant 3 : index
    %c1_562 = arith.constant 1 : index
    %c34_563 = arith.constant 34 : index
    %740 = vector.load %arg8[%c3_561, %c1_562, %c34_563] : memref<4x10x290xf32, #tpu.memory_space<vmem>>, vector<1x8x256xf32>
    %741 = vector.shape_cast %740 : vector<1x8x256xf32> to vector<8x256xf32>
    %c3_564 = arith.constant 3 : index
    %c17_565 = arith.constant 17 : index
    %742 = memref.load %arg4[%c3_564, %c17_565] : memref<4x27xf32, #tpu.memory_space<smem>>
    %743 = vector.broadcast %742 : f32 to vector<8x256xf32>
    %744 = arith.mulf %741, %743 : vector<8x256xf32>
    %745 = arith.addf %727, %734 : vector<8x256xf32>
    %746 = arith.addf %728, %739 : vector<8x256xf32>
    %747 = arith.addf %729, %744 : vector<8x256xf32>
    %c3_566 = arith.constant 3 : index
    %c2_567 = arith.constant 2 : index
    %c0_568 = arith.constant 0 : index
    %748 = vector.load %arg8[%c3_566, %c2_567, %c0_568] : memref<4x10x290xf32, #tpu.memory_space<vmem>>, vector<1x8x256xf32>
    %749 = vector.shape_cast %748 : vector<1x8x256xf32> to vector<8x256xf32>
    %c3_569 = arith.constant 3 : index
    %c18_570 = arith.constant 18 : index
    %750 = memref.load %arg4[%c3_569, %c18_570] : memref<4x27xf32, #tpu.memory_space<smem>>
    %751 = vector.broadcast %750 : f32 to vector<8x256xf32>
    %752 = arith.mulf %749, %751 : vector<8x256xf32>
    %c3_571 = arith.constant 3 : index
    %c2_572 = arith.constant 2 : index
    %c1_573 = arith.constant 1 : index
    %753 = vector.load %arg8[%c3_571, %c2_572, %c1_573] : memref<4x10x290xf32, #tpu.memory_space<vmem>>, vector<1x8x256xf32>
    %754 = vector.shape_cast %753 : vector<1x8x256xf32> to vector<8x256xf32>
    %c3_574 = arith.constant 3 : index
    %c19_575 = arith.constant 19 : index
    %755 = memref.load %arg4[%c3_574, %c19_575] : memref<4x27xf32, #tpu.memory_space<smem>>
    %756 = vector.broadcast %755 : f32 to vector<8x256xf32>
    %757 = arith.mulf %754, %756 : vector<8x256xf32>
    %c3_576 = arith.constant 3 : index
    %c2_577 = arith.constant 2 : index
    %c2_578 = arith.constant 2 : index
    %758 = vector.load %arg8[%c3_576, %c2_577, %c2_578] : memref<4x10x290xf32, #tpu.memory_space<vmem>>, vector<1x8x256xf32>
    %759 = vector.shape_cast %758 : vector<1x8x256xf32> to vector<8x256xf32>
    %c3_579 = arith.constant 3 : index
    %c20_580 = arith.constant 20 : index
    %760 = memref.load %arg4[%c3_579, %c20_580] : memref<4x27xf32, #tpu.memory_space<smem>>
    %761 = vector.broadcast %760 : f32 to vector<8x256xf32>
    %762 = arith.mulf %759, %761 : vector<8x256xf32>
    %763 = arith.addf %745, %752 : vector<8x256xf32>
    %764 = arith.addf %746, %757 : vector<8x256xf32>
    %765 = arith.addf %747, %762 : vector<8x256xf32>
    %c3_581 = arith.constant 3 : index
    %c2_582 = arith.constant 2 : index
    %c16_583 = arith.constant 16 : index
    %766 = vector.load %arg8[%c3_581, %c2_582, %c16_583] : memref<4x10x290xf32, #tpu.memory_space<vmem>>, vector<1x8x256xf32>
    %767 = vector.shape_cast %766 : vector<1x8x256xf32> to vector<8x256xf32>
    %c3_584 = arith.constant 3 : index
    %c21_585 = arith.constant 21 : index
    %768 = memref.load %arg4[%c3_584, %c21_585] : memref<4x27xf32, #tpu.memory_space<smem>>
    %769 = vector.broadcast %768 : f32 to vector<8x256xf32>
    %770 = arith.mulf %767, %769 : vector<8x256xf32>
    %c3_586 = arith.constant 3 : index
    %c2_587 = arith.constant 2 : index
    %c17_588 = arith.constant 17 : index
    %771 = vector.load %arg8[%c3_586, %c2_587, %c17_588] : memref<4x10x290xf32, #tpu.memory_space<vmem>>, vector<1x8x256xf32>
    %772 = vector.shape_cast %771 : vector<1x8x256xf32> to vector<8x256xf32>
    %c3_589 = arith.constant 3 : index
    %c22_590 = arith.constant 22 : index
    %773 = memref.load %arg4[%c3_589, %c22_590] : memref<4x27xf32, #tpu.memory_space<smem>>
    %774 = vector.broadcast %773 : f32 to vector<8x256xf32>
    %775 = arith.mulf %772, %774 : vector<8x256xf32>
    %c3_591 = arith.constant 3 : index
    %c2_592 = arith.constant 2 : index
    %c18_593 = arith.constant 18 : index
    %776 = vector.load %arg8[%c3_591, %c2_592, %c18_593] : memref<4x10x290xf32, #tpu.memory_space<vmem>>, vector<1x8x256xf32>
    %777 = vector.shape_cast %776 : vector<1x8x256xf32> to vector<8x256xf32>
    %c3_594 = arith.constant 3 : index
    %c23_595 = arith.constant 23 : index
    %778 = memref.load %arg4[%c3_594, %c23_595] : memref<4x27xf32, #tpu.memory_space<smem>>
    %779 = vector.broadcast %778 : f32 to vector<8x256xf32>
    %780 = arith.mulf %777, %779 : vector<8x256xf32>
    %781 = arith.addf %763, %770 : vector<8x256xf32>
    %782 = arith.addf %764, %775 : vector<8x256xf32>
    %783 = arith.addf %765, %780 : vector<8x256xf32>
    %c3_596 = arith.constant 3 : index
    %c2_597 = arith.constant 2 : index
    %c32_598 = arith.constant 32 : index
    %784 = vector.load %arg8[%c3_596, %c2_597, %c32_598] : memref<4x10x290xf32, #tpu.memory_space<vmem>>, vector<1x8x256xf32>
    %785 = vector.shape_cast %784 : vector<1x8x256xf32> to vector<8x256xf32>
    %c3_599 = arith.constant 3 : index
    %c24_600 = arith.constant 24 : index
    %786 = memref.load %arg4[%c3_599, %c24_600] : memref<4x27xf32, #tpu.memory_space<smem>>
    %787 = vector.broadcast %786 : f32 to vector<8x256xf32>
    %788 = arith.mulf %785, %787 : vector<8x256xf32>
    %c3_601 = arith.constant 3 : index
    %c2_602 = arith.constant 2 : index
    %c33_603 = arith.constant 33 : index
    %789 = vector.load %arg8[%c3_601, %c2_602, %c33_603] : memref<4x10x290xf32, #tpu.memory_space<vmem>>, vector<1x8x256xf32>
    %790 = vector.shape_cast %789 : vector<1x8x256xf32> to vector<8x256xf32>
    %c3_604 = arith.constant 3 : index
    %c25_605 = arith.constant 25 : index
    %791 = memref.load %arg4[%c3_604, %c25_605] : memref<4x27xf32, #tpu.memory_space<smem>>
    %792 = vector.broadcast %791 : f32 to vector<8x256xf32>
    %793 = arith.mulf %790, %792 : vector<8x256xf32>
    %c3_606 = arith.constant 3 : index
    %c2_607 = arith.constant 2 : index
    %c34_608 = arith.constant 34 : index
    %794 = vector.load %arg8[%c3_606, %c2_607, %c34_608] : memref<4x10x290xf32, #tpu.memory_space<vmem>>, vector<1x8x256xf32>
    %795 = vector.shape_cast %794 : vector<1x8x256xf32> to vector<8x256xf32>
    %c3_609 = arith.constant 3 : index
    %c26_610 = arith.constant 26 : index
    %796 = memref.load %arg4[%c3_609, %c26_610] : memref<4x27xf32, #tpu.memory_space<smem>>
    %797 = vector.broadcast %796 : f32 to vector<8x256xf32>
    %798 = arith.mulf %795, %797 : vector<8x256xf32>
    %799 = arith.addf %781, %788 : vector<8x256xf32>
    %800 = arith.addf %782, %793 : vector<8x256xf32>
    %801 = arith.addf %783, %798 : vector<8x256xf32>
    %802 = arith.mulf %38, %799 : vector<8x256xf32>
    %803 = arith.addf %800, %802 : vector<8x256xf32>
    %804 = arith.mulf %41, %801 : vector<8x256xf32>
    %805 = arith.addf %803, %804 : vector<8x256xf32>
    %c3_611 = arith.constant 3 : index
    %c0_612 = arith.constant 0 : index
    %806 = memref.load %arg5[%c3_611, %c0_612] : memref<4x8xf32, #tpu.memory_space<smem>>
    %807 = vector.broadcast %806 : f32 to vector<8x256xf32>
    %808 = arith.mulf %805, %807 : vector<8x256xf32>
    %809 = arith.addf %614, %808 : vector<8x256xf32>
    %c3_613 = arith.constant 3 : index
    %c1_614 = arith.constant 1 : index
    %810 = memref.load %arg5[%c3_613, %c1_614] : memref<4x8xf32, #tpu.memory_space<smem>>
    %811 = vector.broadcast %810 : f32 to vector<8x256xf32>
    %812 = arith.mulf %805, %811 : vector<8x256xf32>
    %813 = arith.addf %618, %812 : vector<8x256xf32>
    %c3_615 = arith.constant 3 : index
    %c2_616 = arith.constant 2 : index
    %814 = memref.load %arg5[%c3_615, %c2_616] : memref<4x8xf32, #tpu.memory_space<smem>>
    %815 = vector.broadcast %814 : f32 to vector<8x256xf32>
    %816 = arith.mulf %805, %815 : vector<8x256xf32>
    %817 = arith.addf %622, %816 : vector<8x256xf32>
    %c3_617 = arith.constant 3 : index
    %c3_618 = arith.constant 3 : index
    %818 = memref.load %arg5[%c3_617, %c3_618] : memref<4x8xf32, #tpu.memory_space<smem>>
    %819 = vector.broadcast %818 : f32 to vector<8x256xf32>
    %820 = arith.mulf %805, %819 : vector<8x256xf32>
    %821 = arith.addf %626, %820 : vector<8x256xf32>
    %c3_619 = arith.constant 3 : index
    %c4_620 = arith.constant 4 : index
    %822 = memref.load %arg5[%c3_619, %c4_620] : memref<4x8xf32, #tpu.memory_space<smem>>
    %823 = vector.broadcast %822 : f32 to vector<8x256xf32>
    %824 = arith.mulf %805, %823 : vector<8x256xf32>
    %825 = arith.addf %630, %824 : vector<8x256xf32>
    %c3_621 = arith.constant 3 : index
    %c5_622 = arith.constant 5 : index
    %826 = memref.load %arg5[%c3_621, %c5_622] : memref<4x8xf32, #tpu.memory_space<smem>>
    %827 = vector.broadcast %826 : f32 to vector<8x256xf32>
    %828 = arith.mulf %805, %827 : vector<8x256xf32>
    %829 = arith.addf %634, %828 : vector<8x256xf32>
    %c3_623 = arith.constant 3 : index
    %c6_624 = arith.constant 6 : index
    %830 = memref.load %arg5[%c3_623, %c6_624] : memref<4x8xf32, #tpu.memory_space<smem>>
    %831 = vector.broadcast %830 : f32 to vector<8x256xf32>
    %832 = arith.mulf %805, %831 : vector<8x256xf32>
    %833 = arith.addf %638, %832 : vector<8x256xf32>
    %c3_625 = arith.constant 3 : index
    %c7_626 = arith.constant 7 : index
    %834 = memref.load %arg5[%c3_625, %c7_626] : memref<4x8xf32, #tpu.memory_space<smem>>
    %835 = vector.broadcast %834 : f32 to vector<8x256xf32>
    %836 = arith.mulf %805, %835 : vector<8x256xf32>
    %837 = arith.addf %642, %836 : vector<8x256xf32>
    %c0_627 = arith.constant 0 : index
    %c0_628 = arith.constant 0 : index
    %c0_629 = arith.constant 0 : index
    %c0_630 = arith.constant 0 : index
    %838 = vector.load %arg7[%c0_627, %c0_628, %c0_629, %c0_630] : memref<1x8x8x256xf32, #tpu.memory_space<vmem>>, vector<1x1x8x256xf32>
    %839 = vector.shape_cast %838 : vector<1x1x8x256xf32> to vector<8x256xf32>
    %840 = vector.shape_cast %809 : vector<8x256xf32> to vector<1x1x8x256xf32>
    tpu.vector_store %arg7[%c0_627, %c0_628, %c0_629, %c0_630], %840 {strides = array<i32>} : memref<1x8x8x256xf32, #tpu.memory_space<vmem>>, vector<1x1x8x256xf32>,
    %c0_631 = arith.constant 0 : index
    %c1_632 = arith.constant 1 : index
    %c0_633 = arith.constant 0 : index
    %c0_634 = arith.constant 0 : index
    %841 = vector.load %arg7[%c0_631, %c1_632, %c0_633, %c0_634] : memref<1x8x8x256xf32, #tpu.memory_space<vmem>>, vector<1x1x8x256xf32>
    %842 = vector.shape_cast %841 : vector<1x1x8x256xf32> to vector<8x256xf32>
    %843 = vector.shape_cast %813 : vector<8x256xf32> to vector<1x1x8x256xf32>
    tpu.vector_store %arg7[%c0_631, %c1_632, %c0_633, %c0_634], %843 {strides = array<i32>} : memref<1x8x8x256xf32, #tpu.memory_space<vmem>>, vector<1x1x8x256xf32>,
    %c0_635 = arith.constant 0 : index
    %c2_636 = arith.constant 2 : index
    %c0_637 = arith.constant 0 : index
    %c0_638 = arith.constant 0 : index
    %844 = vector.load %arg7[%c0_635, %c2_636, %c0_637, %c0_638] : memref<1x8x8x256xf32, #tpu.memory_space<vmem>>, vector<1x1x8x256xf32>
    %845 = vector.shape_cast %844 : vector<1x1x8x256xf32> to vector<8x256xf32>
    %846 = vector.shape_cast %817 : vector<8x256xf32> to vector<1x1x8x256xf32>
    tpu.vector_store %arg7[%c0_635, %c2_636, %c0_637, %c0_638], %846 {strides = array<i32>} : memref<1x8x8x256xf32, #tpu.memory_space<vmem>>, vector<1x1x8x256xf32>,
    %c0_639 = arith.constant 0 : index
    %c3_640 = arith.constant 3 : index
    %c0_641 = arith.constant 0 : index
    %c0_642 = arith.constant 0 : index
    %847 = vector.load %arg7[%c0_639, %c3_640, %c0_641, %c0_642] : memref<1x8x8x256xf32, #tpu.memory_space<vmem>>, vector<1x1x8x256xf32>
    %848 = vector.shape_cast %847 : vector<1x1x8x256xf32> to vector<8x256xf32>
    %849 = vector.shape_cast %821 : vector<8x256xf32> to vector<1x1x8x256xf32>
    tpu.vector_store %arg7[%c0_639, %c3_640, %c0_641, %c0_642], %849 {strides = array<i32>} : memref<1x8x8x256xf32, #tpu.memory_space<vmem>>, vector<1x1x8x256xf32>,
    %c0_643 = arith.constant 0 : index
    %c4_644 = arith.constant 4 : index
    %c0_645 = arith.constant 0 : index
    %c0_646 = arith.constant 0 : index
    %850 = vector.load %arg7[%c0_643, %c4_644, %c0_645, %c0_646] : memref<1x8x8x256xf32, #tpu.memory_space<vmem>>, vector<1x1x8x256xf32>
    %851 = vector.shape_cast %850 : vector<1x1x8x256xf32> to vector<8x256xf32>
    %852 = vector.shape_cast %825 : vector<8x256xf32> to vector<1x1x8x256xf32>
    tpu.vector_store %arg7[%c0_643, %c4_644, %c0_645, %c0_646], %852 {strides = array<i32>} : memref<1x8x8x256xf32, #tpu.memory_space<vmem>>, vector<1x1x8x256xf32>,
    %c0_647 = arith.constant 0 : index
    %c5_648 = arith.constant 5 : index
    %c0_649 = arith.constant 0 : index
    %c0_650 = arith.constant 0 : index
    %853 = vector.load %arg7[%c0_647, %c5_648, %c0_649, %c0_650] : memref<1x8x8x256xf32, #tpu.memory_space<vmem>>, vector<1x1x8x256xf32>
    %854 = vector.shape_cast %853 : vector<1x1x8x256xf32> to vector<8x256xf32>
    %855 = vector.shape_cast %829 : vector<8x256xf32> to vector<1x1x8x256xf32>
    tpu.vector_store %arg7[%c0_647, %c5_648, %c0_649, %c0_650], %855 {strides = array<i32>} : memref<1x8x8x256xf32, #tpu.memory_space<vmem>>, vector<1x1x8x256xf32>,
    %c0_651 = arith.constant 0 : index
    %c6_652 = arith.constant 6 : index
    %c0_653 = arith.constant 0 : index
    %c0_654 = arith.constant 0 : index
    %856 = vector.load %arg7[%c0_651, %c6_652, %c0_653, %c0_654] : memref<1x8x8x256xf32, #tpu.memory_space<vmem>>, vector<1x1x8x256xf32>
    %857 = vector.shape_cast %856 : vector<1x1x8x256xf32> to vector<8x256xf32>
    %858 = vector.shape_cast %833 : vector<8x256xf32> to vector<1x1x8x256xf32>
    tpu.vector_store %arg7[%c0_651, %c6_652, %c0_653, %c0_654], %858 {strides = array<i32>} : memref<1x8x8x256xf32, #tpu.memory_space<vmem>>, vector<1x1x8x256xf32>,
    %c0_655 = arith.constant 0 : index
    %c7_656 = arith.constant 7 : index
    %c0_657 = arith.constant 0 : index
    %c0_658 = arith.constant 0 : index
    %859 = vector.load %arg7[%c0_655, %c7_656, %c0_657, %c0_658] : memref<1x8x8x256xf32, #tpu.memory_space<vmem>>, vector<1x1x8x256xf32>
    %860 = vector.shape_cast %859 : vector<1x1x8x256xf32> to vector<8x256xf32>
    %861 = vector.shape_cast %837 : vector<8x256xf32> to vector<1x1x8x256xf32>
    tpu.vector_store %arg7[%c0_655, %c7_656, %c0_657, %c0_658], %861 {strides = array<i32>} : memref<1x8x8x256xf32, #tpu.memory_space<vmem>>, vector<1x1x8x256xf32>,
    return
  }
  func.func @transform_0(%arg0: i32, %arg1: i32) -> (i32, i32, i32, i32) {
    %c0_i32 = arith.constant 0 : i32
    %c0_i32_0 = arith.constant 0 : i32
    %c0_i32_1 = arith.constant 0 : i32
    %c0_i32_2 = arith.constant 0 : i32
    return %arg0, %c0_i32, %c0_i32_0, %c0_i32_1 : i32, i32, i32, i32
  }
  func.func @transform_1(%arg0: i32, %arg1: i32) -> (i32, i32) {
    %c0_i32 = arith.constant 0 : i32
    %c0_i32_0 = arith.constant 0 : i32
    %c0_i32_1 = arith.constant 0 : i32
    return %c0_i32, %c0_i32_0 : i32, i32
  }
  func.func @transform_2(%arg0: i32, %arg1: i32) -> (i32, i32) {
    %c0_i32 = arith.constant 0 : i32
    %c0_i32_0 = arith.constant 0 : i32
    %c0_i32_1 = arith.constant 0 : i32
    return %c0_i32, %c0_i32_0 : i32, i32
  }
  func.func @transform_3(%arg0: i32, %arg1: i32) -> (i32, i32) {
    %c0_i32 = arith.constant 0 : i32
    %c0_i32_0 = arith.constant 0 : i32
    %c0_i32_1 = arith.constant 0 : i32
    return %c0_i32, %c0_i32_0 : i32, i32
  }
  func.func @transform_4(%arg0: i32, %arg1: i32) -> (i32, i32) {
    %c0_i32 = arith.constant 0 : i32
    %c0_i32_0 = arith.constant 0 : i32
    %c0_i32_1 = arith.constant 0 : i32
    return %c0_i32, %c0_i32_0 : i32, i32
  }
  func.func @transform_5(%arg0: i32, %arg1: i32) -> (i32, i32, i32, i32) {
    %c0_i32 = arith.constant 0 : i32
    %c0_i32_0 = arith.constant 0 : i32
    %c0_i32_1 = arith.constant 0 : i32
    return %arg0, %c0_i32, %arg1, %c0_i32_0 : i32, i32, i32, i32
  }
}

</mosaic_0001>

<llo_original>
// kernel: tpu_custom_call.1
$region0: #{tpu_custom_call.1}
  #allocation0 [shape = 'u32[]', space=smem, size = 0x4, offset = 0x4, fixed_abs, tag = 'smem constant byte address 0x4 - core index']
  #allocation1 [shape = 'u32[144,128]{1,0:T(1,128)}', space=vmem, size = 0x12000, scoped, tag = 'internal scratch']
  #allocation2 [shape = 'f32[4,10,290]{2,1,0:T(8,128)}', space=vmem, size = 0x18000, scoped, tag = 'scratch operand']
  %s0 = inlined_call_operand.hbm [shape: f32[2,4,16,256], index: 0, kind: input, shape index: {}]
  %s1 = inlined_call_operand.hbm [shape: f32[2,256], index: 1, kind: input, shape index: {}]
  %s2 = inlined_call_operand.hbm [shape: f32[4,27], index: 2, kind: input, shape index: {}]
  %s3 = inlined_call_operand.hbm [shape: f32[4,8], index: 3, kind: input, shape index: {}]
  %s4 = inlined_call_operand.hbm [shape: f32[1,8], index: 4, kind: input, shape index: {}]
  %s5 = inlined_call_operand.hbm [shape: f32[2,8,16,256], index: 5, kind: output, shape index: {}]
  %s6 = sld [smem:[#allocation0]]
  $region73: #{tpu_custom_call.1} parent=0
    _
  %s8 = ssub.s32 1, %s6
  %s9 = scalar_select 0, %s8, %s6
  $region1: #{tpu_custom_call.1} parent=0
    #allocation3 [shape = 'u8[131072]{0}', space=vmem, size = 0x20000, scoped, tag = 'input window, operand 0']
    #allocation4 [shape = 's32[2]{0}', space=sflag, size = 0x8, scoped, tag = 'scoped memory for tpu_custom_call.1']
    #allocation5 [shape = 's32[2]{0}', space=sflag, size = 0x8, scoped, tag = 'scoped memory for tpu_custom_call.1']
    #allocation6 [shape = 's32[2]{0}', space=sflag, size = 0x8, scoped, tag = 'scoped memory for tpu_custom_call.1']
    #allocation7 [shape = 'u8[2048]{0}', space=vmem, size = 0x800, scoped, tag = 'input window, operand 1, single buffered']
    #allocation8 [shape = 's32[1]{0}', space=sflag, size = 0x4, scoped, tag = 'scoped memory for tpu_custom_call.1']
    #allocation9 [shape = 'u8[2048]{0}', space=smem, size = 0x800, scoped, tag = 'input window, operand 2, single buffered']
    #allocation10 [shape = 'u8[2048]{0}', space=smem, size = 0x800, scoped, tag = 'input window, operand 3, single buffered']
    #allocation11 [shape = 's32[1]{0}', space=sflag, size = 0x4, scoped, tag = 'scoped memory for tpu_custom_call.1']
    #allocation12 [shape = 'u8[512]{0}', space=smem, size = 0x200, scoped, tag = 'input window, operand 4, single buffered']
    #allocation13 [shape = 'u8[131072]{0}', space=vmem, size = 0x20000, scoped, tag = 'output window, operand 0']
    %10 = vsyncpa [#allocation4], 0
    %s11 = scalar_lea.sflag [#allocation4], 1
    %12 = vsyncpa %s11, 0
    %13 = vsyncpa [#allocation8], 0
    %14 = vsyncpa [#allocation6], 0
    %15 = vsyncpa [#allocation11], 0
    %16 = vsyncpa [#allocation5], 0
    %s17 = scalar_lea.sflag [#allocation5], 1
    %18 = vsyncpa %s17, 0
    loop: start=0, step=1, limit=6
    $region2: #{tpu_custom_call.1} parent=1 // loop_pre_header
      _
    $region3: #{tpu_custom_call.1} parent=1 // loop_header
      %s20 = sphi 0, %s24
      %p21 = scmp.ge.s32.totalorder %s20, 6
      %s27 = sphi 0, %s39
      %s28 = sphi 0, %s35
      %s29 = sphi 0, %s27
      %s30 = sphi 0, %s28
      %s31 = sphi 0, %s29
      %s32 = sphi 0, %s30
      %s42 = sphi 0, %s44
      %s45 = sphi 0, %s42
      %s46 = sphi 0, %s45
      %s62 = sphi 0, %s46
      %s66 = sphi 0, %s66
      %s68 = sphi 0, %s66
      %s69 = sphi 0, %s68
      %s83 = sphi 0, %s69
      %s87 = sphi 0, %s87
      %s89 = sphi 0, %s87
      %s90 = sphi 0, %s89
      %s104 = sphi 0, %s90
      %s108 = sphi 0, %s108
      %s110 = sphi 0, %s108
      %s111 = sphi 0, %s110
      %s125 = sphi 0, %s111
      %s129 = sphi 0, %s129
      %s131 = sphi 0, %s129
      %s132 = sphi 0, %s131
      %s146 = sphi 0, %s132
      %s154 = sphi 0, %s156
      %s157 = sphi 0, %s154
      %s158 = sphi 0, %s157
      %s174 = sphi 0, %s158
    $region4: #{tpu_custom_call.1} parent=1 // loop_header_branch
      %23 = sbr.rel (%p21) target = $region8
    $region5: #{tpu_custom_call.1} parent=1 // loop_body
      %s25 = ssub.s32 %s20, 1
      %s26 = ssub.s32 %s20, 2
      %s33 = sadd.s32 1, %s28
      %p34 = scmp.ge.s32.totalorder %s33, 2
      %s35 = scalar_select %p34, 0, %s33
      %s36 = sadd.s32 1, %s27
      %s37 = scalar_select %p34, %s36, %s27
      %p38 = scmp.ge.s32.totalorder %s37, 2
      %s39 = scalar_select %p38, 0, %s37
      %s40 = ssub.s32 %s27, %s39
      %p41 = scmp.eq.s32.totalorder %s40, 0
      %s43 = sadd.s32 %s42, 1
      %s44 = scalar_select %p41, %s42, %s43
      %p47 = pneg %p41
      %p48 = scmp.eq.s32.totalorder %s20, 3
      %p49 = por %p47, %p48
      %p50 = scmp.ne.s32.totalorder %s42, %s45
      %p51 = scmp.eq.s32.totalorder %s20, 0
      %p52 = por %p50, %p51
      %p53 = scmp.ne.s32.totalorder %s42, %s45
      %p54 = scmp.eq.s32.totalorder %s25, 3
      %p55 = por %p53, %p54
      %p56 = scmp.ne.s32.totalorder %s45, %s46
      %p57 = scmp.eq.s32.totalorder %s25, 0
      %p58 = por %p56, %p57
      %p59 = scmp.ne.s32.totalorder %s45, %s46
      %p60 = scmp.eq.s32.totalorder %s26, 3
      %p61 = por %p59, %p60
      %p63 = scmp.ne.s32.totalorder %s46, %s62
      %p64 = scmp.eq.s32.totalorder %s26, 0
      %p65 = por %p63, %p64
      %s67 = sadd.s32 %s66, 1
      %p70 = scmp.eq.s32.totalorder %s20, 3
      %p71 = scmp.ne.s32.totalorder %s66, %s68
      %p72 = scmp.eq.s32.totalorder %s20, 0
      %p73 = por %p71, %p72
      %p74 = scmp.ne.s32.totalorder %s66, %s68
      %p75 = scmp.eq.s32.totalorder %s25, 3
      %p76 = por %p74, %p75
      %p77 = scmp.ne.s32.totalorder %s68, %s69
      %p78 = scmp.eq.s32.totalorder %s25, 0
      %p79 = por %p77, %p78
      %p80 = scmp.ne.s32.totalorder %s68, %s69
      %p81 = scmp.eq.s32.totalorder %s26, 3
      %p82 = por %p80, %p81
      %p84 = scmp.ne.s32.totalorder %s69, %s83
      %p85 = scmp.eq.s32.totalorder %s26, 0
      %p86 = por %p84, %p85
      %s88 = sadd.s32 %s87, 1
      %p91 = scmp.eq.s32.totalorder %s20, 3
      %p92 = scmp.ne.s32.totalorder %s87, %s89
      %p93 = scmp.eq.s32.totalorder %s20, 0
      %p94 = por %p92, %p93
      %p95 = scmp.ne.s32.totalorder %s87, %s89
      %p96 = scmp.eq.s32.totalorder %s25, 3
      %p97 = por %p95, %p96
      %p98 = scmp.ne.s32.totalorder %s89, %s90
      %p99 = scmp.eq.s32.totalorder %s25, 0
      %p100 = por %p98, %p99
      %p101 = scmp.ne.s32.totalorder %s89, %s90
      %p102 = scmp.eq.s32.totalorder %s26, 3
      %p103 = por %p101, %p102
      %p105 = scmp.ne.s32.totalorder %s90, %s104
      %p106 = scmp.eq.s32.totalorder %s26, 0
      %p107 = por %p105, %p106
      %s109 = sadd.s32 %s108, 1
      %p112 = scmp.eq.s32.totalorder %s20, 3
      %p113 = scmp.ne.s32.totalorder %s108, %s110
      %p114 = scmp.eq.s32.totalorder %s20, 0
      %p115 = por %p113, %p114
      %p116 = scmp.ne.s32.totalorder %s108, %s110
      %p117 = scmp.eq.s32.totalorder %s25, 3
      %p118 = por %p116, %p117
      %p119 = scmp.ne.s32.totalorder %s110, %s111
      %p120 = scmp.eq.s32.totalorder %s25, 0
      %p121 = por %p119, %p120
      %p122 = scmp.ne.s32.totalorder %s110, %s111
      %p123 = scmp.eq.s32.totalorder %s26, 3
      %p124 = por %p122, %p123
      %p126 = scmp.ne.s32.totalorder %s111, %s125
      %p127 = scmp.eq.s32.totalorder %s26, 0
      %p128 = por %p126, %p127
      %s130 = sadd.s32 %s129, 1
      %p133 = scmp.eq.s32.totalorder %s20, 3
      %p134 = scmp.ne.s32.totalorder %s129, %s131
      %p135 = scmp.eq.s32.totalorder %s20, 0
      %p136 = por %p134, %p135
      %p137 = scmp.ne.s32.totalorder %s129, %s131
      %p138 = scmp.eq.s32.totalorder %s25, 3
      %p139 = por %p137, %p138
      %p140 = scmp.ne.s32.totalorder %s131, %s132
      %p141 = scmp.eq.s32.totalorder %s25, 0
      %p142 = por %p140, %p141
      %p143 = scmp.ne.s32.totalorder %s131, %s132
      %p144 = scmp.eq.s32.totalorder %s26, 3
      %p145 = por %p143, %p144
      %p147 = scmp.ne.s32.totalorder %s132, %s146
      %p148 = scmp.eq.s32.totalorder %s26, 0
      %p149 = por %p147, %p148
      %s150 = ssub.s32 %s27, %s39
      %s151 = ssub.s32 %s28, %s35
      %s152 = sor.u32 %s150, %s151
      %p153 = scmp.eq.s32.totalorder %s152, 0
      %s155 = sadd.s32 %s154, 1
      %s156 = scalar_select %p153, %s154, %s155
      %p159 = pneg %p153
      %p160 = scmp.eq.s32.totalorder %s20, 3
      %p161 = por %p159, %p160
      %p162 = scmp.ne.s32.totalorder %s154, %s157
      %p163 = scmp.eq.s32.totalorder %s20, 0
      %p164 = por %p162, %p163
      %p165 = scmp.ne.s32.totalorder %s154, %s157
      %p166 = scmp.eq.s32.totalorder %s25, 3
      %p167 = por %p165, %p166
      %p168 = scmp.ne.s32.totalorder %s157, %s158
      %p169 = scmp.eq.s32.totalorder %s25, 0
      %p170 = por %p168, %p169
      %p171 = scmp.ne.s32.totalorder %s157, %s158
      %p172 = scmp.eq.s32.totalorder %s26, 3
      %p173 = por %p171, %p172
      %p175 = scmp.ne.s32.totalorder %s158, %s174
      %p176 = scmp.eq.s32.totalorder %s26, 0
      %p177 = por %p175, %p176
      %p178 = scmp.le.s32.totalorder 1, %s20
      %p179 = scmp.lt.s32.totalorder %s20, 5
      %p180 = pnand %p178, %p179
      %p181 = pneg %p180
      // Predicated region
      $region9: #{tpu_custom_call.1} parent=5 // pred_check
        _
      $region10: #{tpu_custom_call.1} parent=5 // pred_check_branch
        %183 = sbr.rel (%p180) target = $region12
      $region11: #{tpu_custom_call.1} parent=5 // pred_region
        %s184 = ssub.s32 %s20, 1
        // Predicated region
        $region13: #{tpu_custom_call.1} parent=11 // pred_check
          %p185 = pneg %p79
        $region14: #{tpu_custom_call.1} parent=11 // pred_check_branch
          %187 = sbr.rel (%p185) target = $region16
        $region15: #{tpu_custom_call.1} parent=11 // pred_region
          %s189 = ssub.s32 64, 64
          %190 = vsyncadd [#allocation8], %s189
          %s192 = sshll.u32 [#allocation7], 4
          %s193 = int_to_ptr.vmem [resolvable:$true] %s192
          %195 = dma.hbm_to_vmem [thread:$0]  %s1, 64, %s193, [#allocation8]
        $region16: #{tpu_custom_call.1} parent=11 // pred_fallthru
          _
        // Predicated region
        $region17: #{tpu_custom_call.1} parent=11 // pred_check
          %p196 = pneg %p100
        $region18: #{tpu_custom_call.1} parent=11 // pred_check_branch
          %198 = sbr.rel (%p196) target = $region20
        $region19: #{tpu_custom_call.1} parent=11 // pred_region
          %s200 = ssub.s32 64, 64
          %201 = vsyncadd [#allocation6], %s200
          %204 = dma.hbm_to_smem %s2, 64, [#allocation9], [#allocation6]
        $region20: #{tpu_custom_call.1} parent=11 // pred_fallthru
          _
        // Predicated region
        $region21: #{tpu_custom_call.1} parent=11 // pred_check
          %p205 = pneg %p121
        $region22: #{tpu_custom_call.1} parent=11 // pred_check_branch
          %207 = sbr.rel (%p205) target = $region24
        $region23: #{tpu_custom_call.1} parent=11 // pred_region
          %s209 = ssub.s32 64, 64
          %210 = vsyncadd [#allocation11], %s209
          %213 = dma.hbm_to_smem %s3, 64, [#allocation10], [#allocation11]
        $region24: #{tpu_custom_call.1} parent=11 // pred_fallthru
          _
        // Predicated region
        $region25: #{tpu_custom_call.1} parent=11 // pred_check
          %p214 = pneg %p142
        $region26: #{tpu_custom_call.1} parent=11 // pred_check_branch
          %216 = sbr.rel (%p214) target = $region28
        $region27: #{tpu_custom_call.1} parent=11 // pred_region
          %s218 = ssub.s32 16, 16
          %219 = vsyncadd [#allocation11], %s218
          %222 = dma.hbm_to_smem %s4, 16, [#allocation12], [#allocation11]
        $region28: #{tpu_custom_call.1} parent=11 // pred_fallthru
          _
      $region12: #{tpu_custom_call.1} parent=5 // pred_fallthru
        _
      %p223 = scmp.lt.s32.totalorder %s20, 4
      // Predicated region
      $region29: #{tpu_custom_call.1} parent=5 // pred_check
        %p224 = pneg %p223
      $region30: #{tpu_custom_call.1} parent=5 // pred_check_branch
        %226 = sbr.rel (%p224) target = $region32
      $region31: #{tpu_custom_call.1} parent=5 // pred_region
        // Predicated region
        $region33: #{tpu_custom_call.1} parent=31 // pred_check
          %p227 = pneg %p52
        $region34: #{tpu_custom_call.1} parent=31 // pred_check_branch
          %229 = sbr.rel (%p227) target = $region36
        $region35: #{tpu_custom_call.1} parent=31 // pred_region
          %s230 = sand.u32 %s42, 1
          %s231 = scalar_lea.sflag [#allocation4], %s230
          %s232 = sand.u32 %s42, 1
          %s233 = smul.addr %s232, 128
          %s234 = scalar_lea.vmem [#allocation3], %s233
          %s236 = ssub.s32 2048, 2048
          %237 = vsyncadd %s231, %s236
          %s238 = smul.addr %s27, 16
          %s239 = smul.addr %s238, 128
          %s240 = scalar_lea.hbm %s0, %s239
          %s241 = sshll.u32 %s234, 4
          %s242 = int_to_ptr.vmem [resolvable:$true] %s241
          %247 = dma.hbm_to_vmem [thread:$0]  %s240, 2048, %s242, %s231, 256, 256, 16
        $region36: #{tpu_custom_call.1} parent=31 // pred_fallthru
          _
      $region32: #{tpu_custom_call.1} parent=5 // pred_fallthru
        _
      %p248 = scmp.le.s32.totalorder 1, %s20
      %p249 = scmp.lt.s32.totalorder %s20, 5
      %p250 = pnand %p248, %p249
      %p251 = pneg %p250
      // Predicated region
      $region37: #{tpu_custom_call.1} parent=5 // pred_check
        _
      $region38: #{tpu_custom_call.1} parent=5 // pred_check_branch
        %253 = sbr.rel (%p250) target = $region40
      $region39: #{tpu_custom_call.1} parent=5 // pred_region
        %s254 = ssub.s32 %s20, 1
        %s255 = sand.u32 %s45, 1
        %s256 = scalar_lea.sflag [#allocation4], %s255
        %s257 = sand.u32 %s45, 1
        %s258 = smul.addr %s257, 128
        %s259 = scalar_lea.vmem [#allocation3], %s258
        // Predicated region
        $region41: #{tpu_custom_call.1} parent=39 // pred_check
          %p260 = pneg %p58
        $region42: #{tpu_custom_call.1} parent=39 // pred_check_branch
          %262 = sbr.rel (%p260) target = $region44
        $region43: #{tpu_custom_call.1} parent=39 // pred_region
          %263 = dma.done %s256, 2048
        $region44: #{tpu_custom_call.1} parent=39 // pred_fallthru
          _
        // Predicated region
        $region45: #{tpu_custom_call.1} parent=39 // pred_check
          %p264 = pneg %p79
        $region46: #{tpu_custom_call.1} parent=39 // pred_check_branch
          %266 = sbr.rel (%p264) target = $region48
        $region47: #{tpu_custom_call.1} parent=39 // pred_region
          %267 = dma.done [#allocation8], 64
        $region48: #{tpu_custom_call.1} parent=39 // pred_fallthru
          _
        // Predicated region
        $region49: #{tpu_custom_call.1} parent=39 // pred_check
          %p268 = pneg %p100
        $region50: #{tpu_custom_call.1} parent=39 // pred_check_branch
          %270 = sbr.rel (%p268) target = $region52
        $region51: #{tpu_custom_call.1} parent=39 // pred_region
          %271 = dma.done [#allocation6], 64
        $region52: #{tpu_custom_call.1} parent=39 // pred_fallthru
          _
        // Predicated region
        $region53: #{tpu_custom_call.1} parent=39 // pred_check
          %p272 = pneg %p121
        $region54: #{tpu_custom_call.1} parent=39 // pred_check_branch
          %274 = sbr.rel (%p272) target = $region56
        $region55: #{tpu_custom_call.1} parent=39 // pred_region
          %275 = dma.done [#allocation11], 64
        $region56: #{tpu_custom_call.1} parent=39 // pred_fallthru
          _
        // Predicated region
        $region57: #{tpu_custom_call.1} parent=39 // pred_check
          %p276 = pneg %p142
        $region58: #{tpu_custom_call.1} parent=39 // pred_check_branch
          %278 = sbr.rel (%p276) target = $region60
        $region59: #{tpu_custom_call.1} parent=39 // pred_region
          %279 = dma.done [#allocation11], 16
        $region60: #{tpu_custom_call.1} parent=39 // pred_fallthru
          _
        %280 = sfence
        %s281 = sand.u32 %s45, 1
        %s282 = scalar_lea.sflag [#allocation4], %s281
        %s283 = sand.u32 %s45, 1
        %s284 = smul.addr %s283, 128
        %s285 = scalar_lea.vmem [#allocation3], %s284
        %p286 = pneg %p58
        %p287 = pneg %p55
        %p288 = pneg %p79
        %p289 = pneg %p76
        %p290 = pneg %p100
        %p291 = pneg %p97
        %p292 = pneg %p121
        %p293 = pneg %p118
        %p294 = pneg %p142
        %p295 = pneg %p139
        %p296 = pneg %p170
        %p297 = pneg %p167
        %s298 = sand.u32 %s157, 1
        %s299 = scalar_lea.sflag [#allocation5], %s298
        %s300 = sand.u32 %s157, 1
        %s301 = smul.addr %s300, 128
        %s302 = scalar_lea.vmem [#allocation13], %s301
        %s303 = smul.u32 %s30, 8
        %vm304 = vcmask 138240
        %305 = vst.msk [vmem:[#allocation2] sm:$0xff] %vm304, 0.0
        %vm306 = vcmask 132096
        %307 = vst.msk [vmem:[#allocation2 + $0x18] sm:$0x3] %vm306, 0.0
        %308 = vst.msk [vmem:[#allocation2 + $0x30] sm:$0xff] %vm304, 0.0
        %309 = vst.msk [vmem:[#allocation2 + $0x48] sm:$0x3] %vm306, 0.0
        %310 = vst.msk [vmem:[#allocation2 + $0x60] sm:$0xff] %vm304, 0.0
        %311 = vst.msk [vmem:[#allocation2 + $0x78] sm:$0x3] %vm306, 0.0
        %312 = vst.msk [vmem:[#allocation2 + $0x90] sm:$0xff] %vm304, 0.0
        %313 = vst.msk [vmem:[#allocation2 + $0xa8] sm:$0x3] %vm306, 0.0
        %vm314 = vcmask 277640
        %315 = vst.msk [vmem:[#allocation2 + $0x10] sm:$0xff] %vm314, 0.0
        %vm316 = vcmask 271496
        %317 = vst.msk [vmem:[#allocation2 + $0x28] sm:$0x3] %vm316, 0.0
        %318 = vst.msk [vmem:[#allocation2 + $0x40] sm:$0xff] %vm314, 0.0
        %319 = vst.msk [vmem:[#allocation2 + $0x58] sm:$0x3] %vm316, 0.0
        %320 = vst.msk [vmem:[#allocation2 + $0x70] sm:$0xff] %vm314, 0.0
        %321 = vst.msk [vmem:[#allocation2 + $0x88] sm:$0x3] %vm316, 0.0
        %322 = vst.msk [vmem:[#allocation2 + $0xa0] sm:$0xff] %vm314, 0.0
        %323 = vst.msk [vmem:[#allocation2 + $0xb8] sm:$0x3] %vm316, 0.0
        %s324 = sshra.s32 %s303, 3
        %s325 = sand.u32 %s303, 7
        %s326 = smul.u32 %s324, 2
        %s327 = smul.addr %s326, 8
        %s328 = scalar_lea.vmem %s259, %s327 [#allocation3]
        %v329 = vld [vmem:[%s328] sm:$0xff]
        %v330 = vld [vmem:[%s328 + $0x8] sm:$0xff]
        %v331 = vld [vmem:[%s328 + $0x20] sm:$0xff]
        %v332 = vld [vmem:[%s328 + $0x28] sm:$0xff]
        %v333 = vld [vmem:[%s328 + $0x40] sm:$0xff]
        %v334 = vld [vmem:[%s328 + $0x48] sm:$0xff]
        %v335 = vld [vmem:[%s328 + $0x60] sm:$0xff]
        %v336 = vld [vmem:[%s328 + $0x68] sm:$0xff]
        %v337 = vmax.f32 %v329, 0.0
        %v338 = vmax.f32 %v330, 0.0
        %v339 = vmax.f32 %v331, 0.0
        %v340 = vmax.f32 %v332, 0.0
        %v341 = vmax.f32 %v333, 0.0
        %v342 = vmax.f32 %v334, 0.0
        %v343 = vmax.f32 %v335, 0.0
        %v344 = vmax.f32 %v336, 0.0
        %v353 = vrot.slane %v337, 7
        %v354 = vrot.slane %v338, 7
        %v355 = vrot.slane %v339, 7
        %v356 = vrot.slane %v340, 7
        %v357 = vrot.slane %v341, 7
        %v358 = vrot.slane %v342, 7
        %v359 = vrot.slane %v343, 7
        %v360 = vrot.slane %v344, 7
        %361 = vrot.lane.b32.xlu0 %v353, 17
        %v362 = vpop.permute.xlu0 %361
        %363 = vrot.lane.b32.xlu0 %v354, 17
        %v364 = vpop.permute.xlu0 %363
        %365 = vrot.lane.b32.xlu0 %v355, 17
        %v366 = vpop.permute.xlu0 %365
        %367 = vrot.lane.b32.xlu0 %v356, 17
        %v368 = vpop.permute.xlu0 %367
        %369 = vrot.lane.b32.xlu0 %v357, 17
        %v370 = vpop.permute.xlu0 %369
        %371 = vrot.lane.b32.xlu0 %v358, 17
        %v372 = vpop.permute.xlu0 %371
        %373 = vrot.lane.b32.xlu0 %v359, 17
        %v374 = vpop.permute.xlu0 %373
        %375 = vrot.lane.b32.xlu0 %v360, 17
        %v376 = vpop.permute.xlu0 %375
        %v377 = vsel %vm304, %v362, %v364
        %v378 = vsel %vm304, %v366, %v368
        %v379 = vsel %vm304, %v370, %v372
        %v380 = vsel %vm304, %v374, %v376
        %vm393 = vcmask 1047689
        %394 = vst.msk [vmem:[#allocation2] sm:$0xfe] %vm393, %v362
        %395 = vst [vmem:[#allocation2 + $0x8] sm:$0xfe] %v377
        %vm396 = vcmask 138241
        %397 = vst.msk [vmem:[#allocation2 + $0x10] sm:$0xfe] %vm396, %v364
        %vm398 = vcmask 1040520
        %399 = vst.msk [vmem:[#allocation2 + $0x18] sm:$0x1] %vm398, %v362
        %400 = vst [vmem:[#allocation2 + $0x20] sm:$0x1] %v377
        %vm401 = vcmask 131072
        %402 = vst.msk [vmem:[#allocation2 + $0x28] sm:$0x1] %vm401, %v364
        %403 = vst.msk [vmem:[#allocation2 + $0x30] sm:$0xfe] %vm393, %v366
        %404 = vst [vmem:[#allocation2 + $0x38] sm:$0xfe] %v378
        %405 = vst.msk [vmem:[#allocation2 + $0x40] sm:$0xfe] %vm396, %v368
        %406 = vst.msk [vmem:[#allocation2 + $0x48] sm:$0x1] %vm398, %v366
        %407 = vst [vmem:[#allocation2 + $0x50] sm:$0x1] %v378
        %408 = vst.msk [vmem:[#allocation2 + $0x58] sm:$0x1] %vm401, %v368
        %409 = vst.msk [vmem:[#allocation2 + $0x60] sm:$0xfe] %vm393, %v370
        %410 = vst [vmem:[#allocation2 + $0x68] sm:$0xfe] %v379
        %411 = vst.msk [vmem:[#allocation2 + $0x70] sm:$0xfe] %vm396, %v372
        %412 = vst.msk [vmem:[#allocation2 + $0x78] sm:$0x1] %vm398, %v370
        %413 = vst [vmem:[#allocation2 + $0x80] sm:$0x1] %v379
        %414 = vst.msk [vmem:[#allocation2 + $0x88] sm:$0x1] %vm401, %v372
        %415 = vst.msk [vmem:[#allocation2 + $0x90] sm:$0xfe] %vm393, %v374
        %416 = vst [vmem:[#allocation2 + $0x98] sm:$0xfe] %v380
        %417 = vst.msk [vmem:[#allocation2 + $0xa0] sm:$0xfe] %vm396, %v376
        %418 = vst.msk [vmem:[#allocation2 + $0xa8] sm:$0x1] %vm398, %v374
        %419 = vst [vmem:[#allocation2 + $0xb0] sm:$0x1] %v380
        %420 = vst.msk [vmem:[#allocation2 + $0xb8] sm:$0x1] %vm401, %v376
        %s421 = ssub.s32 %s303, 1
        %p422 = scmp.gt.s32.totalorder %s421, 0
        %s423 = scalar_select %p422, %s421, 0
        %s424 = sshra.s32 %s423, 3
        %s425 = sand.u32 %s423, 7
        %s426 = sshra.s32 %s423, 3
        %s427 = sand.u32 %s423, 7
        %s428 = smul.u32 %s424, 2
        %s429 = smul.u32 %s428, 8
        %s430 = sadd.s32 %s429, %s427
        %s431 = scalar_lea.vmem %s259, %s430 [#allocation3]
        %v432 = vld [vmem:[%s431] ss:$8 sm:$0x3]
        %s433 = sadd.s32 32, %s430
        %s434 = scalar_lea.vmem %s259, %s433 [#allocation3]
        %v435 = vld [vmem:[%s434] ss:$8 sm:$0x3]
        %s436 = sadd.s32 64, %s430
        %s437 = scalar_lea.vmem %s259, %s436 [#allocation3]
        %v438 = vld [vmem:[%s437] ss:$8 sm:$0x3]
        %s439 = sadd.s32 96, %s430
        %s440 = scalar_lea.vmem %s259, %s439 [#allocation3]
        %v441 = vld [vmem:[%s440] ss:$8 sm:$0x3]
        %p442 = scmp.ge.s32.totalorder %s421, 0
        %v443 = vmax.f32 %v432, 0.0
        %v444 = vmax.f32 %v435, 0.0
        %v445 = vmax.f32 %v438, 0.0
        %v446 = vmax.f32 %v441, 0.0
        %s447 = scalar_select %p442, 1, 0
        %v448 = vstv %s447
        %vm449 = vcmp.eq.s32.totalorder %v448, 1
        %v450 = vsel %vm449, %v443, 0.0
        %v451 = vsel %vm449, %v444, 0.0
        %v452 = vsel %vm449, %v445, 0.0
        %v453 = vsel %vm449, %v446, 0.0
        %458 = vrot.lane.b32.xlu0 %v450, 17
        %v459 = vpop.permute.xlu0 %458
        %460 = vrot.lane.b32.xlu0 %v451, 17
        %v461 = vpop.permute.xlu0 %460
        %462 = vrot.lane.b32.xlu0 %v452, 17
        %v463 = vpop.permute.xlu0 %462
        %464 = vrot.lane.b32.xlu0 %v453, 17
        %v465 = vpop.permute.xlu0 %464
        %v466 = vrot.slane %v459, 7
        %v467 = vrot.slane %v461, 7
        %v468 = vrot.slane %v463, 7
        %v469 = vrot.slane %v465, 7
        %v470 = vsel %vm304, %v466, %v459
        %v471 = vsel %vm304, %v467, %v461
        %v472 = vsel %vm304, %v468, %v463
        %v473 = vsel %vm304, %v469, %v465
        %v478 = vlaneseq
        %vm479 = vcmp.ge.s32.totalorder %v478, 17
        %vm480 = vcmp.lt.s32.totalorder %v478, 273
        %vm481 = vmand %vm479, %vm480
        %482 = vst.msk [vmem:[#allocation2] ss:$8 sm:$0x7] %vm481, %v470
        %483 = vst.msk [vmem:[#allocation2] ss:$8 sm:$0x0] %vm481, %v470
        %s484 = scalar_lea.vmem [#allocation2], 48
        %485 = vst.msk [vmem:[%s484] ss:$8 sm:$0x7] %vm481, %v471
        %486 = vst.msk [vmem:[%s484] ss:$8 sm:$0x0] %vm481, %v471
        %s487 = scalar_lea.vmem [#allocation2], 96
        %488 = vst.msk [vmem:[%s487] ss:$8 sm:$0x7] %vm481, %v472
        %489 = vst.msk [vmem:[%s487] ss:$8 sm:$0x0] %vm481, %v472
        %s490 = scalar_lea.vmem [#allocation2], 144
        %491 = vst.msk [vmem:[%s490] ss:$8 sm:$0x7] %vm481, %v473
        %492 = vst.msk [vmem:[%s490] ss:$8 sm:$0x0] %vm481, %v473
        %s493 = sadd.s32 %s303, 8
        %p494 = scmp.lt.s32.totalorder %s493, 15
        %s495 = scalar_select %p494, %s493, 15
        %s496 = sshra.s32 %s495, 3
        %s497 = sand.u32 %s495, 7
        %s498 = sshra.s32 %s495, 3
        %s499 = sand.u32 %s495, 7
        %s500 = smul.u32 %s496, 2
        %s501 = smul.u32 %s500, 8
        %s502 = sadd.s32 %s501, %s499
        %s503 = scalar_lea.vmem %s259, %s502 [#allocation3]
        %v504 = vld [vmem:[%s503] ss:$8 sm:$0x3]
        %s505 = sadd.s32 32, %s502
        %s506 = scalar_lea.vmem %s259, %s505 [#allocation3]
        %v507 = vld [vmem:[%s506] ss:$8 sm:$0x3]
        %s508 = sadd.s32 64, %s502
        %s509 = scalar_lea.vmem %s259, %s508 [#allocation3]
        %v510 = vld [vmem:[%s509] ss:$8 sm:$0x3]
        %s511 = sadd.s32 96, %s502
        %s512 = scalar_lea.vmem %s259, %s511 [#allocation3]
        %v513 = vld [vmem:[%s512] ss:$8 sm:$0x3]
        %p514 = scmp.lt.s32.totalorder %s493, 16
        %v515 = vmax.f32 %v504, 0.0
        %v516 = vmax.f32 %v507, 0.0
        %v517 = vmax.f32 %v510, 0.0
        %v518 = vmax.f32 %v513, 0.0
        %s519 = scalar_select %p514, 1, 0
        %v520 = vstv %s519
        %vm521 = vcmp.eq.s32.totalorder %v520, 1
        %v522 = vsel %vm521, %v515, 0.0
        %v523 = vsel %vm521, %v516, 0.0
        %v524 = vsel %vm521, %v517, 0.0
        %v525 = vsel %vm521, %v518, 0.0
        %530 = vrot.lane.b32.xlu0 %v522, 17
        %v531 = vpop.permute.xlu0 %530
        %532 = vrot.lane.b32.xlu0 %v523, 17
        %v533 = vpop.permute.xlu0 %532
        %534 = vrot.lane.b32.xlu0 %v524, 17
        %v535 = vpop.permute.xlu0 %534
        %536 = vrot.lane.b32.xlu0 %v525, 17
        %v537 = vpop.permute.xlu0 %536
        %v538 = vrot.slane %v531, 7
        %v539 = vrot.slane %v533, 7
        %v540 = vrot.slane %v535, 7
        %v541 = vrot.slane %v537, 7
        %v542 = vsel %vm304, %v538, %v531
        %v543 = vsel %vm304, %v539, %v533
        %v544 = vsel %vm304, %v540, %v535
        %v545 = vsel %vm304, %v541, %v537
        %s550 = scalar_lea.vmem [#allocation2], 25
        %551 = vst.msk [vmem:[%s550] ss:$8 sm:$0x7] %vm481, %v542
        %552 = vst.msk [vmem:[%s550] ss:$8 sm:$0x0] %vm481, %v542
        %s553 = scalar_lea.vmem [#allocation2], 73
        %554 = vst.msk [vmem:[%s553] ss:$8 sm:$0x7] %vm481, %v543
        %555 = vst.msk [vmem:[%s553] ss:$8 sm:$0x0] %vm481, %v543
        %s556 = scalar_lea.vmem [#allocation2], 121
        %557 = vst.msk [vmem:[%s556] ss:$8 sm:$0x7] %vm481, %v544
        %558 = vst.msk [vmem:[%s556] ss:$8 sm:$0x0] %vm481, %v544
        %s559 = scalar_lea.vmem [#allocation2], 169
        %560 = vst.msk [vmem:[%s559] ss:$8 sm:$0x7] %vm481, %v545
        %561 = vst.msk [vmem:[%s559] ss:$8 sm:$0x0] %vm481, %v545
        %v562 = vld [vmem:[#allocation7] ss:$2 sm:$0x3]
        %v564 = vlaneseq
        %v565 = vshrl.u32 %v564, 7
        %v566 = vsub.s32 0, %v565
        %v567 = vrot.slane %v562, %v566
        %v568 = vlaneseq
        %v569 = vshrl.u32 %v568, 7
        %v570 = vsub.s32 1, %v569
        %v571 = vrot.slane %v562, %v570
        %s574 = scalar_lea.vmem [#allocation7], 1
        %v575 = vld [vmem:[%s574] ss:$2 sm:$0x3]
        %v577 = vlaneseq
        %v578 = vshrl.u32 %v577, 7
        %v579 = vsub.s32 0, %v578
        %v580 = vrot.slane %v575, %v579
        %v581 = vlaneseq
        %v582 = vshrl.u32 %v581, 7
        %v583 = vsub.s32 1, %v582
        %v584 = vrot.slane %v575, %v583
        %s587 = sld [smem:[#allocation12]]
        %v588 = vstv %s587
        %s589 = sld [smem:[#allocation12 + $0x1]]
        %v590 = vstv %s589
        %s591 = sld [smem:[#allocation12 + $0x2]]
        %v592 = vstv %s591
        %s593 = sld [smem:[#allocation12 + $0x3]]
        %v594 = vstv %s593
        %s595 = sld [smem:[#allocation12 + $0x4]]
        %v596 = vstv %s595
        %s597 = sld [smem:[#allocation12 + $0x5]]
        %v598 = vstv %s597
        %s599 = sld [smem:[#allocation12 + $0x6]]
        %v600 = vstv %s599
        %s601 = sld [smem:[#allocation12 + $0x7]]
        %v602 = vstv %s601
        %v603 = vld [vmem:[#allocation2] sm:$0xff]
        %v604 = vld [vmem:[#allocation2 + $0x8] sm:$0xff]
        %s605 = sld [smem:[#allocation9]]
        %v606 = vstv %s605
        %v607 = vmul.f32 %v603, %v606
        %v608 = vmul.f32 %v604, %v606
        %v609 = vld [vmem:[#allocation2] sm:$0xff]
        %v610 = vld [vmem:[#allocation2 + $0x8] sm:$0xff]
        %v611 = vld [vmem:[#allocation2 + $0x10] sm:$0xff]
        %s612 = sld [smem:[#allocation9 + $0x1]]
        %v613 = vstv %s612
        %v614 = vmul.f32 %v609, %v613
        %v615 = vmul.f32 %v610, %v613
        %v616 = vmul.f32 %v611, %v613
        %s617 = sld [smem:[#allocation9 + $0x2]]
        %v618 = vstv %s617
        %v619 = vmul.f32 %v609, %v618
        %v620 = vmul.f32 %v610, %v618
        %v621 = vmul.f32 %v611, %v618
        %s622 = sld [smem:[#allocation9 + $0x3]]
        %v623 = vstv %s622
        %v624 = vmul.f32 %v609, %v623
        %v625 = vmul.f32 %v610, %v623
        %v626 = vmul.f32 %v611, %v623
        %s627 = sld [smem:[#allocation9 + $0x4]]
        %v628 = vstv %s627
        %v629 = vmul.f32 %v609, %v628
        %v630 = vmul.f32 %v610, %v628
        %v631 = vmul.f32 %v611, %v628
        %s632 = sld [smem:[#allocation9 + $0x5]]
        %v633 = vstv %s632
        %v634 = vmul.f32 %v609, %v633
        %v635 = vmul.f32 %v610, %v633
        %v636 = vmul.f32 %v611, %v633
        %640 = vrot.lane.b32.xlu0 %v624, 112
        %v641 = vpop.permute.xlu0 %640
        %642 = vrot.lane.b32.xlu0 %v625, 112
        %v643 = vpop.permute.xlu0 %642
        %644 = vrot.lane.b32.xlu0 %v626, 112
        %v645 = vpop.permute.xlu0 %644
        %vm646 = vcmask 916480
        %v647 = vsel %vm646, %v641, %v643
        %v648 = vsel %vm646, %v643, %v645
        %v651 = vadd.f32 %v607, %v647
        %v652 = vadd.f32 %v608, %v648
        %656 = vrot.lane.b32.xlu0 %v629, 112
        %v657 = vpop.permute.xlu0 %656
        %658 = vrot.lane.b32.xlu0 %v630, 112
        %v659 = vpop.permute.xlu0 %658
        %660 = vrot.lane.b32.xlu0 %v631, 112
        %v661 = vpop.permute.xlu0 %660
        %v662 = vsel %vm646, %v657, %v659
        %v663 = vsel %vm646, %v659, %v661
        %v667 = vadd.f32 %v614, %v662
        %v668 = vadd.f32 %v615, %v663
        %v669 = vadd.f32 %v616, %v661
        %673 = vrot.lane.b32.xlu0 %v634, 112
        %v674 = vpop.permute.xlu0 %673
        %675 = vrot.lane.b32.xlu0 %v635, 112
        %v676 = vpop.permute.xlu0 %675
        %677 = vrot.lane.b32.xlu0 %v636, 112
        %v678 = vpop.permute.xlu0 %677
        %v679 = vsel %vm646, %v674, %v676
        %v680 = vsel %vm646, %v676, %v678
        %v684 = vadd.f32 %v619, %v679
        %v685 = vadd.f32 %v620, %v680
        %v686 = vadd.f32 %v621, %v678
        %s687 = sld [smem:[#allocation9 + $0x6]]
        %v688 = vstv %s687
        %v689 = vmul.f32 %v609, %v688
        %v690 = vmul.f32 %v610, %v688
        %v691 = vmul.f32 %v611, %v688
        %s692 = sld [smem:[#allocation9 + $0x7]]
        %v693 = vstv %s692
        %v694 = vmul.f32 %v609, %v693
        %v695 = vmul.f32 %v610, %v693
        %v696 = vmul.f32 %v611, %v693
        %s697 = sld [smem:[#allocation9 + $0x8]]
        %v698 = vstv %s697
        %v699 = vmul.f32 %v609, %v698
        %v700 = vmul.f32 %v610, %v698
        %v701 = vmul.f32 %v611, %v698
        %705 = vrot.lane.b32.xlu0 %v689, 96
        %v706 = vpop.permute.xlu0 %705
        %707 = vrot.lane.b32.xlu0 %v690, 96
        %v708 = vpop.permute.xlu0 %707
        %709 = vrot.lane.b32.xlu0 %v691, 96
        %v710 = vpop.permute.xlu0 %709
        %vm711 = vcmask 785408
        %v712 = vsel %vm711, %v706, %v708
        %v713 = vsel %vm711, %v708, %v710
        %v716 = vadd.f32 %v651, %v712
        %v717 = vadd.f32 %v652, %v713
        %721 = vrot.lane.b32.xlu0 %v694, 96
        %v722 = vpop.permute.xlu0 %721
        %723 = vrot.lane.b32.xlu0 %v695, 96
        %v724 = vpop.permute.xlu0 %723
        %725 = vrot.lane.b32.xlu0 %v696, 96
        %v726 = vpop.permute.xlu0 %725
        %v727 = vsel %vm711, %v722, %v724
        %v728 = vsel %vm711, %v724, %v726
        %v732 = vadd.f32 %v667, %v727
        %v733 = vadd.f32 %v668, %v728
        %v734 = vadd.f32 %v669, %v726
        %738 = vrot.lane.b32.xlu0 %v699, 96
        %v739 = vpop.permute.xlu0 %738
        %740 = vrot.lane.b32.xlu0 %v700, 96
        %v741 = vpop.permute.xlu0 %740
        %742 = vrot.lane.b32.xlu0 %v701, 96
        %v743 = vpop.permute.xlu0 %742
        %v744 = vsel %vm711, %v739, %v741
        %v745 = vsel %vm711, %v741, %v743
        %v749 = vadd.f32 %v684, %v744
        %v750 = vadd.f32 %v685, %v745
        %v751 = vadd.f32 %v686, %v743
        %v752 = vld [vmem:[#allocation2] sm:$0xfe]
        %v753 = vld [vmem:[#allocation2 + $0x8] sm:$0xfe]
        %v754 = vld [vmem:[#allocation2 + $0x18] sm:$0x1]
        %v755 = vld [vmem:[#allocation2 + $0x20] sm:$0x1]
        %s756 = sld [smem:[#allocation9 + $0x9]]
        %v757 = vstv %s756
        %v758 = vmul.f32 %v752, %v757
        %v759 = vmul.f32 %v753, %v757
        %v760 = vmul.f32 %v754, %v757
        %v761 = vmul.f32 %v755, %v757
        %v762 = vld [vmem:[#allocation2] sm:$0xfe]
        %v763 = vld [vmem:[#allocation2 + $0x8] sm:$0xfe]
        %v764 = vld [vmem:[#allocation2 + $0x10] sm:$0xfe]
        %v765 = vld [vmem:[#allocation2 + $0x18] sm:$0x1]
        %v766 = vld [vmem:[#allocation2 + $0x20] sm:$0x1]
        %v767 = vld [vmem:[#allocation2 + $0x28] sm:$0x1]
        %s768 = sld [smem:[#allocation9 + $0xa]]
        %v769 = vstv %s768
        %v770 = vmul.f32 %v762, %v769
        %v771 = vmul.f32 %v763, %v769
        %v772 = vmul.f32 %v764, %v769
        %v773 = vmul.f32 %v765, %v769
        %v774 = vmul.f32 %v766, %v769
        %v775 = vmul.f32 %v767, %v769
        %s776 = sld [smem:[#allocation9 + $0xb]]
        %v777 = vstv %s776
        %v778 = vmul.f32 %v762, %v777
        %v779 = vmul.f32 %v763, %v777
        %v780 = vmul.f32 %v764, %v777
        %v781 = vmul.f32 %v765, %v777
        %v782 = vmul.f32 %v766, %v777
        %v783 = vmul.f32 %v767, %v777
        %vm788 = vcmask 1046528
        %v789 = vrot.slane %v758, 1
        %v790 = vrot.slane %v760, 1
        %v791 = vsel %vm788, %v789, %v790
        %v792 = vrot.slane %v759, 1
        %v793 = vrot.slane %v761, 1
        %v794 = vsel %vm788, %v792, %v793
        %v797 = vadd.f32 %v716, %v791
        %v798 = vadd.f32 %v717, %v794
        %v805 = vrot.slane %v770, 1
        %v806 = vrot.slane %v773, 1
        %v807 = vsel %vm788, %v805, %v806
        %v808 = vrot.slane %v771, 1
        %v809 = vrot.slane %v774, 1
        %v810 = vsel %vm788, %v808, %v809
        %v811 = vrot.slane %v772, 1
        %v812 = vrot.slane %v775, 1
        %v813 = vsel %vm788, %v811, %v812
        %v817 = vadd.f32 %v732, %v807
        %v818 = vadd.f32 %v733, %v810
        %v819 = vadd.f32 %v734, %v813
        %v826 = vrot.slane %v778, 1
        %v827 = vrot.slane %v781, 1
        %v828 = vsel %vm788, %v826, %v827
        %v829 = vrot.slane %v779, 1
        %v830 = vrot.slane %v782, 1
        %v831 = vsel %vm788, %v829, %v830
        %v832 = vrot.slane %v780, 1
        %v833 = vrot.slane %v783, 1
        %v834 = vsel %vm788, %v832, %v833
        %v838 = vadd.f32 %v749, %v828
        %v839 = vadd.f32 %v750, %v831
        %v840 = vadd.f32 %v751, %v834
        %s841 = sld [smem:[#allocation9 + $0xc]]
        %v842 = vstv %s841
        %v843 = vmul.f32 %v762, %v842
        %v844 = vmul.f32 %v763, %v842
        %v845 = vmul.f32 %v764, %v842
        %v846 = vmul.f32 %v765, %v842
        %v847 = vmul.f32 %v766, %v842
        %v848 = vmul.f32 %v767, %v842
        %s849 = sld [smem:[#allocation9 + $0xd]]
        %v850 = vstv %s849
        %v851 = vmul.f32 %v762, %v850
        %v852 = vmul.f32 %v763, %v850
        %v853 = vmul.f32 %v764, %v850
        %v854 = vmul.f32 %v765, %v850
        %v855 = vmul.f32 %v766, %v850
        %v856 = vmul.f32 %v767, %v850
        %s857 = sld [smem:[#allocation9 + $0xe]]
        %v858 = vstv %s857
        %v859 = vmul.f32 %v762, %v858
        %v860 = vmul.f32 %v763, %v858
        %v861 = vmul.f32 %v764, %v858
        %v862 = vmul.f32 %v765, %v858
        %v863 = vmul.f32 %v766, %v858
        %v864 = vmul.f32 %v767, %v858
        %v871 = vrot.slane %v843, 1
        %v872 = vrot.slane %v846, 1
        %v873 = vsel %vm788, %v871, %v872
        %v874 = vrot.slane %v844, 1
        %v875 = vrot.slane %v847, 1
        %v876 = vsel %vm788, %v874, %v875
        %v877 = vrot.slane %v845, 1
        %v878 = vrot.slane %v848, 1
        %v879 = vsel %vm788, %v877, %v878
        %880 = vrot.lane.b32.xlu0 %v873, 112
        %v881 = vpop.permute.xlu0 %880
        %882 = vrot.lane.b32.xlu0 %v876, 112
        %v883 = vpop.permute.xlu0 %882
        %884 = vrot.lane.b32.xlu0 %v879, 112
        %v885 = vpop.permute.xlu0 %884
        %v886 = vsel %vm646, %v881, %v883
        %v887 = vsel %vm646, %v883, %v885
        %v890 = vadd.f32 %v797, %v886
        %v891 = vadd.f32 %v798, %v887
        %v898 = vrot.slane %v851, 1
        %v899 = vrot.slane %v854, 1
        %v900 = vsel %vm788, %v898, %v899
        %v901 = vrot.slane %v852, 1
        %v902 = vrot.slane %v855, 1
        %v903 = vsel %vm788, %v901, %v902
        %v904 = vrot.slane %v853, 1
        %v905 = vrot.slane %v856, 1
        %v906 = vsel %vm788, %v904, %v905
        %907 = vrot.lane.b32.xlu0 %v900, 112
        %v908 = vpop.permute.xlu0 %907
        %909 = vrot.lane.b32.xlu0 %v903, 112
        %v910 = vpop.permute.xlu0 %909
        %911 = vrot.lane.b32.xlu0 %v906, 112
        %v912 = vpop.permute.xlu0 %911
        %v913 = vsel %vm646, %v908, %v910
        %v914 = vsel %vm646, %v910, %v912
        %v918 = vadd.f32 %v817, %v913
        %v919 = vadd.f32 %v818, %v914
        %v920 = vadd.f32 %v819, %v912
        %v927 = vrot.slane %v859, 1
        %v928 = vrot.slane %v862, 1
        %v929 = vsel %vm788, %v927, %v928
        %v930 = vrot.slane %v860, 1
        %v931 = vrot.slane %v863, 1
        %v932 = vsel %vm788, %v930, %v931
        %v933 = vrot.slane %v861, 1
        %v934 = vrot.slane %v864, 1
        %v935 = vsel %vm788, %v933, %v934
        %936 = vrot.lane.b32.xlu0 %v929, 112
        %v937 = vpop.permute.xlu0 %936
        %938 = vrot.lane.b32.xlu0 %v932, 112
        %v939 = vpop.permute.xlu0 %938
        %940 = vrot.lane.b32.xlu0 %v935, 112
        %v941 = vpop.permute.xlu0 %940
        %v942 = vsel %vm646, %v937, %v939
        %v943 = vsel %vm646, %v939, %v941
        %v947 = vadd.f32 %v838, %v942
        %v948 = vadd.f32 %v839, %v943
        %v949 = vadd.f32 %v840, %v941
        %s950 = sld [smem:[#allocation9 + $0xf]]
        %v951 = vstv %s950
        %v952 = vmul.f32 %v762, %v951
        %v953 = vmul.f32 %v763, %v951
        %v954 = vmul.f32 %v764, %v951
        %v955 = vmul.f32 %v765, %v951
        %v956 = vmul.f32 %v766, %v951
        %v957 = vmul.f32 %v767, %v951
        %s958 = sld [smem:[#allocation9 + $0x10]]
        %v959 = vstv %s958
        %v960 = vmul.f32 %v762, %v959
        %v961 = vmul.f32 %v763, %v959
        %v962 = vmul.f32 %v764, %v959
        %v963 = vmul.f32 %v765, %v959
        %v964 = vmul.f32 %v766, %v959
        %v965 = vmul.f32 %v767, %v959
        %s966 = sld [smem:[#allocation9 + $0x11]]
        %v967 = vstv %s966
        %v968 = vmul.f32 %v762, %v967
        %v969 = vmul.f32 %v763, %v967
        %v970 = vmul.f32 %v764, %v967
        %v971 = vmul.f32 %v765, %v967
        %v972 = vmul.f32 %v766, %v967
        %v973 = vmul.f32 %v767, %v967
        %v980 = vrot.slane %v952, 1
        %v981 = vrot.slane %v955, 1
        %v982 = vsel %vm788, %v980, %v981
        %v983 = vrot.slane %v953, 1
        %v984 = vrot.slane %v956, 1
        %v985 = vsel %vm788, %v983, %v984
        %v986 = vrot.slane %v954, 1
        %v987 = vrot.slane %v957, 1
        %v988 = vsel %vm788, %v986, %v987
        %989 = vrot.lane.b32.xlu0 %v982, 96
        %v990 = vpop.permute.xlu0 %989
        %991 = vrot.lane.b32.xlu0 %v985, 96
        %v992 = vpop.permute.xlu0 %991
        %993 = vrot.lane.b32.xlu0 %v988, 96
        %v994 = vpop.permute.xlu0 %993
        %v995 = vsel %vm711, %v990, %v992
        %v996 = vsel %vm711, %v992, %v994
        %v999 = vadd.f32 %v890, %v995
        %v1000 = vadd.f32 %v891, %v996
        %v1007 = vrot.slane %v960, 1
        %v1008 = vrot.slane %v963, 1
        %v1009 = vsel %vm788, %v1007, %v1008
        %v1010 = vrot.slane %v961, 1
        %v1011 = vrot.slane %v964, 1
        %v1012 = vsel %vm788, %v1010, %v1011
        %v1013 = vrot.slane %v962, 1
        %v1014 = vrot.slane %v965, 1
        %v1015 = vsel %vm788, %v1013, %v1014
        %1016 = vrot.lane.b32.xlu0 %v1009, 96
        %v1017 = vpop.permute.xlu0 %1016
        %1018 = vrot.lane.b32.xlu0 %v1012, 96
        %v1019 = vpop.permute.xlu0 %1018
        %1020 = vrot.lane.b32.xlu0 %v1015, 96
        %v1021 = vpop.permute.xlu0 %1020
        %v1022 = vsel %vm711, %v1017, %v1019
        %v1023 = vsel %vm711, %v1019, %v1021
        %v1027 = vadd.f32 %v918, %v1022
        %v1028 = vadd.f32 %v919, %v1023
        %v1029 = vadd.f32 %v920, %v1021
        %v1036 = vrot.slane %v968, 1
        %v1037 = vrot.slane %v971, 1
        %v1038 = vsel %vm788, %v1036, %v1037
        %v1039 = vrot.slane %v969, 1
        %v1040 = vrot.slane %v972, 1
        %v1041 = vsel %vm788, %v1039, %v1040
        %v1042 = vrot.slane %v970, 1
        %v1043 = vrot.slane %v973, 1
        %v1044 = vsel %vm788, %v1042, %v1043
        %1045 = vrot.lane.b32.xlu0 %v1038, 96
        %v1046 = vpop.permute.xlu0 %1045
        %1047 = vrot.lane.b32.xlu0 %v1041, 96
        %v1048 = vpop.permute.xlu0 %1047
        %1049 = vrot.lane.b32.xlu0 %v1044, 96
        %v1050 = vpop.permute.xlu0 %1049
        %v1051 = vsel %vm711, %v1046, %v1048
        %v1052 = vsel %vm711, %v1048, %v1050
        %v1056 = vadd.f32 %v947, %v1051
        %v1057 = vadd.f32 %v948, %v1052
        %v1058 = vadd.f32 %v949, %v1050
        %v1059 = vld [vmem:[#allocation2] sm:$0xfc]
        %v1060 = vld [vmem:[#allocation2 + $0x8] sm:$0xfc]
        %v1061 = vld [vmem:[#allocation2 + $0x18] sm:$0x3]
        %v1062 = vld [vmem:[#allocation2 + $0x20] sm:$0x3]
        %s1063 = sld [smem:[#allocation9 + $0x12]]
        %v1064 = vstv %s1063
        %v1065 = vmul.f32 %v1059, %v1064
        %v1066 = vmul.f32 %v1060, %v1064
        %v1067 = vmul.f32 %v1061, %v1064
        %v1068 = vmul.f32 %v1062, %v1064
        %v1069 = vld [vmem:[#allocation2] sm:$0xfc]
        %v1070 = vld [vmem:[#allocation2 + $0x8] sm:$0xfc]
        %v1071 = vld [vmem:[#allocation2 + $0x10] sm:$0xfc]
        %v1072 = vld [vmem:[#allocation2 + $0x18] sm:$0x3]
        %v1073 = vld [vmem:[#allocation2 + $0x20] sm:$0x3]
        %v1074 = vld [vmem:[#allocation2 + $0x28] sm:$0x3]
        %s1075 = sld [smem:[#allocation9 + $0x13]]
        %v1076 = vstv %s1075
        %v1077 = vmul.f32 %v1069, %v1076
        %v1078 = vmul.f32 %v1070, %v1076
        %v1079 = vmul.f32 %v1071, %v1076
        %v1080 = vmul.f32 %v1072, %v1076
        %v1081 = vmul.f32 %v1073, %v1076
        %v1082 = vmul.f32 %v1074, %v1076
        %s1083 = sld [smem:[#allocation9 + $0x14]]
        %v1084 = vstv %s1083
        %v1085 = vmul.f32 %v1069, %v1084
        %v1086 = vmul.f32 %v1070, %v1084
        %v1087 = vmul.f32 %v1071, %v1084
        %v1088 = vmul.f32 %v1072, %v1084
        %v1089 = vmul.f32 %v1073, %v1084
        %v1090 = vmul.f32 %v1074, %v1084
        %vm1095 = vcmask 1045504
        %v1096 = vrot.slane %v1065, 2
        %v1097 = vrot.slane %v1067, 2
        %v1098 = vsel %vm1095, %v1096, %v1097
        %v1099 = vrot.slane %v1066, 2
        %v1100 = vrot.slane %v1068, 2
        %v1101 = vsel %vm1095, %v1099, %v1100
        %v1104 = vadd.f32 %v999, %v1098
        %v1105 = vadd.f32 %v1000, %v1101
        %v1112 = vrot.slane %v1077, 2
        %v1113 = vrot.slane %v1080, 2
        %v1114 = vsel %vm1095, %v1112, %v1113
        %v1115 = vrot.slane %v1078, 2
        %v1116 = vrot.slane %v1081, 2
        %v1117 = vsel %vm1095, %v1115, %v1116
        %v1118 = vrot.slane %v1079, 2
        %v1119 = vrot.slane %v1082, 2
        %v1120 = vsel %vm1095, %v1118, %v1119
        %v1124 = vadd.f32 %v1027, %v1114
        %v1125 = vadd.f32 %v1028, %v1117
        %v1126 = vadd.f32 %v1029, %v1120
        %v1133 = vrot.slane %v1085, 2
        %v1134 = vrot.slane %v1088, 2
        %v1135 = vsel %vm1095, %v1133, %v1134
        %v1136 = vrot.slane %v1086, 2
        %v1137 = vrot.slane %v1089, 2
        %v1138 = vsel %vm1095, %v1136, %v1137
        %v1139 = vrot.slane %v1087, 2
        %v1140 = vrot.slane %v1090, 2
        %v1141 = vsel %vm1095, %v1139, %v1140
        %v1145 = vadd.f32 %v1056, %v1135
        %v1146 = vadd.f32 %v1057, %v1138
        %v1147 = vadd.f32 %v1058, %v1141
        %s1148 = sld [smem:[#allocation9 + $0x15]]
        %v1149 = vstv %s1148
        %v1150 = vmul.f32 %v1069, %v1149
        %v1151 = vmul.f32 %v1070, %v1149
        %v1152 = vmul.f32 %v1071, %v1149
        %v1153 = vmul.f32 %v1072, %v1149
        %v1154 = vmul.f32 %v1073, %v1149
        %v1155 = vmul.f32 %v1074, %v1149
        %s1156 = sld [smem:[#allocation9 + $0x16]]
        %v1157 = vstv %s1156
        %v1158 = vmul.f32 %v1069, %v1157
        %v1159 = vmul.f32 %v1070, %v1157
        %v1160 = vmul.f32 %v1071, %v1157
        %v1161 = vmul.f32 %v1072, %v1157
        %v1162 = vmul.f32 %v1073, %v1157
        %v1163 = vmul.f32 %v1074, %v1157
        %s1164 = sld [smem:[#allocation9 + $0x17]]
        %v1165 = vstv %s1164
        %v1166 = vmul.f32 %v1069, %v1165
        %v1167 = vmul.f32 %v1070, %v1165
        %v1168 = vmul.f32 %v1071, %v1165
        %v1169 = vmul.f32 %v1072, %v1165
        %v1170 = vmul.f32 %v1073, %v1165
        %v1171 = vmul.f32 %v1074, %v1165
        %v1178 = vrot.slane %v1150, 2
        %v1179 = vrot.slane %v1153, 2
        %v1180 = vsel %vm1095, %v1178, %v1179
        %v1181 = vrot.slane %v1151, 2
        %v1182 = vrot.slane %v1154, 2
        %v1183 = vsel %vm1095, %v1181, %v1182
        %v1184 = vrot.slane %v1152, 2
        %v1185 = vrot.slane %v1155, 2
        %v1186 = vsel %vm1095, %v1184, %v1185
        %1187 = vrot.lane.b32.xlu0 %v1180, 112
        %v1188 = vpop.permute.xlu0 %1187
        %1189 = vrot.lane.b32.xlu0 %v1183, 112
        %v1190 = vpop.permute.xlu0 %1189
        %1191 = vrot.lane.b32.xlu0 %v1186, 112
        %v1192 = vpop.permute.xlu0 %1191
        %v1193 = vsel %vm646, %v1188, %v1190
        %v1194 = vsel %vm646, %v1190, %v1192
        %v1197 = vadd.f32 %v1104, %v1193
        %v1198 = vadd.f32 %v1105, %v1194
        %v1205 = vrot.slane %v1158, 2
        %v1206 = vrot.slane %v1161, 2
        %v1207 = vsel %vm1095, %v1205, %v1206
        %v1208 = vrot.slane %v1159, 2
        %v1209 = vrot.slane %v1162, 2
        %v1210 = vsel %vm1095, %v1208, %v1209
        %v1211 = vrot.slane %v1160, 2
        %v1212 = vrot.slane %v1163, 2
        %v1213 = vsel %vm1095, %v1211, %v1212
        %1214 = vrot.lane.b32.xlu0 %v1207, 112
        %v1215 = vpop.permute.xlu0 %1214
        %1216 = vrot.lane.b32.xlu0 %v1210, 112
        %v1217 = vpop.permute.xlu0 %1216
        %1218 = vrot.lane.b32.xlu0 %v1213, 112
        %v1219 = vpop.permute.xlu0 %1218
        %v1220 = vsel %vm646, %v1215, %v1217
        %v1221 = vsel %vm646, %v1217, %v1219
        %v1225 = vadd.f32 %v1124, %v1220
        %v1226 = vadd.f32 %v1125, %v1221
        %v1227 = vadd.f32 %v1126, %v1219
        %v1234 = vrot.slane %v1166, 2
        %v1235 = vrot.slane %v1169, 2
        %v1236 = vsel %vm1095, %v1234, %v1235
        %v1237 = vrot.slane %v1167, 2
        %v1238 = vrot.slane %v1170, 2
        %v1239 = vsel %vm1095, %v1237, %v1238
        %v1240 = vrot.slane %v1168, 2
        %v1241 = vrot.slane %v1171, 2
        %v1242 = vsel %vm1095, %v1240, %v1241
        %1243 = vrot.lane.b32.xlu0 %v1236, 112
        %v1244 = vpop.permute.xlu0 %1243
        %1245 = vrot.lane.b32.xlu0 %v1239, 112
        %v1246 = vpop.permute.xlu0 %1245
        %1247 = vrot.lane.b32.xlu0 %v1242, 112
        %v1248 = vpop.permute.xlu0 %1247
        %v1249 = vsel %vm646, %v1244, %v1246
        %v1250 = vsel %vm646, %v1246, %v1248
        %v1254 = vadd.f32 %v1145, %v1249
        %v1255 = vadd.f32 %v1146, %v1250
        %v1256 = vadd.f32 %v1147, %v1248
        %s1257 = sld [smem:[#allocation9 + $0x18]]
        %v1258 = vstv %s1257
        %v1259 = vmul.f32 %v1069, %v1258
        %v1260 = vmul.f32 %v1070, %v1258
        %v1261 = vmul.f32 %v1071, %v1258
        %v1262 = vmul.f32 %v1072, %v1258
        %v1263 = vmul.f32 %v1073, %v1258
        %v1264 = vmul.f32 %v1074, %v1258
        %s1265 = sld [smem:[#allocation9 + $0x19]]
        %v1266 = vstv %s1265
        %v1267 = vmul.f32 %v1069, %v1266
        %v1268 = vmul.f32 %v1070, %v1266
        %v1269 = vmul.f32 %v1071, %v1266
        %v1270 = vmul.f32 %v1072, %v1266
        %v1271 = vmul.f32 %v1073, %v1266
        %v1272 = vmul.f32 %v1074, %v1266
        %s1273 = sld [smem:[#allocation9 + $0x1a]]
        %v1274 = vstv %s1273
        %v1275 = vmul.f32 %v1069, %v1274
        %v1276 = vmul.f32 %v1070, %v1274
        %v1277 = vmul.f32 %v1071, %v1274
        %v1278 = vmul.f32 %v1072, %v1274
        %v1279 = vmul.f32 %v1073, %v1274
        %v1280 = vmul.f32 %v1074, %v1274
        %v1287 = vrot.slane %v1259, 2
        %v1288 = vrot.slane %v1262, 2
        %v1289 = vsel %vm1095, %v1287, %v1288
        %v1290 = vrot.slane %v1260, 2
        %v1291 = vrot.slane %v1263, 2
        %v1292 = vsel %vm1095, %v1290, %v1291
        %v1293 = vrot.slane %v1261, 2
        %v1294 = vrot.slane %v1264, 2
        %v1295 = vsel %vm1095, %v1293, %v1294
        %1296 = vrot.lane.b32.xlu0 %v1289, 96
        %v1297 = vpop.permute.xlu0 %1296
        %1298 = vrot.lane.b32.xlu0 %v1292, 96
        %v1299 = vpop.permute.xlu0 %1298
        %1300 = vrot.lane.b32.xlu0 %v1295, 96
        %v1301 = vpop.permute.xlu0 %1300
        %v1302 = vsel %vm711, %v1297, %v1299
        %v1303 = vsel %vm711, %v1299, %v1301
        %v1306 = vadd.f32 %v1197, %v1302
        %v1307 = vadd.f32 %v1198, %v1303
        %v1314 = vrot.slane %v1267, 2
        %v1315 = vrot.slane %v1270, 2
        %v1316 = vsel %vm1095, %v1314, %v1315
        %v1317 = vrot.slane %v1268, 2
        %v1318 = vrot.slane %v1271, 2
        %v1319 = vsel %vm1095, %v1317, %v1318
        %v1320 = vrot.slane %v1269, 2
        %v1321 = vrot.slane %v1272, 2
        %v1322 = vsel %vm1095, %v1320, %v1321
        %1323 = vrot.lane.b32.xlu0 %v1316, 96
        %v1324 = vpop.permute.xlu0 %1323
        %1325 = vrot.lane.b32.xlu0 %v1319, 96
        %v1326 = vpop.permute.xlu0 %1325
        %1327 = vrot.lane.b32.xlu0 %v1322, 96
        %v1328 = vpop.permute.xlu0 %1327
        %v1329 = vsel %vm711, %v1324, %v1326
        %v1330 = vsel %vm711, %v1326, %v1328
        %v1334 = vadd.f32 %v1225, %v1329
        %v1335 = vadd.f32 %v1226, %v1330
        %v1336 = vadd.f32 %v1227, %v1328
        %v1343 = vrot.slane %v1275, 2
        %v1344 = vrot.slane %v1278, 2
        %v1345 = vsel %vm1095, %v1343, %v1344
        %v1346 = vrot.slane %v1276, 2
        %v1347 = vrot.slane %v1279, 2
        %v1348 = vsel %vm1095, %v1346, %v1347
        %v1349 = vrot.slane %v1277, 2
        %v1350 = vrot.slane %v1280, 2
        %v1351 = vsel %vm1095, %v1349, %v1350
        %1352 = vrot.lane.b32.xlu0 %v1345, 96
        %v1353 = vpop.permute.xlu0 %1352
        %1354 = vrot.lane.b32.xlu0 %v1348, 96
        %v1355 = vpop.permute.xlu0 %1354
        %1356 = vrot.lane.b32.xlu0 %v1351, 96
        %v1357 = vpop.permute.xlu0 %1356
        %v1358 = vsel %vm711, %v1353, %v1355
        %v1359 = vsel %vm711, %v1355, %v1357
        %v1363 = vadd.f32 %v1254, %v1358
        %v1364 = vadd.f32 %v1255, %v1359
        %v1365 = vadd.f32 %v1256, %v1357
        %v1366 = vmul.f32 %v567, %v1306
        %v1367 = vmul.f32 %v571, %v1307
        %1370 = vrot.lane.b32.xlu0 %v1366, 1
        %v1371 = vpop.permute.xlu0 %1370
        %1372 = vrot.lane.b32.xlu0 %v1367, 1
        %v1373 = vpop.permute.xlu0 %1372
        %vm1374 = vcmask 7168
        %v1375 = vsel %vm1374, %v1371, %v1373
        %v1379 = vadd.f32 %v1334, %v1371
        %v1380 = vadd.f32 %v1335, %v1375
        %v1381 = vadd.f32 %v1336, %v1373
        %1385 = vrot.lane.b32.xlu0 %v1363, 126
        %v1386 = vpop.permute.xlu0 %1385
        %1387 = vrot.lane.b32.xlu0 %v1364, 126
        %v1388 = vpop.permute.xlu0 %1387
        %1389 = vrot.lane.b32.xlu0 %v1365, 126
        %v1390 = vpop.permute.xlu0 %1389
        %vm1391 = vcmask 1031168
        %v1392 = vsel %vm1391, %v1386, %v1388
        %v1393 = vsel %vm1391, %v1388, %v1390
        %v1396 = vmul.f32 %v580, %v1392
        %v1397 = vmul.f32 %v584, %v1393
        %1400 = vrot.lane.b32.xlu0 %v1396, 1
        %v1401 = vpop.permute.xlu0 %1400
        %1402 = vrot.lane.b32.xlu0 %v1397, 1
        %v1403 = vpop.permute.xlu0 %1402
        %v1404 = vsel %vm1374, %v1401, %v1403
        %v1408 = vadd.f32 %v1379, %v1401
        %v1409 = vadd.f32 %v1380, %v1404
        %v1410 = vadd.f32 %v1381, %v1403
        %s1411 = sld [smem:[#allocation10]]
        %v1412 = vstv %s1411
        %v1413 = vmul.f32 %v1408, %v1412
        %v1414 = vmul.f32 %v1409, %v1412
        %v1415 = vmul.f32 %v1410, %v1412
        %v1416 = vadd.f32 %v588, %v1413
        %v1417 = vadd.f32 %v588, %v1414
        %v1418 = vadd.f32 %v588, %v1415
        %s1419 = sld [smem:[#allocation10 + $0x1]]
        %v1420 = vstv %s1419
        %v1421 = vmul.f32 %v1408, %v1420
        %v1422 = vmul.f32 %v1409, %v1420
        %v1423 = vmul.f32 %v1410, %v1420
        %v1424 = vadd.f32 %v590, %v1421
        %v1425 = vadd.f32 %v590, %v1422
        %v1426 = vadd.f32 %v590, %v1423
        %s1427 = sld [smem:[#allocation10 + $0x2]]
        %v1428 = vstv %s1427
        %v1429 = vmul.f32 %v1408, %v1428
        %v1430 = vmul.f32 %v1409, %v1428
        %v1431 = vmul.f32 %v1410, %v1428
        %v1432 = vadd.f32 %v592, %v1429
        %v1433 = vadd.f32 %v592, %v1430
        %v1434 = vadd.f32 %v592, %v1431
        %s1435 = sld [smem:[#allocation10 + $0x3]]
        %v1436 = vstv %s1435
        %v1437 = vmul.f32 %v1408, %v1436
        %v1438 = vmul.f32 %v1409, %v1436
        %v1439 = vmul.f32 %v1410, %v1436
        %v1440 = vadd.f32 %v594, %v1437
        %v1441 = vadd.f32 %v594, %v1438
        %v1442 = vadd.f32 %v594, %v1439
        %s1443 = sld [smem:[#allocation10 + $0x4]]
        %v1444 = vstv %s1443
        %v1445 = vmul.f32 %v1408, %v1444
        %v1446 = vmul.f32 %v1409, %v1444
        %v1447 = vmul.f32 %v1410, %v1444
        %v1448 = vadd.f32 %v596, %v1445
        %v1449 = vadd.f32 %v596, %v1446
        %v1450 = vadd.f32 %v596, %v1447
        %s1451 = sld [smem:[#allocation10 + $0x5]]
        %v1452 = vstv %s1451
        %v1453 = vmul.f32 %v1408, %v1452
        %v1454 = vmul.f32 %v1409, %v1452
        %v1455 = vmul.f32 %v1410, %v1452
        %v1456 = vadd.f32 %v598, %v1453
        %v1457 = vadd.f32 %v598, %v1454
        %v1458 = vadd.f32 %v598, %v1455
        %s1459 = sld [smem:[#allocation10 + $0x6]]
        %v1460 = vstv %s1459
        %v1461 = vmul.f32 %v1408, %v1460
        %v1462 = vmul.f32 %v1409, %v1460
        %v1463 = vmul.f32 %v1410, %v1460
        %v1464 = vadd.f32 %v600, %v1461
        %v1465 = vadd.f32 %v600, %v1462
        %v1466 = vadd.f32 %v600, %v1463
        %s1467 = sld [smem:[#allocation10 + $0x7]]
        %v1468 = vstv %s1467
        %v1469 = vmul.f32 %v1408, %v1468
        %v1470 = vmul.f32 %v1409, %v1468
        %v1471 = vmul.f32 %v1410, %v1468
        %v1472 = vadd.f32 %v602, %v1469
        %v1473 = vadd.f32 %v602, %v1470
        %v1474 = vadd.f32 %v602, %v1471
        %s1475 = scalar_lea.vmem [#allocation2], 48
        %v1476 = vld [vmem:[%s1475] sm:$0xff]
        %v1477 = vld [vmem:[%s1475 + $0x8] sm:$0xff]
        %s1478 = sld [smem:[#allocation9 + $0x80]]
        %v1479 = vstv %s1478
        %v1480 = vmul.f32 %v1476, %v1479
        %v1481 = vmul.f32 %v1477, %v1479
        %v1482 = vld [vmem:[%s1475] sm:$0xff]
        %v1483 = vld [vmem:[%s1475 + $0x8] sm:$0xff]
        %v1484 = vld [vmem:[%s1475 + $0x10] sm:$0xff]
        %s1485 = sld [smem:[#allocation9 + $0x81]]
        %v1486 = vstv %s1485
        %v1487 = vmul.f32 %v1482, %v1486
        %v1488 = vmul.f32 %v1483, %v1486
        %v1489 = vmul.f32 %v1484, %v1486
        %s1490 = sld [smem:[#allocation9 + $0x82]]
        %v1491 = vstv %s1490
        %v1492 = vmul.f32 %v1482, %v1491
        %v1493 = vmul.f32 %v1483, %v1491
        %v1494 = vmul.f32 %v1484, %v1491
        %s1495 = sld [smem:[#allocation9 + $0x83]]
        %v1496 = vstv %s1495
        %v1497 = vmul.f32 %v1482, %v1496
        %v1498 = vmul.f32 %v1483, %v1496
        %v1499 = vmul.f32 %v1484, %v1496
        %s1500 = sld [smem:[#allocation9 + $0x84]]
        %v1501 = vstv %s1500
        %v1502 = vmul.f32 %v1482, %v1501
        %v1503 = vmul.f32 %v1483, %v1501
        %v1504 = vmul.f32 %v1484, %v1501
        %s1505 = sld [smem:[#allocation9 + $0x85]]
        %v1506 = vstv %s1505
        %v1507 = vmul.f32 %v1482, %v1506
        %v1508 = vmul.f32 %v1483, %v1506
        %v1509 = vmul.f32 %v1484, %v1506
        %1513 = vrot.lane.b32.xlu0 %v1497, 112
        %v1514 = vpop.permute.xlu0 %1513
        %1515 = vrot.lane.b32.xlu0 %v1498, 112
        %v1516 = vpop.permute.xlu0 %1515
        %1517 = vrot.lane.b32.xlu0 %v1499, 112
        %v1518 = vpop.permute.xlu0 %1517
        %v1519 = vsel %vm646, %v1514, %v1516
        %v1520 = vsel %vm646, %v1516, %v1518
        %v1523 = vadd.f32 %v1480, %v1519
        %v1524 = vadd.f32 %v1481, %v1520
        %1528 = vrot.lane.b32.xlu0 %v1502, 112
        %v1529 = vpop.permute.xlu0 %1528
        %1530 = vrot.lane.b32.xlu0 %v1503, 112
        %v1531 = vpop.permute.xlu0 %1530
        %1532 = vrot.lane.b32.xlu0 %v1504, 112
        %v1533 = vpop.permute.xlu0 %1532
        %v1534 = vsel %vm646, %v1529, %v1531
        %v1535 = vsel %vm646, %v1531, %v1533
        %v1539 = vadd.f32 %v1487, %v1534
        %v1540 = vadd.f32 %v1488, %v1535
        %v1541 = vadd.f32 %v1489, %v1533
        %1545 = vrot.lane.b32.xlu0 %v1507, 112
        %v1546 = vpop.permute.xlu0 %1545
        %1547 = vrot.lane.b32.xlu0 %v1508, 112
        %v1548 = vpop.permute.xlu0 %1547
        %1549 = vrot.lane.b32.xlu0 %v1509, 112
        %v1550 = vpop.permute.xlu0 %1549
        %v1551 = vsel %vm646, %v1546, %v1548
        %v1552 = vsel %vm646, %v1548, %v1550
        %v1556 = vadd.f32 %v1492, %v1551
        %v1557 = vadd.f32 %v1493, %v1552
        %v1558 = vadd.f32 %v1494, %v1550
        %s1559 = sld [smem:[#allocation9 + $0x86]]
        %v1560 = vstv %s1559
        %v1561 = vmul.f32 %v1482, %v1560
        %v1562 = vmul.f32 %v1483, %v1560
        %v1563 = vmul.f32 %v1484, %v1560
        %s1564 = sld [smem:[#allocation9 + $0x87]]
        %v1565 = vstv %s1564
        %v1566 = vmul.f32 %v1482, %v1565
        %v1567 = vmul.f32 %v1483, %v1565
        %v1568 = vmul.f32 %v1484, %v1565
        %s1569 = sld [smem:[#allocation9 + $0x88]]
        %v1570 = vstv %s1569
        %v1571 = vmul.f32 %v1482, %v1570
        %v1572 = vmul.f32 %v1483, %v1570
        %v1573 = vmul.f32 %v1484, %v1570
        %1577 = vrot.lane.b32.xlu0 %v1561, 96
        %v1578 = vpop.permute.xlu0 %1577
        %1579 = vrot.lane.b32.xlu0 %v1562, 96
        %v1580 = vpop.permute.xlu0 %1579
        %1581 = vrot.lane.b32.xlu0 %v1563, 96
        %v1582 = vpop.permute.xlu0 %1581
        %v1583 = vsel %vm711, %v1578, %v1580
        %v1584 = vsel %vm711, %v1580, %v1582
        %v1587 = vadd.f32 %v1523, %v1583
        %v1588 = vadd.f32 %v1524, %v1584
        %1592 = vrot.lane.b32.xlu0 %v1566, 96
        %v1593 = vpop.permute.xlu0 %1592
        %1594 = vrot.lane.b32.xlu0 %v1567, 96
        %v1595 = vpop.permute.xlu0 %1594
        %1596 = vrot.lane.b32.xlu0 %v1568, 96
        %v1597 = vpop.permute.xlu0 %1596
        %v1598 = vsel %vm711, %v1593, %v1595
        %v1599 = vsel %vm711, %v1595, %v1597
        %v1603 = vadd.f32 %v1539, %v1598
        %v1604 = vadd.f32 %v1540, %v1599
        %v1605 = vadd.f32 %v1541, %v1597
        %1609 = vrot.lane.b32.xlu0 %v1571, 96
        %v1610 = vpop.permute.xlu0 %1609
        %1611 = vrot.lane.b32.xlu0 %v1572, 96
        %v1612 = vpop.permute.xlu0 %1611
        %1613 = vrot.lane.b32.xlu0 %v1573, 96
        %v1614 = vpop.permute.xlu0 %1613
        %v1615 = vsel %vm711, %v1610, %v1612
        %v1616 = vsel %vm711, %v1612, %v1614
        %v1620 = vadd.f32 %v1556, %v1615
        %v1621 = vadd.f32 %v1557, %v1616
        %v1622 = vadd.f32 %v1558, %v1614
        %v1623 = vld [vmem:[%s1475] sm:$0xfe]
        %v1624 = vld [vmem:[%s1475 + $0x8] sm:$0xfe]
        %v1625 = vld [vmem:[%s1475 + $0x18] sm:$0x1]
        %v1626 = vld [vmem:[%s1475 + $0x20] sm:$0x1]
        %s1627 = sld [smem:[#allocation9 + $0x89]]
        %v1628 = vstv %s1627
        %v1629 = vmul.f32 %v1623, %v1628
        %v1630 = vmul.f32 %v1624, %v1628
        %v1631 = vmul.f32 %v1625, %v1628
        %v1632 = vmul.f32 %v1626, %v1628
        %v1633 = vld [vmem:[%s1475] sm:$0xfe]
        %v1634 = vld [vmem:[%s1475 + $0x8] sm:$0xfe]
        %v1635 = vld [vmem:[%s1475 + $0x10] sm:$0xfe]
        %v1636 = vld [vmem:[%s1475 + $0x18] sm:$0x1]
        %v1637 = vld [vmem:[%s1475 + $0x20] sm:$0x1]
        %v1638 = vld [vmem:[%s1475 + $0x28] sm:$0x1]
        %s1639 = sld [smem:[#allocation9 + $0x8a]]
        %v1640 = vstv %s1639
        %v1641 = vmul.f32 %v1633, %v1640
        %v1642 = vmul.f32 %v1634, %v1640
        %v1643 = vmul.f32 %v1635, %v1640
        %v1644 = vmul.f32 %v1636, %v1640
        %v1645 = vmul.f32 %v1637, %v1640
        %v1646 = vmul.f32 %v1638, %v1640
        %s1647 = sld [smem:[#allocation9 + $0x8b]]
        %v1648 = vstv %s1647
        %v1649 = vmul.f32 %v1633, %v1648
        %v1650 = vmul.f32 %v1634, %v1648
        %v1651 = vmul.f32 %v1635, %v1648
        %v1652 = vmul.f32 %v1636, %v1648
        %v1653 = vmul.f32 %v1637, %v1648
        %v1654 = vmul.f32 %v1638, %v1648
        %v1659 = vrot.slane %v1629, 1
        %v1660 = vrot.slane %v1631, 1
        %v1661 = vsel %vm788, %v1659, %v1660
        %v1662 = vrot.slane %v1630, 1
        %v1663 = vrot.slane %v1632, 1
        %v1664 = vsel %vm788, %v1662, %v1663
        %v1667 = vadd.f32 %v1587, %v1661
        %v1668 = vadd.f32 %v1588, %v1664
        %v1675 = vrot.slane %v1641, 1
        %v1676 = vrot.slane %v1644, 1
        %v1677 = vsel %vm788, %v1675, %v1676
        %v1678 = vrot.slane %v1642, 1
        %v1679 = vrot.slane %v1645, 1
        %v1680 = vsel %vm788, %v1678, %v1679
        %v1681 = vrot.slane %v1643, 1
        %v1682 = vrot.slane %v1646, 1
        %v1683 = vsel %vm788, %v1681, %v1682
        %v1687 = vadd.f32 %v1603, %v1677
        %v1688 = vadd.f32 %v1604, %v1680
        %v1689 = vadd.f32 %v1605, %v1683
        %v1696 = vrot.slane %v1649, 1
        %v1697 = vrot.slane %v1652, 1
        %v1698 = vsel %vm788, %v1696, %v1697
        %v1699 = vrot.slane %v1650, 1
        %v1700 = vrot.slane %v1653, 1
        %v1701 = vsel %vm788, %v1699, %v1700
        %v1702 = vrot.slane %v1651, 1
        %v1703 = vrot.slane %v1654, 1
        %v1704 = vsel %vm788, %v1702, %v1703
        %v1708 = vadd.f32 %v1620, %v1698
        %v1709 = vadd.f32 %v1621, %v1701
        %v1710 = vadd.f32 %v1622, %v1704
        %s1711 = sld [smem:[#allocation9 + $0x8c]]
        %v1712 = vstv %s1711
        %v1713 = vmul.f32 %v1633, %v1712
        %v1714 = vmul.f32 %v1634, %v1712
        %v1715 = vmul.f32 %v1635, %v1712
        %v1716 = vmul.f32 %v1636, %v1712
        %v1717 = vmul.f32 %v1637, %v1712
        %v1718 = vmul.f32 %v1638, %v1712
        %s1719 = sld [smem:[#allocation9 + $0x8d]]
        %v1720 = vstv %s1719
        %v1721 = vmul.f32 %v1633, %v1720
        %v1722 = vmul.f32 %v1634, %v1720
        %v1723 = vmul.f32 %v1635, %v1720
        %v1724 = vmul.f32 %v1636, %v1720
        %v1725 = vmul.f32 %v1637, %v1720
        %v1726 = vmul.f32 %v1638, %v1720
        %s1727 = sld [smem:[#allocation9 + $0x8e]]
        %v1728 = vstv %s1727
        %v1729 = vmul.f32 %v1633, %v1728
        %v1730 = vmul.f32 %v1634, %v1728
        %v1731 = vmul.f32 %v1635, %v1728
        %v1732 = vmul.f32 %v1636, %v1728
        %v1733 = vmul.f32 %v1637, %v1728
        %v1734 = vmul.f32 %v1638, %v1728
        %v1741 = vrot.slane %v1713, 1
        %v1742 = vrot.slane %v1716, 1
        %v1743 = vsel %vm788, %v1741, %v1742
        %v1744 = vrot.slane %v1714, 1
        %v1745 = vrot.slane %v1717, 1
        %v1746 = vsel %vm788, %v1744, %v1745
        %v1747 = vrot.slane %v1715, 1
        %v1748 = vrot.slane %v1718, 1
        %v1749 = vsel %vm788, %v1747, %v1748
        %1750 = vrot.lane.b32.xlu0 %v1743, 112
        %v1751 = vpop.permute.xlu0 %1750
        %1752 = vrot.lane.b32.xlu0 %v1746, 112
        %v1753 = vpop.permute.xlu0 %1752
        %1754 = vrot.lane.b32.xlu0 %v1749, 112
        %v1755 = vpop.permute.xlu0 %1754
        %v1756 = vsel %vm646, %v1751, %v1753
        %v1757 = vsel %vm646, %v1753, %v1755
        %v1760 = vadd.f32 %v1667, %v1756
        %v1761 = vadd.f32 %v1668, %v1757
        %v1768 = vrot.slane %v1721, 1
        %v1769 = vrot.slane %v1724, 1
        %v1770 = vsel %vm788, %v1768, %v1769
        %v1771 = vrot.slane %v1722, 1
        %v1772 = vrot.slane %v1725, 1
        %v1773 = vsel %vm788, %v1771, %v1772
        %v1774 = vrot.slane %v1723, 1
        %v1775 = vrot.slane %v1726, 1
        %v1776 = vsel %vm788, %v1774, %v1775
        %1777 = vrot.lane.b32.xlu0 %v1770, 112
        %v1778 = vpop.permute.xlu0 %1777
        %1779 = vrot.lane.b32.xlu0 %v1773, 112
        %v1780 = vpop.permute.xlu0 %1779
        %1781 = vrot.lane.b32.xlu0 %v1776, 112
        %v1782 = vpop.permute.xlu0 %1781
        %v1783 = vsel %vm646, %v1778, %v1780
        %v1784 = vsel %vm646, %v1780, %v1782
        %v1788 = vadd.f32 %v1687, %v1783
        %v1789 = vadd.f32 %v1688, %v1784
        %v1790 = vadd.f32 %v1689, %v1782
        %v1797 = vrot.slane %v1729, 1
        %v1798 = vrot.slane %v1732, 1
        %v1799 = vsel %vm788, %v1797, %v1798
        %v1800 = vrot.slane %v1730, 1
        %v1801 = vrot.slane %v1733, 1
        %v1802 = vsel %vm788, %v1800, %v1801
        %v1803 = vrot.slane %v1731, 1
        %v1804 = vrot.slane %v1734, 1
        %v1805 = vsel %vm788, %v1803, %v1804
        %1806 = vrot.lane.b32.xlu0 %v1799, 112
        %v1807 = vpop.permute.xlu0 %1806
        %1808 = vrot.lane.b32.xlu0 %v1802, 112
        %v1809 = vpop.permute.xlu0 %1808
        %1810 = vrot.lane.b32.xlu0 %v1805, 112
        %v1811 = vpop.permute.xlu0 %1810
        %v1812 = vsel %vm646, %v1807, %v1809
        %v1813 = vsel %vm646, %v1809, %v1811
        %v1817 = vadd.f32 %v1708, %v1812
        %v1818 = vadd.f32 %v1709, %v1813
        %v1819 = vadd.f32 %v1710, %v1811
        %s1820 = sld [smem:[#allocation9 + $0x8f]]
        %v1821 = vstv %s1820
        %v1822 = vmul.f32 %v1633, %v1821
        %v1823 = vmul.f32 %v1634, %v1821
        %v1824 = vmul.f32 %v1635, %v1821
        %v1825 = vmul.f32 %v1636, %v1821
        %v1826 = vmul.f32 %v1637, %v1821
        %v1827 = vmul.f32 %v1638, %v1821
        %s1828 = sld [smem:[#allocation9 + $0x90]]
        %v1829 = vstv %s1828
        %v1830 = vmul.f32 %v1633, %v1829
        %v1831 = vmul.f32 %v1634, %v1829
        %v1832 = vmul.f32 %v1635, %v1829
        %v1833 = vmul.f32 %v1636, %v1829
        %v1834 = vmul.f32 %v1637, %v1829
        %v1835 = vmul.f32 %v1638, %v1829
        %s1836 = sld [smem:[#allocation9 + $0x91]]
        %v1837 = vstv %s1836
        %v1838 = vmul.f32 %v1633, %v1837
        %v1839 = vmul.f32 %v1634, %v1837
        %v1840 = vmul.f32 %v1635, %v1837
        %v1841 = vmul.f32 %v1636, %v1837
        %v1842 = vmul.f32 %v1637, %v1837
        %v1843 = vmul.f32 %v1638, %v1837
        %v1850 = vrot.slane %v1822, 1
        %v1851 = vrot.slane %v1825, 1
        %v1852 = vsel %vm788, %v1850, %v1851
        %v1853 = vrot.slane %v1823, 1
        %v1854 = vrot.slane %v1826, 1
        %v1855 = vsel %vm788, %v1853, %v1854
        %v1856 = vrot.slane %v1824, 1
        %v1857 = vrot.slane %v1827, 1
        %v1858 = vsel %vm788, %v1856, %v1857
        %1859 = vrot.lane.b32.xlu0 %v1852, 96
        %v1860 = vpop.permute.xlu0 %1859
        %1861 = vrot.lane.b32.xlu0 %v1855, 96
        %v1862 = vpop.permute.xlu0 %1861
        %1863 = vrot.lane.b32.xlu0 %v1858, 96
        %v1864 = vpop.permute.xlu0 %1863
        %v1865 = vsel %vm711, %v1860, %v1862
        %v1866 = vsel %vm711, %v1862, %v1864
        %v1869 = vadd.f32 %v1760, %v1865
        %v1870 = vadd.f32 %v1761, %v1866
        %v1877 = vrot.slane %v1830, 1
        %v1878 = vrot.slane %v1833, 1
        %v1879 = vsel %vm788, %v1877, %v1878
        %v1880 = vrot.slane %v1831, 1
        %v1881 = vrot.slane %v1834, 1
        %v1882 = vsel %vm788, %v1880, %v1881
        %v1883 = vrot.slane %v1832, 1
        %v1884 = vrot.slane %v1835, 1
        %v1885 = vsel %vm788, %v1883, %v1884
        %1886 = vrot.lane.b32.xlu0 %v1879, 96
        %v1887 = vpop.permute.xlu0 %1886
        %1888 = vrot.lane.b32.xlu0 %v1882, 96
        %v1889 = vpop.permute.xlu0 %1888
        %1890 = vrot.lane.b32.xlu0 %v1885, 96
        %v1891 = vpop.permute.xlu0 %1890
        %v1892 = vsel %vm711, %v1887, %v1889
        %v1893 = vsel %vm711, %v1889, %v1891
        %v1897 = vadd.f32 %v1788, %v1892
        %v1898 = vadd.f32 %v1789, %v1893
        %v1899 = vadd.f32 %v1790, %v1891
        %v1906 = vrot.slane %v1838, 1
        %v1907 = vrot.slane %v1841, 1
        %v1908 = vsel %vm788, %v1906, %v1907
        %v1909 = vrot.slane %v1839, 1
        %v1910 = vrot.slane %v1842, 1
        %v1911 = vsel %vm788, %v1909, %v1910
        %v1912 = vrot.slane %v1840, 1
        %v1913 = vrot.slane %v1843, 1
        %v1914 = vsel %vm788, %v1912, %v1913
        %1915 = vrot.lane.b32.xlu0 %v1908, 96
        %v1916 = vpop.permute.xlu0 %1915
        %1917 = vrot.lane.b32.xlu0 %v1911, 96
        %v1918 = vpop.permute.xlu0 %1917
        %1919 = vrot.lane.b32.xlu0 %v1914, 96
        %v1920 = vpop.permute.xlu0 %1919
        %v1921 = vsel %vm711, %v1916, %v1918
        %v1922 = vsel %vm711, %v1918, %v1920
        %v1926 = vadd.f32 %v1817, %v1921
        %v1927 = vadd.f32 %v1818, %v1922
        %v1928 = vadd.f32 %v1819, %v1920
        %v1929 = vld [vmem:[%s1475] sm:$0xfc]
        %v1930 = vld [vmem:[%s1475 + $0x8] sm:$0xfc]
        %v1931 = vld [vmem:[%s1475 + $0x18] sm:$0x3]
        %v1932 = vld [vmem:[%s1475 + $0x20] sm:$0x3]
        %s1933 = sld [smem:[#allocation9 + $0x92]]
        %v1934 = vstv %s1933
        %v1935 = vmul.f32 %v1929, %v1934
        %v1936 = vmul.f32 %v1930, %v1934
        %v1937 = vmul.f32 %v1931, %v1934
        %v1938 = vmul.f32 %v1932, %v1934
        %v1939 = vld [vmem:[%s1475] sm:$0xfc]
        %v1940 = vld [vmem:[%s1475 + $0x8] sm:$0xfc]
        %v1941 = vld [vmem:[%s1475 + $0x10] sm:$0xfc]
        %v1942 = vld [vmem:[%s1475 + $0x18] sm:$0x3]
        %v1943 = vld [vmem:[%s1475 + $0x20] sm:$0x3]
        %v1944 = vld [vmem:[%s1475 + $0x28] sm:$0x3]
        %s1945 = sld [smem:[#allocation9 + $0x93]]
        %v1946 = vstv %s1945
        %v1947 = vmul.f32 %v1939, %v1946
        %v1948 = vmul.f32 %v1940, %v1946
        %v1949 = vmul.f32 %v1941, %v1946
        %v1950 = vmul.f32 %v1942, %v1946
        %v1951 = vmul.f32 %v1943, %v1946
        %v1952 = vmul.f32 %v1944, %v1946
        %s1953 = sld [smem:[#allocation9 + $0x94]]
        %v1954 = vstv %s1953
        %v1955 = vmul.f32 %v1939, %v1954
        %v1956 = vmul.f32 %v1940, %v1954
        %v1957 = vmul.f32 %v1941, %v1954
        %v1958 = vmul.f32 %v1942, %v1954
        %v1959 = vmul.f32 %v1943, %v1954
        %v1960 = vmul.f32 %v1944, %v1954
        %v1965 = vrot.slane %v1935, 2
        %v1966 = vrot.slane %v1937, 2
        %v1967 = vsel %vm1095, %v1965, %v1966
        %v1968 = vrot.slane %v1936, 2
        %v1969 = vrot.slane %v1938, 2
        %v1970 = vsel %vm1095, %v1968, %v1969
        %v1973 = vadd.f32 %v1869, %v1967
        %v1974 = vadd.f32 %v1870, %v1970
        %v1981 = vrot.slane %v1947, 2
        %v1982 = vrot.slane %v1950, 2
        %v1983 = vsel %vm1095, %v1981, %v1982
        %v1984 = vrot.slane %v1948, 2
        %v1985 = vrot.slane %v1951, 2
        %v1986 = vsel %vm1095, %v1984, %v1985
        %v1987 = vrot.slane %v1949, 2
        %v1988 = vrot.slane %v1952, 2
        %v1989 = vsel %vm1095, %v1987, %v1988
        %v1993 = vadd.f32 %v1897, %v1983
        %v1994 = vadd.f32 %v1898, %v1986
        %v1995 = vadd.f32 %v1899, %v1989
        %v2002 = vrot.slane %v1955, 2
        %v2003 = vrot.slane %v1958, 2
        %v2004 = vsel %vm1095, %v2002, %v2003
        %v2005 = vrot.slane %v1956, 2
        %v2006 = vrot.slane %v1959, 2
        %v2007 = vsel %vm1095, %v2005, %v2006
        %v2008 = vrot.slane %v1957, 2
        %v2009 = vrot.slane %v1960, 2
        %v2010 = vsel %vm1095, %v2008, %v2009
        %v2014 = vadd.f32 %v1926, %v2004
        %v2015 = vadd.f32 %v1927, %v2007
        %v2016 = vadd.f32 %v1928, %v2010
        %s2017 = sld [smem:[#allocation9 + $0x95]]
        %v2018 = vstv %s2017
        %v2019 = vmul.f32 %v1939, %v2018
        %v2020 = vmul.f32 %v1940, %v2018
        %v2021 = vmul.f32 %v1941, %v2018
        %v2022 = vmul.f32 %v1942, %v2018
        %v2023 = vmul.f32 %v1943, %v2018
        %v2024 = vmul.f32 %v1944, %v2018
        %s2025 = sld [smem:[#allocation9 + $0x96]]
        %v2026 = vstv %s2025
        %v2027 = vmul.f32 %v1939, %v2026
        %v2028 = vmul.f32 %v1940, %v2026
        %v2029 = vmul.f32 %v1941, %v2026
        %v2030 = vmul.f32 %v1942, %v2026
        %v2031 = vmul.f32 %v1943, %v2026
        %v2032 = vmul.f32 %v1944, %v2026
        %s2033 = sld [smem:[#allocation9 + $0x97]]
        %v2034 = vstv %s2033
        %v2035 = vmul.f32 %v1939, %v2034
        %v2036 = vmul.f32 %v1940, %v2034
        %v2037 = vmul.f32 %v1941, %v2034
        %v2038 = vmul.f32 %v1942, %v2034
        %v2039 = vmul.f32 %v1943, %v2034
        %v2040 = vmul.f32 %v1944, %v2034
        %v2047 = vrot.slane %v2019, 2
        %v2048 = vrot.slane %v2022, 2
        %v2049 = vsel %vm1095, %v2047, %v2048
        %v2050 = vrot.slane %v2020, 2
        %v2051 = vrot.slane %v2023, 2
        %v2052 = vsel %vm1095, %v2050, %v2051
        %v2053 = vrot.slane %v2021, 2
        %v2054 = vrot.slane %v2024, 2
        %v2055 = vsel %vm1095, %v2053, %v2054
        %2056 = vrot.lane.b32.xlu0 %v2049, 112
        %v2057 = vpop.permute.xlu0 %2056
        %2058 = vrot.lane.b32.xlu0 %v2052, 112
        %v2059 = vpop.permute.xlu0 %2058
        %2060 = vrot.lane.b32.xlu0 %v2055, 112
        %v2061 = vpop.permute.xlu0 %2060
        %v2062 = vsel %vm646, %v2057, %v2059
        %v2063 = vsel %vm646, %v2059, %v2061
        %v2066 = vadd.f32 %v1973, %v2062
        %v2067 = vadd.f32 %v1974, %v2063
        %v2074 = vrot.slane %v2027, 2
        %v2075 = vrot.slane %v2030, 2
        %v2076 = vsel %vm1095, %v2074, %v2075
        %v2077 = vrot.slane %v2028, 2
        %v2078 = vrot.slane %v2031, 2
        %v2079 = vsel %vm1095, %v2077, %v2078
        %v2080 = vrot.slane %v2029, 2
        %v2081 = vrot.slane %v2032, 2
        %v2082 = vsel %vm1095, %v2080, %v2081
        %2083 = vrot.lane.b32.xlu0 %v2076, 112
        %v2084 = vpop.permute.xlu0 %2083
        %2085 = vrot.lane.b32.xlu0 %v2079, 112
        %v2086 = vpop.permute.xlu0 %2085
        %2087 = vrot.lane.b32.xlu0 %v2082, 112
        %v2088 = vpop.permute.xlu0 %2087
        %v2089 = vsel %vm646, %v2084, %v2086
        %v2090 = vsel %vm646, %v2086, %v2088
        %v2094 = vadd.f32 %v1993, %v2089
        %v2095 = vadd.f32 %v1994, %v2090
        %v2096 = vadd.f32 %v1995, %v2088
        %v2103 = vrot.slane %v2035, 2
        %v2104 = vrot.slane %v2038, 2
        %v2105 = vsel %vm1095, %v2103, %v2104
        %v2106 = vrot.slane %v2036, 2
        %v2107 = vrot.slane %v2039, 2
        %v2108 = vsel %vm1095, %v2106, %v2107
        %v2109 = vrot.slane %v2037, 2
        %v2110 = vrot.slane %v2040, 2
        %v2111 = vsel %vm1095, %v2109, %v2110
        %2112 = vrot.lane.b32.xlu0 %v2105, 112
        %v2113 = vpop.permute.xlu0 %2112
        %2114 = vrot.lane.b32.xlu0 %v2108, 112
        %v2115 = vpop.permute.xlu0 %2114
        %2116 = vrot.lane.b32.xlu0 %v2111, 112
        %v2117 = vpop.permute.xlu0 %2116
        %v2118 = vsel %vm646, %v2113, %v2115
        %v2119 = vsel %vm646, %v2115, %v2117
        %v2123 = vadd.f32 %v2014, %v2118
        %v2124 = vadd.f32 %v2015, %v2119
        %v2125 = vadd.f32 %v2016, %v2117
        %s2126 = sld [smem:[#allocation9 + $0x98]]
        %v2127 = vstv %s2126
        %v2128 = vmul.f32 %v1939, %v2127
        %v2129 = vmul.f32 %v1940, %v2127
        %v2130 = vmul.f32 %v1941, %v2127
        %v2131 = vmul.f32 %v1942, %v2127
        %v2132 = vmul.f32 %v1943, %v2127
        %v2133 = vmul.f32 %v1944, %v2127
        %s2134 = sld [smem:[#allocation9 + $0x99]]
        %v2135 = vstv %s2134
        %v2136 = vmul.f32 %v1939, %v2135
        %v2137 = vmul.f32 %v1940, %v2135
        %v2138 = vmul.f32 %v1941, %v2135
        %v2139 = vmul.f32 %v1942, %v2135
        %v2140 = vmul.f32 %v1943, %v2135
        %v2141 = vmul.f32 %v1944, %v2135
        %s2142 = sld [smem:[#allocation9 + $0x9a]]
        %v2143 = vstv %s2142
        %v2144 = vmul.f32 %v1939, %v2143
        %v2145 = vmul.f32 %v1940, %v2143
        %v2146 = vmul.f32 %v1941, %v2143
        %v2147 = vmul.f32 %v1942, %v2143
        %v2148 = vmul.f32 %v1943, %v2143
        %v2149 = vmul.f32 %v1944, %v2143
        %v2156 = vrot.slane %v2128, 2
        %v2157 = vrot.slane %v2131, 2
        %v2158 = vsel %vm1095, %v2156, %v2157
        %v2159 = vrot.slane %v2129, 2
        %v2160 = vrot.slane %v2132, 2
        %v2161 = vsel %vm1095, %v2159, %v2160
        %v2162 = vrot.slane %v2130, 2
        %v2163 = vrot.slane %v2133, 2
        %v2164 = vsel %vm1095, %v2162, %v2163
        %2165 = vrot.lane.b32.xlu0 %v2158, 96
        %v2166 = vpop.permute.xlu0 %2165
        %2167 = vrot.lane.b32.xlu0 %v2161, 96
        %v2168 = vpop.permute.xlu0 %2167
        %2169 = vrot.lane.b32.xlu0 %v2164, 96
        %v2170 = vpop.permute.xlu0 %2169
        %v2171 = vsel %vm711, %v2166, %v2168
        %v2172 = vsel %vm711, %v2168, %v2170
        %v2175 = vadd.f32 %v2066, %v2171
        %v2176 = vadd.f32 %v2067, %v2172
        %v2183 = vrot.slane %v2136, 2
        %v2184 = vrot.slane %v2139, 2
        %v2185 = vsel %vm1095, %v2183, %v2184
        %v2186 = vrot.slane %v2137, 2
        %v2187 = vrot.slane %v2140, 2
        %v2188 = vsel %vm1095, %v2186, %v2187
        %v2189 = vrot.slane %v2138, 2
        %v2190 = vrot.slane %v2141, 2
        %v2191 = vsel %vm1095, %v2189, %v2190
        %2192 = vrot.lane.b32.xlu0 %v2185, 96
        %v2193 = vpop.permute.xlu0 %2192
        %2194 = vrot.lane.b32.xlu0 %v2188, 96
        %v2195 = vpop.permute.xlu0 %2194
        %2196 = vrot.lane.b32.xlu0 %v2191, 96
        %v2197 = vpop.permute.xlu0 %2196
        %v2198 = vsel %vm711, %v2193, %v2195
        %v2199 = vsel %vm711, %v2195, %v2197
        %v2203 = vadd.f32 %v2094, %v2198
        %v2204 = vadd.f32 %v2095, %v2199
        %v2205 = vadd.f32 %v2096, %v2197
        %v2212 = vrot.slane %v2144, 2
        %v2213 = vrot.slane %v2147, 2
        %v2214 = vsel %vm1095, %v2212, %v2213
        %v2215 = vrot.slane %v2145, 2
        %v2216 = vrot.slane %v2148, 2
        %v2217 = vsel %vm1095, %v2215, %v2216
        %v2218 = vrot.slane %v2146, 2
        %v2219 = vrot.slane %v2149, 2
        %v2220 = vsel %vm1095, %v2218, %v2219
        %2221 = vrot.lane.b32.xlu0 %v2214, 96
        %v2222 = vpop.permute.xlu0 %2221
        %2223 = vrot.lane.b32.xlu0 %v2217, 96
        %v2224 = vpop.permute.xlu0 %2223
        %2225 = vrot.lane.b32.xlu0 %v2220, 96
        %v2226 = vpop.permute.xlu0 %2225
        %v2227 = vsel %vm711, %v2222, %v2224
        %v2228 = vsel %vm711, %v2224, %v2226
        %v2232 = vadd.f32 %v2123, %v2227
        %v2233 = vadd.f32 %v2124, %v2228
        %v2234 = vadd.f32 %v2125, %v2226
        %v2235 = vmul.f32 %v567, %v2175
        %v2236 = vmul.f32 %v571, %v2176
        %2239 = vrot.lane.b32.xlu0 %v2235, 1
        %v2240 = vpop.permute.xlu0 %2239
        %2241 = vrot.lane.b32.xlu0 %v2236, 1
        %v2242 = vpop.permute.xlu0 %2241
        %v2243 = vsel %vm1374, %v2240, %v2242
        %v2247 = vadd.f32 %v2203, %v2240
        %v2248 = vadd.f32 %v2204, %v2243
        %v2249 = vadd.f32 %v2205, %v2242
        %2253 = vrot.lane.b32.xlu0 %v2232, 126
        %v2254 = vpop.permute.xlu0 %2253
        %2255 = vrot.lane.b32.xlu0 %v2233, 126
        %v2256 = vpop.permute.xlu0 %2255
        %2257 = vrot.lane.b32.xlu0 %v2234, 126
        %v2258 = vpop.permute.xlu0 %2257
        %v2259 = vsel %vm1391, %v2254, %v2256
        %v2260 = vsel %vm1391, %v2256, %v2258
        %v2263 = vmul.f32 %v580, %v2259
        %v2264 = vmul.f32 %v584, %v2260
        %2267 = vrot.lane.b32.xlu0 %v2263, 1
        %v2268 = vpop.permute.xlu0 %2267
        %2269 = vrot.lane.b32.xlu0 %v2264, 1
        %v2270 = vpop.permute.xlu0 %2269
        %v2271 = vsel %vm1374, %v2268, %v2270
        %v2275 = vadd.f32 %v2247, %v2268
        %v2276 = vadd.f32 %v2248, %v2271
        %v2277 = vadd.f32 %v2249, %v2270
        %s2278 = sld [smem:[#allocation10 + $0x80]]
        %v2279 = vstv %s2278
        %v2280 = vmul.f32 %v2275, %v2279
        %v2281 = vmul.f32 %v2276, %v2279
        %v2282 = vmul.f32 %v2277, %v2279
        %v2283 = vadd.f32 %v1416, %v2280
        %v2284 = vadd.f32 %v1417, %v2281
        %v2285 = vadd.f32 %v1418, %v2282
        %s2286 = sld [smem:[#allocation10 + $0x81]]
        %v2287 = vstv %s2286
        %v2288 = vmul.f32 %v2275, %v2287
        %v2289 = vmul.f32 %v2276, %v2287
        %v2290 = vmul.f32 %v2277, %v2287
        %v2291 = vadd.f32 %v1424, %v2288
        %v2292 = vadd.f32 %v1425, %v2289
        %v2293 = vadd.f32 %v1426, %v2290
        %s2294 = sld [smem:[#allocation10 + $0x82]]
        %v2295 = vstv %s2294
        %v2296 = vmul.f32 %v2275, %v2295
        %v2297 = vmul.f32 %v2276, %v2295
        %v2298 = vmul.f32 %v2277, %v2295
        %v2299 = vadd.f32 %v1432, %v2296
        %v2300 = vadd.f32 %v1433, %v2297
        %v2301 = vadd.f32 %v1434, %v2298
        %s2302 = sld [smem:[#allocation10 + $0x83]]
        %v2303 = vstv %s2302
        %v2304 = vmul.f32 %v2275, %v2303
        %v2305 = vmul.f32 %v2276, %v2303
        %v2306 = vmul.f32 %v2277, %v2303
        %v2307 = vadd.f32 %v1440, %v2304
        %v2308 = vadd.f32 %v1441, %v2305
        %v2309 = vadd.f32 %v1442, %v2306
        %s2310 = sld [smem:[#allocation10 + $0x84]]
        %v2311 = vstv %s2310
        %v2312 = vmul.f32 %v2275, %v2311
        %v2313 = vmul.f32 %v2276, %v2311
        %v2314 = vmul.f32 %v2277, %v2311
        %v2315 = vadd.f32 %v1448, %v2312
        %v2316 = vadd.f32 %v1449, %v2313
        %v2317 = vadd.f32 %v1450, %v2314
        %s2318 = sld [smem:[#allocation10 + $0x85]]
        %v2319 = vstv %s2318
        %v2320 = vmul.f32 %v2275, %v2319
        %v2321 = vmul.f32 %v2276, %v2319
        %v2322 = vmul.f32 %v2277, %v2319
        %v2323 = vadd.f32 %v1456, %v2320
        %v2324 = vadd.f32 %v1457, %v2321
        %v2325 = vadd.f32 %v1458, %v2322
        %s2326 = sld [smem:[#allocation10 + $0x86]]
        %v2327 = vstv %s2326
        %v2328 = vmul.f32 %v2275, %v2327
        %v2329 = vmul.f32 %v2276, %v2327
        %v2330 = vmul.f32 %v2277, %v2327
        %v2331 = vadd.f32 %v1464, %v2328
        %v2332 = vadd.f32 %v1465, %v2329
        %v2333 = vadd.f32 %v1466, %v2330
        %s2334 = sld [smem:[#allocation10 + $0x87]]
        %v2335 = vstv %s2334
        %v2336 = vmul.f32 %v2275, %v2335
        %v2337 = vmul.f32 %v2276, %v2335
        %v2338 = vmul.f32 %v2277, %v2335
        %v2339 = vadd.f32 %v1472, %v2336
        %v2340 = vadd.f32 %v1473, %v2337
        %v2341 = vadd.f32 %v1474, %v2338
        %s2342 = scalar_lea.vmem [#allocation2], 96
        %v2343 = vld [vmem:[%s2342] sm:$0xff]
        %v2344 = vld [vmem:[%s2342 + $0x8] sm:$0xff]
        %s2345 = sld [smem:[#allocation9 + $0x100]]
        %v2346 = vstv %s2345
        %v2347 = vmul.f32 %v2343, %v2346
        %v2348 = vmul.f32 %v2344, %v2346
        %v2349 = vld [vmem:[%s2342] sm:$0xff]
        %v2350 = vld [vmem:[%s2342 + $0x8] sm:$0xff]
        %v2351 = vld [vmem:[%s2342 + $0x10] sm:$0xff]
        %s2352 = sld [smem:[#allocation9 + $0x101]]
        %v2353 = vstv %s2352
        %v2354 = vmul.f32 %v2349, %v2353
        %v2355 = vmul.f32 %v2350, %v2353
        %v2356 = vmul.f32 %v2351, %v2353
        %s2357 = sld [smem:[#allocation9 + $0x102]]
        %v2358 = vstv %s2357
        %v2359 = vmul.f32 %v2349, %v2358
        %v2360 = vmul.f32 %v2350, %v2358
        %v2361 = vmul.f32 %v2351, %v2358
        %s2362 = sld [smem:[#allocation9 + $0x103]]
        %v2363 = vstv %s2362
        %v2364 = vmul.f32 %v2349, %v2363
        %v2365 = vmul.f32 %v2350, %v2363
        %v2366 = vmul.f32 %v2351, %v2363
        %s2367 = sld [smem:[#allocation9 + $0x104]]
        %v2368 = vstv %s2367
        %v2369 = vmul.f32 %v2349, %v2368
        %v2370 = vmul.f32 %v2350, %v2368
        %v2371 = vmul.f32 %v2351, %v2368
        %s2372 = sld [smem:[#allocation9 + $0x105]]
        %v2373 = vstv %s2372
        %v2374 = vmul.f32 %v2349, %v2373
        %v2375 = vmul.f32 %v2350, %v2373
        %v2376 = vmul.f32 %v2351, %v2373
        %2380 = vrot.lane.b32.xlu0 %v2364, 112
        %v2381 = vpop.permute.xlu0 %2380
        %2382 = vrot.lane.b32.xlu0 %v2365, 112
        %v2383 = vpop.permute.xlu0 %2382
        %2384 = vrot.lane.b32.xlu0 %v2366, 112
        %v2385 = vpop.permute.xlu0 %2384
        %v2386 = vsel %vm646, %v2381, %v2383
        %v2387 = vsel %vm646, %v2383, %v2385
        %v2390 = vadd.f32 %v2347, %v2386
        %v2391 = vadd.f32 %v2348, %v2387
        %2395 = vrot.lane.b32.xlu0 %v2369, 112
        %v2396 = vpop.permute.xlu0 %2395
        %2397 = vrot.lane.b32.xlu0 %v2370, 112
        %v2398 = vpop.permute.xlu0 %2397
        %2399 = vrot.lane.b32.xlu0 %v2371, 112
        %v2400 = vpop.permute.xlu0 %2399
        %v2401 = vsel %vm646, %v2396, %v2398
        %v2402 = vsel %vm646, %v2398, %v2400
        %v2406 = vadd.f32 %v2354, %v2401
        %v2407 = vadd.f32 %v2355, %v2402
        %v2408 = vadd.f32 %v2356, %v2400
        %2412 = vrot.lane.b32.xlu0 %v2374, 112
        %v2413 = vpop.permute.xlu0 %2412
        %2414 = vrot.lane.b32.xlu0 %v2375, 112
        %v2415 = vpop.permute.xlu0 %2414
        %2416 = vrot.lane.b32.xlu0 %v2376, 112
        %v2417 = vpop.permute.xlu0 %2416
        %v2418 = vsel %vm646, %v2413, %v2415
        %v2419 = vsel %vm646, %v2415, %v2417
        %v2423 = vadd.f32 %v2359, %v2418
        %v2424 = vadd.f32 %v2360, %v2419
        %v2425 = vadd.f32 %v2361, %v2417
        %s2426 = sld [smem:[#allocation9 + $0x106]]
        %v2427 = vstv %s2426
        %v2428 = vmul.f32 %v2349, %v2427
        %v2429 = vmul.f32 %v2350, %v2427
        %v2430 = vmul.f32 %v2351, %v2427
        %s2431 = sld [smem:[#allocation9 + $0x107]]
        %v2432 = vstv %s2431
        %v2433 = vmul.f32 %v2349, %v2432
        %v2434 = vmul.f32 %v2350, %v2432
        %v2435 = vmul.f32 %v2351, %v2432
        %s2436 = sld [smem:[#allocation9 + $0x108]]
        %v2437 = vstv %s2436
        %v2438 = vmul.f32 %v2349, %v2437
        %v2439 = vmul.f32 %v2350, %v2437
        %v2440 = vmul.f32 %v2351, %v2437
        %2444 = vrot.lane.b32.xlu0 %v2428, 96
        %v2445 = vpop.permute.xlu0 %2444
        %2446 = vrot.lane.b32.xlu0 %v2429, 96
        %v2447 = vpop.permute.xlu0 %2446
        %2448 = vrot.lane.b32.xlu0 %v2430, 96
        %v2449 = vpop.permute.xlu0 %2448
        %v2450 = vsel %vm711, %v2445, %v2447
        %v2451 = vsel %vm711, %v2447, %v2449
        %v2454 = vadd.f32 %v2390, %v2450
        %v2455 = vadd.f32 %v2391, %v2451
        %2459 = vrot.lane.b32.xlu0 %v2433, 96
        %v2460 = vpop.permute.xlu0 %2459
        %2461 = vrot.lane.b32.xlu0 %v2434, 96
        %v2462 = vpop.permute.xlu0 %2461
        %2463 = vrot.lane.b32.xlu0 %v2435, 96
        %v2464 = vpop.permute.xlu0 %2463
        %v2465 = vsel %vm711, %v2460, %v2462
        %v2466 = vsel %vm711, %v2462, %v2464
        %v2470 = vadd.f32 %v2406, %v2465
        %v2471 = vadd.f32 %v2407, %v2466
        %v2472 = vadd.f32 %v2408, %v2464
        %2476 = vrot.lane.b32.xlu0 %v2438, 96
        %v2477 = vpop.permute.xlu0 %2476
        %2478 = vrot.lane.b32.xlu0 %v2439, 96
        %v2479 = vpop.permute.xlu0 %2478
        %2480 = vrot.lane.b32.xlu0 %v2440, 96
        %v2481 = vpop.permute.xlu0 %2480
        %v2482 = vsel %vm711, %v2477, %v2479
        %v2483 = vsel %vm711, %v2479, %v2481
        %v2487 = vadd.f32 %v2423, %v2482
        %v2488 = vadd.f32 %v2424, %v2483
        %v2489 = vadd.f32 %v2425, %v2481
        %v2490 = vld [vmem:[%s2342] sm:$0xfe]
        %v2491 = vld [vmem:[%s2342 + $0x8] sm:$0xfe]
        %v2492 = vld [vmem:[%s2342 + $0x18] sm:$0x1]
        %v2493 = vld [vmem:[%s2342 + $0x20] sm:$0x1]
        %s2494 = sld [smem:[#allocation9 + $0x109]]
        %v2495 = vstv %s2494
        %v2496 = vmul.f32 %v2490, %v2495
        %v2497 = vmul.f32 %v2491, %v2495
        %v2498 = vmul.f32 %v2492, %v2495
        %v2499 = vmul.f32 %v2493, %v2495
        %v2500 = vld [vmem:[%s2342] sm:$0xfe]
        %v2501 = vld [vmem:[%s2342 + $0x8] sm:$0xfe]
        %v2502 = vld [vmem:[%s2342 + $0x10] sm:$0xfe]
        %v2503 = vld [vmem:[%s2342 + $0x18] sm:$0x1]
        %v2504 = vld [vmem:[%s2342 + $0x20] sm:$0x1]
        %v2505 = vld [vmem:[%s2342 + $0x28] sm:$0x1]
        %s2506 = sld [smem:[#allocation9 + $0x10a]]
        %v2507 = vstv %s2506
        %v2508 = vmul.f32 %v2500, %v2507
        %v2509 = vmul.f32 %v2501, %v2507
        %v2510 = vmul.f32 %v2502, %v2507
        %v2511 = vmul.f32 %v2503, %v2507
        %v2512 = vmul.f32 %v2504, %v2507
        %v2513 = vmul.f32 %v2505, %v2507
        %s2514 = sld [smem:[#allocation9 + $0x10b]]
        %v2515 = vstv %s2514
        %v2516 = vmul.f32 %v2500, %v2515
        %v2517 = vmul.f32 %v2501, %v2515
        %v2518 = vmul.f32 %v2502, %v2515
        %v2519 = vmul.f32 %v2503, %v2515
        %v2520 = vmul.f32 %v2504, %v2515
        %v2521 = vmul.f32 %v2505, %v2515
        %v2526 = vrot.slane %v2496, 1
        %v2527 = vrot.slane %v2498, 1
        %v2528 = vsel %vm788, %v2526, %v2527
        %v2529 = vrot.slane %v2497, 1
        %v2530 = vrot.slane %v2499, 1
        %v2531 = vsel %vm788, %v2529, %v2530
        %v2534 = vadd.f32 %v2454, %v2528
        %v2535 = vadd.f32 %v2455, %v2531
        %v2542 = vrot.slane %v2508, 1
        %v2543 = vrot.slane %v2511, 1
        %v2544 = vsel %vm788, %v2542, %v2543
        %v2545 = vrot.slane %v2509, 1
        %v2546 = vrot.slane %v2512, 1
        %v2547 = vsel %vm788, %v2545, %v2546
        %v2548 = vrot.slane %v2510, 1
        %v2549 = vrot.slane %v2513, 1
        %v2550 = vsel %vm788, %v2548, %v2549
        %v2554 = vadd.f32 %v2470, %v2544
        %v2555 = vadd.f32 %v2471, %v2547
        %v2556 = vadd.f32 %v2472, %v2550
        %v2563 = vrot.slane %v2516, 1
        %v2564 = vrot.slane %v2519, 1
        %v2565 = vsel %vm788, %v2563, %v2564
        %v2566 = vrot.slane %v2517, 1
        %v2567 = vrot.slane %v2520, 1
        %v2568 = vsel %vm788, %v2566, %v2567
        %v2569 = vrot.slane %v2518, 1
        %v2570 = vrot.slane %v2521, 1
        %v2571 = vsel %vm788, %v2569, %v2570
        %v2575 = vadd.f32 %v2487, %v2565
        %v2576 = vadd.f32 %v2488, %v2568
        %v2577 = vadd.f32 %v2489, %v2571
        %s2578 = sld [smem:[#allocation9 + $0x10c]]
        %v2579 = vstv %s2578
        %v2580 = vmul.f32 %v2500, %v2579
        %v2581 = vmul.f32 %v2501, %v2579
        %v2582 = vmul.f32 %v2502, %v2579
        %v2583 = vmul.f32 %v2503, %v2579
        %v2584 = vmul.f32 %v2504, %v2579
        %v2585 = vmul.f32 %v2505, %v2579
        %s2586 = sld [smem:[#allocation9 + $0x10d]]
        %v2587 = vstv %s2586
        %v2588 = vmul.f32 %v2500, %v2587
        %v2589 = vmul.f32 %v2501, %v2587
        %v2590 = vmul.f32 %v2502, %v2587
        %v2591 = vmul.f32 %v2503, %v2587
        %v2592 = vmul.f32 %v2504, %v2587
        %v2593 = vmul.f32 %v2505, %v2587
        %s2594 = sld [smem:[#allocation9 + $0x10e]]
        %v2595 = vstv %s2594
        %v2596 = vmul.f32 %v2500, %v2595
        %v2597 = vmul.f32 %v2501, %v2595
        %v2598 = vmul.f32 %v2502, %v2595
        %v2599 = vmul.f32 %v2503, %v2595
        %v2600 = vmul.f32 %v2504, %v2595
        %v2601 = vmul.f32 %v2505, %v2595
        %v2608 = vrot.slane %v2580, 1
        %v2609 = vrot.slane %v2583, 1
        %v2610 = vsel %vm788, %v2608, %v2609
        %v2611 = vrot.slane %v2581, 1
        %v2612 = vrot.slane %v2584, 1
        %v2613 = vsel %vm788, %v2611, %v2612
        %v2614 = vrot.slane %v2582, 1
        %v2615 = vrot.slane %v2585, 1
        %v2616 = vsel %vm788, %v2614, %v2615
        %2617 = vrot.lane.b32.xlu0 %v2610, 112
        %v2618 = vpop.permute.xlu0 %2617
        %2619 = vrot.lane.b32.xlu0 %v2613, 112
        %v2620 = vpop.permute.xlu0 %2619
        %2621 = vrot.lane.b32.xlu0 %v2616, 112
        %v2622 = vpop.permute.xlu0 %2621
        %v2623 = vsel %vm646, %v2618, %v2620
        %v2624 = vsel %vm646, %v2620, %v2622
        %v2627 = vadd.f32 %v2534, %v2623
        %v2628 = vadd.f32 %v2535, %v2624
        %v2635 = vrot.slane %v2588, 1
        %v2636 = vrot.slane %v2591, 1
        %v2637 = vsel %vm788, %v2635, %v2636
        %v2638 = vrot.slane %v2589, 1
        %v2639 = vrot.slane %v2592, 1
        %v2640 = vsel %vm788, %v2638, %v2639
        %v2641 = vrot.slane %v2590, 1
        %v2642 = vrot.slane %v2593, 1
        %v2643 = vsel %vm788, %v2641, %v2642
        %2644 = vrot.lane.b32.xlu0 %v2637, 112
        %v2645 = vpop.permute.xlu0 %2644
        %2646 = vrot.lane.b32.xlu0 %v2640, 112
        %v2647 = vpop.permute.xlu0 %2646
        %2648 = vrot.lane.b32.xlu0 %v2643, 112
        %v2649 = vpop.permute.xlu0 %2648
        %v2650 = vsel %vm646, %v2645, %v2647
        %v2651 = vsel %vm646, %v2647, %v2649
        %v2655 = vadd.f32 %v2554, %v2650
        %v2656 = vadd.f32 %v2555, %v2651
        %v2657 = vadd.f32 %v2556, %v2649
        %v2664 = vrot.slane %v2596, 1
        %v2665 = vrot.slane %v2599, 1
        %v2666 = vsel %vm788, %v2664, %v2665
        %v2667 = vrot.slane %v2597, 1
        %v2668 = vrot.slane %v2600, 1
        %v2669 = vsel %vm788, %v2667, %v2668
        %v2670 = vrot.slane %v2598, 1
        %v2671 = vrot.slane %v2601, 1
        %v2672 = vsel %vm788, %v2670, %v2671
        %2673 = vrot.lane.b32.xlu0 %v2666, 112
        %v2674 = vpop.permute.xlu0 %2673
        %2675 = vrot.lane.b32.xlu0 %v2669, 112
        %v2676 = vpop.permute.xlu0 %2675
        %2677 = vrot.lane.b32.xlu0 %v2672, 112
        %v2678 = vpop.permute.xlu0 %2677
        %v2679 = vsel %vm646, %v2674, %v2676
        %v2680 = vsel %vm646, %v2676, %v2678
        %v2684 = vadd.f32 %v2575, %v2679
        %v2685 = vadd.f32 %v2576, %v2680
        %v2686 = vadd.f32 %v2577, %v2678
        %s2687 = sld [smem:[#allocation9 + $0x10f]]
        %v2688 = vstv %s2687
        %v2689 = vmul.f32 %v2500, %v2688
        %v2690 = vmul.f32 %v2501, %v2688
        %v2691 = vmul.f32 %v2502, %v2688
        %v2692 = vmul.f32 %v2503, %v2688
        %v2693 = vmul.f32 %v2504, %v2688
        %v2694 = vmul.f32 %v2505, %v2688
        %s2695 = sld [smem:[#allocation9 + $0x110]]
        %v2696 = vstv %s2695
        %v2697 = vmul.f32 %v2500, %v2696
        %v2698 = vmul.f32 %v2501, %v2696
        %v2699 = vmul.f32 %v2502, %v2696
        %v2700 = vmul.f32 %v2503, %v2696
        %v2701 = vmul.f32 %v2504, %v2696
        %v2702 = vmul.f32 %v2505, %v2696
        %s2703 = sld [smem:[#allocation9 + $0x111]]
        %v2704 = vstv %s2703
        %v2705 = vmul.f32 %v2500, %v2704
        %v2706 = vmul.f32 %v2501, %v2704
        %v2707 = vmul.f32 %v2502, %v2704
        %v2708 = vmul.f32 %v2503, %v2704
        %v2709 = vmul.f32 %v2504, %v2704
        %v2710 = vmul.f32 %v2505, %v2704
        %v2717 = vrot.slane %v2689, 1
        %v2718 = vrot.slane %v2692, 1
        %v2719 = vsel %vm788, %v2717, %v2718
        %v2720 = vrot.slane %v2690, 1
        %v2721 = vrot.slane %v2693, 1
        %v2722 = vsel %vm788, %v2720, %v2721
        %v2723 = vrot.slane %v2691, 1
        %v2724 = vrot.slane %v2694, 1
        %v2725 = vsel %vm788, %v2723, %v2724
        %2726 = vrot.lane.b32.xlu0 %v2719, 96
        %v2727 = vpop.permute.xlu0 %2726
        %2728 = vrot.lane.b32.xlu0 %v2722, 96
        %v2729 = vpop.permute.xlu0 %2728
        %2730 = vrot.lane.b32.xlu0 %v2725, 96
        %v2731 = vpop.permute.xlu0 %2730
        %v2732 = vsel %vm711, %v2727, %v2729
        %v2733 = vsel %vm711, %v2729, %v2731
        %v2736 = vadd.f32 %v2627, %v2732
        %v2737 = vadd.f32 %v2628, %v2733
        %v2744 = vrot.slane %v2697, 1
        %v2745 = vrot.slane %v2700, 1
        %v2746 = vsel %vm788, %v2744, %v2745
        %v2747 = vrot.slane %v2698, 1
        %v2748 = vrot.slane %v2701, 1
        %v2749 = vsel %vm788, %v2747, %v2748
        %v2750 = vrot.slane %v2699, 1
        %v2751 = vrot.slane %v2702, 1
        %v2752 = vsel %vm788, %v2750, %v2751
        %2753 = vrot.lane.b32.xlu0 %v2746, 96
        %v2754 = vpop.permute.xlu0 %2753
        %2755 = vrot.lane.b32.xlu0 %v2749, 96
        %v2756 = vpop.permute.xlu0 %2755
        %2757 = vrot.lane.b32.xlu0 %v2752, 96
        %v2758 = vpop.permute.xlu0 %2757
        %v2759 = vsel %vm711, %v2754, %v2756
        %v2760 = vsel %vm711, %v2756, %v2758
        %v2764 = vadd.f32 %v2655, %v2759
        %v2765 = vadd.f32 %v2656, %v2760
        %v2766 = vadd.f32 %v2657, %v2758
        %v2773 = vrot.slane %v2705, 1
        %v2774 = vrot.slane %v2708, 1
        %v2775 = vsel %vm788, %v2773, %v2774
        %v2776 = vrot.slane %v2706, 1
        %v2777 = vrot.slane %v2709, 1
        %v2778 = vsel %vm788, %v2776, %v2777
        %v2779 = vrot.slane %v2707, 1
        %v2780 = vrot.slane %v2710, 1
        %v2781 = vsel %vm788, %v2779, %v2780
        %2782 = vrot.lane.b32.xlu0 %v2775, 96
        %v2783 = vpop.permute.xlu0 %2782
        %2784 = vrot.lane.b32.xlu0 %v2778, 96
        %v2785 = vpop.permute.xlu0 %2784
        %2786 = vrot.lane.b32.xlu0 %v2781, 96
        %v2787 = vpop.permute.xlu0 %2786
        %v2788 = vsel %vm711, %v2783, %v2785
        %v2789 = vsel %vm711, %v2785, %v2787
        %v2793 = vadd.f32 %v2684, %v2788
        %v2794 = vadd.f32 %v2685, %v2789
        %v2795 = vadd.f32 %v2686, %v2787
        %v2796 = vld [vmem:[%s2342] sm:$0xfc]
        %v2797 = vld [vmem:[%s2342 + $0x8] sm:$0xfc]
        %v2798 = vld [vmem:[%s2342 + $0x18] sm:$0x3]
        %v2799 = vld [vmem:[%s2342 + $0x20] sm:$0x3]
        %s2800 = sld [smem:[#allocation9 + $0x112]]
        %v2801 = vstv %s2800
        %v2802 = vmul.f32 %v2796, %v2801
        %v2803 = vmul.f32 %v2797, %v2801
        %v2804 = vmul.f32 %v2798, %v2801
        %v2805 = vmul.f32 %v2799, %v2801
        %v2806 = vld [vmem:[%s2342] sm:$0xfc]
        %v2807 = vld [vmem:[%s2342 + $0x8] sm:$0xfc]
        %v2808 = vld [vmem:[%s2342 + $0x10] sm:$0xfc]
        %v2809 = vld [vmem:[%s2342 + $0x18] sm:$0x3]
        %v2810 = vld [vmem:[%s2342 + $0x20] sm:$0x3]
        %v2811 = vld [vmem:[%s2342 + $0x28] sm:$0x3]
        %s2812 = sld [smem:[#allocation9 + $0x113]]
        %v2813 = vstv %s2812
        %v2814 = vmul.f32 %v2806, %v2813
        %v2815 = vmul.f32 %v2807, %v2813
        %v2816 = vmul.f32 %v2808, %v2813
        %v2817 = vmul.f32 %v2809, %v2813
        %v2818 = vmul.f32 %v2810, %v2813
        %v2819 = vmul.f32 %v2811, %v2813
        %s2820 = sld [smem:[#allocation9 + $0x114]]
        %v2821 = vstv %s2820
        %v2822 = vmul.f32 %v2806, %v2821
        %v2823 = vmul.f32 %v2807, %v2821
        %v2824 = vmul.f32 %v2808, %v2821
        %v2825 = vmul.f32 %v2809, %v2821
        %v2826 = vmul.f32 %v2810, %v2821
        %v2827 = vmul.f32 %v2811, %v2821
        %v2832 = vrot.slane %v2802, 2
        %v2833 = vrot.slane %v2804, 2
        %v2834 = vsel %vm1095, %v2832, %v2833
        %v2835 = vrot.slane %v2803, 2
        %v2836 = vrot.slane %v2805, 2
        %v2837 = vsel %vm1095, %v2835, %v2836
        %v2840 = vadd.f32 %v2736, %v2834
        %v2841 = vadd.f32 %v2737, %v2837
        %v2848 = vrot.slane %v2814, 2
        %v2849 = vrot.slane %v2817, 2
        %v2850 = vsel %vm1095, %v2848, %v2849
        %v2851 = vrot.slane %v2815, 2
        %v2852 = vrot.slane %v2818, 2
        %v2853 = vsel %vm1095, %v2851, %v2852
        %v2854 = vrot.slane %v2816, 2
        %v2855 = vrot.slane %v2819, 2
        %v2856 = vsel %vm1095, %v2854, %v2855
        %v2860 = vadd.f32 %v2764, %v2850
        %v2861 = vadd.f32 %v2765, %v2853
        %v2862 = vadd.f32 %v2766, %v2856
        %v2869 = vrot.slane %v2822, 2
        %v2870 = vrot.slane %v2825, 2
        %v2871 = vsel %vm1095, %v2869, %v2870
        %v2872 = vrot.slane %v2823, 2
        %v2873 = vrot.slane %v2826, 2
        %v2874 = vsel %vm1095, %v2872, %v2873
        %v2875 = vrot.slane %v2824, 2
        %v2876 = vrot.slane %v2827, 2
        %v2877 = vsel %vm1095, %v2875, %v2876
        %v2881 = vadd.f32 %v2793, %v2871
        %v2882 = vadd.f32 %v2794, %v2874
        %v2883 = vadd.f32 %v2795, %v2877
        %s2884 = sld [smem:[#allocation9 + $0x115]]
        %v2885 = vstv %s2884
        %v2886 = vmul.f32 %v2806, %v2885
        %v2887 = vmul.f32 %v2807, %v2885
        %v2888 = vmul.f32 %v2808, %v2885
        %v2889 = vmul.f32 %v2809, %v2885
        %v2890 = vmul.f32 %v2810, %v2885
        %v2891 = vmul.f32 %v2811, %v2885
        %s2892 = sld [smem:[#allocation9 + $0x116]]
        %v2893 = vstv %s2892
        %v2894 = vmul.f32 %v2806, %v2893
        %v2895 = vmul.f32 %v2807, %v2893
        %v2896 = vmul.f32 %v2808, %v2893
        %v2897 = vmul.f32 %v2809, %v2893
        %v2898 = vmul.f32 %v2810, %v2893
        %v2899 = vmul.f32 %v2811, %v2893
        %s2900 = sld [smem:[#allocation9 + $0x117]]
        %v2901 = vstv %s2900
        %v2902 = vmul.f32 %v2806, %v2901
        %v2903 = vmul.f32 %v2807, %v2901
        %v2904 = vmul.f32 %v2808, %v2901
        %v2905 = vmul.f32 %v2809, %v2901
        %v2906 = vmul.f32 %v2810, %v2901
        %v2907 = vmul.f32 %v2811, %v2901
        %v2914 = vrot.slane %v2886, 2
        %v2915 = vrot.slane %v2889, 2
        %v2916 = vsel %vm1095, %v2914, %v2915
        %v2917 = vrot.slane %v2887, 2
        %v2918 = vrot.slane %v2890, 2
        %v2919 = vsel %vm1095, %v2917, %v2918
        %v2920 = vrot.slane %v2888, 2
        %v2921 = vrot.slane %v2891, 2
        %v2922 = vsel %vm1095, %v2920, %v2921
        %2923 = vrot.lane.b32.xlu0 %v2916, 112
        %v2924 = vpop.permute.xlu0 %2923
        %2925 = vrot.lane.b32.xlu0 %v2919, 112
        %v2926 = vpop.permute.xlu0 %2925
        %2927 = vrot.lane.b32.xlu0 %v2922, 112
        %v2928 = vpop.permute.xlu0 %2927
        %v2929 = vsel %vm646, %v2924, %v2926
        %v2930 = vsel %vm646, %v2926, %v2928
        %v2933 = vadd.f32 %v2840, %v2929
        %v2934 = vadd.f32 %v2841, %v2930
        %v2941 = vrot.slane %v2894, 2
        %v2942 = vrot.slane %v2897, 2
        %v2943 = vsel %vm1095, %v2941, %v2942
        %v2944 = vrot.slane %v2895, 2
        %v2945 = vrot.slane %v2898, 2
        %v2946 = vsel %vm1095, %v2944, %v2945
        %v2947 = vrot.slane %v2896, 2
        %v2948 = vrot.slane %v2899, 2
        %v2949 = vsel %vm1095, %v2947, %v2948
        %2950 = vrot.lane.b32.xlu0 %v2943, 112
        %v2951 = vpop.permute.xlu0 %2950
        %2952 = vrot.lane.b32.xlu0 %v2946, 112
        %v2953 = vpop.permute.xlu0 %2952
        %2954 = vrot.lane.b32.xlu0 %v2949, 112
        %v2955 = vpop.permute.xlu0 %2954
        %v2956 = vsel %vm646, %v2951, %v2953
        %v2957 = vsel %vm646, %v2953, %v2955
        %v2961 = vadd.f32 %v2860, %v2956
        %v2962 = vadd.f32 %v2861, %v2957
        %v2963 = vadd.f32 %v2862, %v2955
        %v2970 = vrot.slane %v2902, 2
        %v2971 = vrot.slane %v2905, 2
        %v2972 = vsel %vm1095, %v2970, %v2971
        %v2973 = vrot.slane %v2903, 2
        %v2974 = vrot.slane %v2906, 2
        %v2975 = vsel %vm1095, %v2973, %v2974
        %v2976 = vrot.slane %v2904, 2
        %v2977 = vrot.slane %v2907, 2
        %v2978 = vsel %vm1095, %v2976, %v2977
        %2979 = vrot.lane.b32.xlu0 %v2972, 112
        %v2980 = vpop.permute.xlu0 %2979
        %2981 = vrot.lane.b32.xlu0 %v2975, 112
        %v2982 = vpop.permute.xlu0 %2981
        %2983 = vrot.lane.b32.xlu0 %v2978, 112
        %v2984 = vpop.permute.xlu0 %2983
        %v2985 = vsel %vm646, %v2980, %v2982
        %v2986 = vsel %vm646, %v2982, %v2984
        %v2990 = vadd.f32 %v2881, %v2985
        %v2991 = vadd.f32 %v2882, %v2986
        %v2992 = vadd.f32 %v2883, %v2984
        %s2993 = sld [smem:[#allocation9 + $0x118]]
        %v2994 = vstv %s2993
        %v2995 = vmul.f32 %v2806, %v2994
        %v2996 = vmul.f32 %v2807, %v2994
        %v2997 = vmul.f32 %v2808, %v2994
        %v2998 = vmul.f32 %v2809, %v2994
        %v2999 = vmul.f32 %v2810, %v2994
        %v3000 = vmul.f32 %v2811, %v2994
        %s3001 = sld [smem:[#allocation9 + $0x119]]
        %v3002 = vstv %s3001
        %v3003 = vmul.f32 %v2806, %v3002
        %v3004 = vmul.f32 %v2807, %v3002
        %v3005 = vmul.f32 %v2808, %v3002
        %v3006 = vmul.f32 %v2809, %v3002
        %v3007 = vmul.f32 %v2810, %v3002
        %v3008 = vmul.f32 %v2811, %v3002
        %s3009 = sld [smem:[#allocation9 + $0x11a]]
        %v3010 = vstv %s3009
        %v3011 = vmul.f32 %v2806, %v3010
        %v3012 = vmul.f32 %v2807, %v3010
        %v3013 = vmul.f32 %v2808, %v3010
        %v3014 = vmul.f32 %v2809, %v3010
        %v3015 = vmul.f32 %v2810, %v3010
        %v3016 = vmul.f32 %v2811, %v3010
        %v3023 = vrot.slane %v2995, 2
        %v3024 = vrot.slane %v2998, 2
        %v3025 = vsel %vm1095, %v3023, %v3024
        %v3026 = vrot.slane %v2996, 2
        %v3027 = vrot.slane %v2999, 2
        %v3028 = vsel %vm1095, %v3026, %v3027
        %v3029 = vrot.slane %v2997, 2
        %v3030 = vrot.slane %v3000, 2
        %v3031 = vsel %vm1095, %v3029, %v3030
        %3032 = vrot.lane.b32.xlu0 %v3025, 96
        %v3033 = vpop.permute.xlu0 %3032
        %3034 = vrot.lane.b32.xlu0 %v3028, 96
        %v3035 = vpop.permute.xlu0 %3034
        %3036 = vrot.lane.b32.xlu0 %v3031, 96
        %v3037 = vpop.permute.xlu0 %3036
        %v3038 = vsel %vm711, %v3033, %v3035
        %v3039 = vsel %vm711, %v3035, %v3037
        %v3042 = vadd.f32 %v2933, %v3038
        %v3043 = vadd.f32 %v2934, %v3039
        %v3050 = vrot.slane %v3003, 2
        %v3051 = vrot.slane %v3006, 2
        %v3052 = vsel %vm1095, %v3050, %v3051
        %v3053 = vrot.slane %v3004, 2
        %v3054 = vrot.slane %v3007, 2
        %v3055 = vsel %vm1095, %v3053, %v3054
        %v3056 = vrot.slane %v3005, 2
        %v3057 = vrot.slane %v3008, 2
        %v3058 = vsel %vm1095, %v3056, %v3057
        %3059 = vrot.lane.b32.xlu0 %v3052, 96
        %v3060 = vpop.permute.xlu0 %3059
        %3061 = vrot.lane.b32.xlu0 %v3055, 96
        %v3062 = vpop.permute.xlu0 %3061
        %3063 = vrot.lane.b32.xlu0 %v3058, 96
        %v3064 = vpop.permute.xlu0 %3063
        %v3065 = vsel %vm711, %v3060, %v3062
        %v3066 = vsel %vm711, %v3062, %v3064
        %v3070 = vadd.f32 %v2961, %v3065
        %v3071 = vadd.f32 %v2962, %v3066
        %v3072 = vadd.f32 %v2963, %v3064
        %v3079 = vrot.slane %v3011, 2
        %v3080 = vrot.slane %v3014, 2
        %v3081 = vsel %vm1095, %v3079, %v3080
        %v3082 = vrot.slane %v3012, 2
        %v3083 = vrot.slane %v3015, 2
        %v3084 = vsel %vm1095, %v3082, %v3083
        %v3085 = vrot.slane %v3013, 2
        %v3086 = vrot.slane %v3016, 2
        %v3087 = vsel %vm1095, %v3085, %v3086
        %3088 = vrot.lane.b32.xlu0 %v3081, 96
        %v3089 = vpop.permute.xlu0 %3088
        %3090 = vrot.lane.b32.xlu0 %v3084, 96
        %v3091 = vpop.permute.xlu0 %3090
        %3092 = vrot.lane.b32.xlu0 %v3087, 96
        %v3093 = vpop.permute.xlu0 %3092
        %v3094 = vsel %vm711, %v3089, %v3091
        %v3095 = vsel %vm711, %v3091, %v3093
        %v3099 = vadd.f32 %v2990, %v3094
        %v3100 = vadd.f32 %v2991, %v3095
        %v3101 = vadd.f32 %v2992, %v3093
        %v3102 = vmul.f32 %v567, %v3042
        %v3103 = vmul.f32 %v571, %v3043
        %3106 = vrot.lane.b32.xlu0 %v3102, 1
        %v3107 = vpop.permute.xlu0 %3106
        %3108 = vrot.lane.b32.xlu0 %v3103, 1
        %v3109 = vpop.permute.xlu0 %3108
        %v3110 = vsel %vm1374, %v3107, %v3109
        %v3114 = vadd.f32 %v3070, %v3107
        %v3115 = vadd.f32 %v3071, %v3110
        %v3116 = vadd.f32 %v3072, %v3109
        %3120 = vrot.lane.b32.xlu0 %v3099, 126
        %v3121 = vpop.permute.xlu0 %3120
        %3122 = vrot.lane.b32.xlu0 %v3100, 126
        %v3123 = vpop.permute.xlu0 %3122
        %3124 = vrot.lane.b32.xlu0 %v3101, 126
        %v3125 = vpop.permute.xlu0 %3124
        %v3126 = vsel %vm1391, %v3121, %v3123
        %v3127 = vsel %vm1391, %v3123, %v3125
        %v3130 = vmul.f32 %v580, %v3126
        %v3131 = vmul.f32 %v584, %v3127
        %3134 = vrot.lane.b32.xlu0 %v3130, 1
        %v3135 = vpop.permute.xlu0 %3134
        %3136 = vrot.lane.b32.xlu0 %v3131, 1
        %v3137 = vpop.permute.xlu0 %3136
        %v3138 = vsel %vm1374, %v3135, %v3137
        %v3142 = vadd.f32 %v3114, %v3135
        %v3143 = vadd.f32 %v3115, %v3138
        %v3144 = vadd.f32 %v3116, %v3137
        %s3145 = sld [smem:[#allocation10 + $0x100]]
        %v3146 = vstv %s3145
        %v3147 = vmul.f32 %v3142, %v3146
        %v3148 = vmul.f32 %v3143, %v3146
        %v3149 = vmul.f32 %v3144, %v3146
        %v3150 = vadd.f32 %v2283, %v3147
        %v3151 = vadd.f32 %v2284, %v3148
        %v3152 = vadd.f32 %v2285, %v3149
        %s3153 = sld [smem:[#allocation10 + $0x101]]
        %v3154 = vstv %s3153
        %v3155 = vmul.f32 %v3142, %v3154
        %v3156 = vmul.f32 %v3143, %v3154
        %v3157 = vmul.f32 %v3144, %v3154
        %v3158 = vadd.f32 %v2291, %v3155
        %v3159 = vadd.f32 %v2292, %v3156
        %v3160 = vadd.f32 %v2293, %v3157
        %s3161 = sld [smem:[#allocation10 + $0x102]]
        %v3162 = vstv %s3161
        %v3163 = vmul.f32 %v3142, %v3162
        %v3164 = vmul.f32 %v3143, %v3162
        %v3165 = vmul.f32 %v3144, %v3162
        %v3166 = vadd.f32 %v2299, %v3163
        %v3167 = vadd.f32 %v2300, %v3164
        %v3168 = vadd.f32 %v2301, %v3165
        %s3169 = sld [smem:[#allocation10 + $0x103]]
        %v3170 = vstv %s3169
        %v3171 = vmul.f32 %v3142, %v3170
        %v3172 = vmul.f32 %v3143, %v3170
        %v3173 = vmul.f32 %v3144, %v3170
        %v3174 = vadd.f32 %v2307, %v3171
        %v3175 = vadd.f32 %v2308, %v3172
        %v3176 = vadd.f32 %v2309, %v3173
        %s3177 = sld [smem:[#allocation10 + $0x104]]
        %v3178 = vstv %s3177
        %v3179 = vmul.f32 %v3142, %v3178
        %v3180 = vmul.f32 %v3143, %v3178
        %v3181 = vmul.f32 %v3144, %v3178
        %v3182 = vadd.f32 %v2315, %v3179
        %v3183 = vadd.f32 %v2316, %v3180
        %v3184 = vadd.f32 %v2317, %v3181
        %s3185 = sld [smem:[#allocation10 + $0x105]]
        %v3186 = vstv %s3185
        %v3187 = vmul.f32 %v3142, %v3186
        %v3188 = vmul.f32 %v3143, %v3186
        %v3189 = vmul.f32 %v3144, %v3186
        %v3190 = vadd.f32 %v2323, %v3187
        %v3191 = vadd.f32 %v2324, %v3188
        %v3192 = vadd.f32 %v2325, %v3189
        %s3193 = sld [smem:[#allocation10 + $0x106]]
        %v3194 = vstv %s3193
        %v3195 = vmul.f32 %v3142, %v3194
        %v3196 = vmul.f32 %v3143, %v3194
        %v3197 = vmul.f32 %v3144, %v3194
        %v3198 = vadd.f32 %v2331, %v3195
        %v3199 = vadd.f32 %v2332, %v3196
        %v3200 = vadd.f32 %v2333, %v3197
        %s3201 = sld [smem:[#allocation10 + $0x107]]
        %v3202 = vstv %s3201
        %v3203 = vmul.f32 %v3142, %v3202
        %v3204 = vmul.f32 %v3143, %v3202
        %v3205 = vmul.f32 %v3144, %v3202
        %v3206 = vadd.f32 %v2339, %v3203
        %v3207 = vadd.f32 %v2340, %v3204
        %v3208 = vadd.f32 %v2341, %v3205
        %s3209 = scalar_lea.vmem [#allocation2], 144
        %v3210 = vld [vmem:[%s3209] sm:$0xff]
        %v3211 = vld [vmem:[%s3209 + $0x8] sm:$0xff]
        %s3212 = sld [smem:[#allocation9 + $0x180]]
        %v3213 = vstv %s3212
        %v3214 = vmul.f32 %v3210, %v3213
        %v3215 = vmul.f32 %v3211, %v3213
        %v3216 = vld [vmem:[%s3209] sm:$0xff]
        %v3217 = vld [vmem:[%s3209 + $0x8] sm:$0xff]
        %v3218 = vld [vmem:[%s3209 + $0x10] sm:$0xff]
        %s3219 = sld [smem:[#allocation9 + $0x181]]
        %v3220 = vstv %s3219
        %v3221 = vmul.f32 %v3216, %v3220
        %v3222 = vmul.f32 %v3217, %v3220
        %v3223 = vmul.f32 %v3218, %v3220
        %s3224 = sld [smem:[#allocation9 + $0x182]]
        %v3225 = vstv %s3224
        %v3226 = vmul.f32 %v3216, %v3225
        %v3227 = vmul.f32 %v3217, %v3225
        %v3228 = vmul.f32 %v3218, %v3225
        %s3229 = sld [smem:[#allocation9 + $0x183]]
        %v3230 = vstv %s3229
        %v3231 = vmul.f32 %v3216, %v3230
        %v3232 = vmul.f32 %v3217, %v3230
        %v3233 = vmul.f32 %v3218, %v3230
        %s3234 = sld [smem:[#allocation9 + $0x184]]
        %v3235 = vstv %s3234
        %v3236 = vmul.f32 %v3216, %v3235
        %v3237 = vmul.f32 %v3217, %v3235
        %v3238 = vmul.f32 %v3218, %v3235
        %s3239 = sld [smem:[#allocation9 + $0x185]]
        %v3240 = vstv %s3239
        %v3241 = vmul.f32 %v3216, %v3240
        %v3242 = vmul.f32 %v3217, %v3240
        %v3243 = vmul.f32 %v3218, %v3240
        %3247 = vrot.lane.b32.xlu0 %v3231, 112
        %v3248 = vpop.permute.xlu0 %3247
        %3249 = vrot.lane.b32.xlu0 %v3232, 112
        %v3250 = vpop.permute.xlu0 %3249
        %3251 = vrot.lane.b32.xlu0 %v3233, 112
        %v3252 = vpop.permute.xlu0 %3251
        %v3253 = vsel %vm646, %v3248, %v3250
        %v3254 = vsel %vm646, %v3250, %v3252
        %v3257 = vadd.f32 %v3214, %v3253
        %v3258 = vadd.f32 %v3215, %v3254
        %3262 = vrot.lane.b32.xlu0 %v3236, 112
        %v3263 = vpop.permute.xlu0 %3262
        %3264 = vrot.lane.b32.xlu0 %v3237, 112
        %v3265 = vpop.permute.xlu0 %3264
        %3266 = vrot.lane.b32.xlu0 %v3238, 112
        %v3267 = vpop.permute.xlu0 %3266
        %v3268 = vsel %vm646, %v3263, %v3265
        %v3269 = vsel %vm646, %v3265, %v3267
        %v3273 = vadd.f32 %v3221, %v3268
        %v3274 = vadd.f32 %v3222, %v3269
        %v3275 = vadd.f32 %v3223, %v3267
        %3279 = vrot.lane.b32.xlu0 %v3241, 112
        %v3280 = vpop.permute.xlu0 %3279
        %3281 = vrot.lane.b32.xlu0 %v3242, 112
        %v3282 = vpop.permute.xlu0 %3281
        %3283 = vrot.lane.b32.xlu0 %v3243, 112
        %v3284 = vpop.permute.xlu0 %3283
        %v3285 = vsel %vm646, %v3280, %v3282
        %v3286 = vsel %vm646, %v3282, %v3284
        %v3290 = vadd.f32 %v3226, %v3285
        %v3291 = vadd.f32 %v3227, %v3286
        %v3292 = vadd.f32 %v3228, %v3284
        %s3293 = sld [smem:[#allocation9 + $0x186]]
        %v3294 = vstv %s3293
        %v3295 = vmul.f32 %v3216, %v3294
        %v3296 = vmul.f32 %v3217, %v3294
        %v3297 = vmul.f32 %v3218, %v3294
        %s3298 = sld [smem:[#allocation9 + $0x187]]
        %v3299 = vstv %s3298
        %v3300 = vmul.f32 %v3216, %v3299
        %v3301 = vmul.f32 %v3217, %v3299
        %v3302 = vmul.f32 %v3218, %v3299
        %s3303 = sld [smem:[#allocation9 + $0x188]]
        %v3304 = vstv %s3303
        %v3305 = vmul.f32 %v3216, %v3304
        %v3306 = vmul.f32 %v3217, %v3304
        %v3307 = vmul.f32 %v3218, %v3304
        %3311 = vrot.lane.b32.xlu0 %v3295, 96
        %v3312 = vpop.permute.xlu0 %3311
        %3313 = vrot.lane.b32.xlu0 %v3296, 96
        %v3314 = vpop.permute.xlu0 %3313
        %3315 = vrot.lane.b32.xlu0 %v3297, 96
        %v3316 = vpop.permute.xlu0 %3315
        %v3317 = vsel %vm711, %v3312, %v3314
        %v3318 = vsel %vm711, %v3314, %v3316
        %v3321 = vadd.f32 %v3257, %v3317
        %v3322 = vadd.f32 %v3258, %v3318
        %3326 = vrot.lane.b32.xlu0 %v3300, 96
        %v3327 = vpop.permute.xlu0 %3326
        %3328 = vrot.lane.b32.xlu0 %v3301, 96
        %v3329 = vpop.permute.xlu0 %3328
        %3330 = vrot.lane.b32.xlu0 %v3302, 96
        %v3331 = vpop.permute.xlu0 %3330
        %v3332 = vsel %vm711, %v3327, %v3329
        %v3333 = vsel %vm711, %v3329, %v3331
        %v3337 = vadd.f32 %v3273, %v3332
        %v3338 = vadd.f32 %v3274, %v3333
        %v3339 = vadd.f32 %v3275, %v3331
        %3343 = vrot.lane.b32.xlu0 %v3305, 96
        %v3344 = vpop.permute.xlu0 %3343
        %3345 = vrot.lane.b32.xlu0 %v3306, 96
        %v3346 = vpop.permute.xlu0 %3345
        %3347 = vrot.lane.b32.xlu0 %v3307, 96
        %v3348 = vpop.permute.xlu0 %3347
        %v3349 = vsel %vm711, %v3344, %v3346
        %v3350 = vsel %vm711, %v3346, %v3348
        %v3354 = vadd.f32 %v3290, %v3349
        %v3355 = vadd.f32 %v3291, %v3350
        %v3356 = vadd.f32 %v3292, %v3348
        %v3357 = vld [vmem:[%s3209] sm:$0xfe]
        %v3358 = vld [vmem:[%s3209 + $0x8] sm:$0xfe]
        %v3359 = vld [vmem:[%s3209 + $0x18] sm:$0x1]
        %v3360 = vld [vmem:[%s3209 + $0x20] sm:$0x1]
        %s3361 = sld [smem:[#allocation9 + $0x189]]
        %v3362 = vstv %s3361
        %v3363 = vmul.f32 %v3357, %v3362
        %v3364 = vmul.f32 %v3358, %v3362
        %v3365 = vmul.f32 %v3359, %v3362
        %v3366 = vmul.f32 %v3360, %v3362
        %v3367 = vld [vmem:[%s3209] sm:$0xfe]
        %v3368 = vld [vmem:[%s3209 + $0x8] sm:$0xfe]
        %v3369 = vld [vmem:[%s3209 + $0x10] sm:$0xfe]
        %v3370 = vld [vmem:[%s3209 + $0x18] sm:$0x1]
        %v3371 = vld [vmem:[%s3209 + $0x20] sm:$0x1]
        %v3372 = vld [vmem:[%s3209 + $0x28] sm:$0x1]
        %s3373 = sld [smem:[#allocation9 + $0x18a]]
        %v3374 = vstv %s3373
        %v3375 = vmul.f32 %v3367, %v3374
        %v3376 = vmul.f32 %v3368, %v3374
        %v3377 = vmul.f32 %v3369, %v3374
        %v3378 = vmul.f32 %v3370, %v3374
        %v3379 = vmul.f32 %v3371, %v3374
        %v3380 = vmul.f32 %v3372, %v3374
        %s3381 = sld [smem:[#allocation9 + $0x18b]]
        %v3382 = vstv %s3381
        %v3383 = vmul.f32 %v3367, %v3382
        %v3384 = vmul.f32 %v3368, %v3382
        %v3385 = vmul.f32 %v3369, %v3382
        %v3386 = vmul.f32 %v3370, %v3382
        %v3387 = vmul.f32 %v3371, %v3382
        %v3388 = vmul.f32 %v3372, %v3382
        %v3393 = vrot.slane %v3363, 1
        %v3394 = vrot.slane %v3365, 1
        %v3395 = vsel %vm788, %v3393, %v3394
        %v3396 = vrot.slane %v3364, 1
        %v3397 = vrot.slane %v3366, 1
        %v3398 = vsel %vm788, %v3396, %v3397
        %v3401 = vadd.f32 %v3321, %v3395
        %v3402 = vadd.f32 %v3322, %v3398
        %v3409 = vrot.slane %v3375, 1
        %v3410 = vrot.slane %v3378, 1
        %v3411 = vsel %vm788, %v3409, %v3410
        %v3412 = vrot.slane %v3376, 1
        %v3413 = vrot.slane %v3379, 1
        %v3414 = vsel %vm788, %v3412, %v3413
        %v3415 = vrot.slane %v3377, 1
        %v3416 = vrot.slane %v3380, 1
        %v3417 = vsel %vm788, %v3415, %v3416
        %v3421 = vadd.f32 %v3337, %v3411
        %v3422 = vadd.f32 %v3338, %v3414
        %v3423 = vadd.f32 %v3339, %v3417
        %v3430 = vrot.slane %v3383, 1
        %v3431 = vrot.slane %v3386, 1
        %v3432 = vsel %vm788, %v3430, %v3431
        %v3433 = vrot.slane %v3384, 1
        %v3434 = vrot.slane %v3387, 1
        %v3435 = vsel %vm788, %v3433, %v3434
        %v3436 = vrot.slane %v3385, 1
        %v3437 = vrot.slane %v3388, 1
        %v3438 = vsel %vm788, %v3436, %v3437
        %v3442 = vadd.f32 %v3354, %v3432
        %v3443 = vadd.f32 %v3355, %v3435
        %v3444 = vadd.f32 %v3356, %v3438
        %s3445 = sld [smem:[#allocation9 + $0x18c]]
        %v3446 = vstv %s3445
        %v3447 = vmul.f32 %v3367, %v3446
        %v3448 = vmul.f32 %v3368, %v3446
        %v3449 = vmul.f32 %v3369, %v3446
        %v3450 = vmul.f32 %v3370, %v3446
        %v3451 = vmul.f32 %v3371, %v3446
        %v3452 = vmul.f32 %v3372, %v3446
        %s3453 = sld [smem:[#allocation9 + $0x18d]]
        %v3454 = vstv %s3453
        %v3455 = vmul.f32 %v3367, %v3454
        %v3456 = vmul.f32 %v3368, %v3454
        %v3457 = vmul.f32 %v3369, %v3454
        %v3458 = vmul.f32 %v3370, %v3454
        %v3459 = vmul.f32 %v3371, %v3454
        %v3460 = vmul.f32 %v3372, %v3454
        %s3461 = sld [smem:[#allocation9 + $0x18e]]
        %v3462 = vstv %s3461
        %v3463 = vmul.f32 %v3367, %v3462
        %v3464 = vmul.f32 %v3368, %v3462
        %v3465 = vmul.f32 %v3369, %v3462
        %v3466 = vmul.f32 %v3370, %v3462
        %v3467 = vmul.f32 %v3371, %v3462
        %v3468 = vmul.f32 %v3372, %v3462
        %v3475 = vrot.slane %v3447, 1
        %v3476 = vrot.slane %v3450, 1
        %v3477 = vsel %vm788, %v3475, %v3476
        %v3478 = vrot.slane %v3448, 1
        %v3479 = vrot.slane %v3451, 1
        %v3480 = vsel %vm788, %v3478, %v3479
        %v3481 = vrot.slane %v3449, 1
        %v3482 = vrot.slane %v3452, 1
        %v3483 = vsel %vm788, %v3481, %v3482
        %3484 = vrot.lane.b32.xlu0 %v3477, 112
        %v3485 = vpop.permute.xlu0 %3484
        %3486 = vrot.lane.b32.xlu0 %v3480, 112
        %v3487 = vpop.permute.xlu0 %3486
        %3488 = vrot.lane.b32.xlu0 %v3483, 112
        %v3489 = vpop.permute.xlu0 %3488
        %v3490 = vsel %vm646, %v3485, %v3487
        %v3491 = vsel %vm646, %v3487, %v3489
        %v3494 = vadd.f32 %v3401, %v3490
        %v3495 = vadd.f32 %v3402, %v3491
        %v3502 = vrot.slane %v3455, 1
        %v3503 = vrot.slane %v3458, 1
        %v3504 = vsel %vm788, %v3502, %v3503
        %v3505 = vrot.slane %v3456, 1
        %v3506 = vrot.slane %v3459, 1
        %v3507 = vsel %vm788, %v3505, %v3506
        %v3508 = vrot.slane %v3457, 1
        %v3509 = vrot.slane %v3460, 1
        %v3510 = vsel %vm788, %v3508, %v3509
        %3511 = vrot.lane.b32.xlu0 %v3504, 112
        %v3512 = vpop.permute.xlu0 %3511
        %3513 = vrot.lane.b32.xlu0 %v3507, 112
        %v3514 = vpop.permute.xlu0 %3513
        %3515 = vrot.lane.b32.xlu0 %v3510, 112
        %v3516 = vpop.permute.xlu0 %3515
        %v3517 = vsel %vm646, %v3512, %v3514
        %v3518 = vsel %vm646, %v3514, %v3516
        %v3522 = vadd.f32 %v3421, %v3517
        %v3523 = vadd.f32 %v3422, %v3518
        %v3524 = vadd.f32 %v3423, %v3516
        %v3531 = vrot.slane %v3463, 1
        %v3532 = vrot.slane %v3466, 1
        %v3533 = vsel %vm788, %v3531, %v3532
        %v3534 = vrot.slane %v3464, 1
        %v3535 = vrot.slane %v3467, 1
        %v3536 = vsel %vm788, %v3534, %v3535
        %v3537 = vrot.slane %v3465, 1
        %v3538 = vrot.slane %v3468, 1
        %v3539 = vsel %vm788, %v3537, %v3538
        %3540 = vrot.lane.b32.xlu0 %v3533, 112
        %v3541 = vpop.permute.xlu0 %3540
        %3542 = vrot.lane.b32.xlu0 %v3536, 112
        %v3543 = vpop.permute.xlu0 %3542
        %3544 = vrot.lane.b32.xlu0 %v3539, 112
        %v3545 = vpop.permute.xlu0 %3544
        %v3546 = vsel %vm646, %v3541, %v3543
        %v3547 = vsel %vm646, %v3543, %v3545
        %v3551 = vadd.f32 %v3442, %v3546
        %v3552 = vadd.f32 %v3443, %v3547
        %v3553 = vadd.f32 %v3444, %v3545
        %s3554 = sld [smem:[#allocation9 + $0x18f]]
        %v3555 = vstv %s3554
        %v3556 = vmul.f32 %v3367, %v3555
        %v3557 = vmul.f32 %v3368, %v3555
        %v3558 = vmul.f32 %v3369, %v3555
        %v3559 = vmul.f32 %v3370, %v3555
        %v3560 = vmul.f32 %v3371, %v3555
        %v3561 = vmul.f32 %v3372, %v3555
        %s3562 = sld [smem:[#allocation9 + $0x190]]
        %v3563 = vstv %s3562
        %v3564 = vmul.f32 %v3367, %v3563
        %v3565 = vmul.f32 %v3368, %v3563
        %v3566 = vmul.f32 %v3369, %v3563
        %v3567 = vmul.f32 %v3370, %v3563
        %v3568 = vmul.f32 %v3371, %v3563
        %v3569 = vmul.f32 %v3372, %v3563
        %s3570 = sld [smem:[#allocation9 + $0x191]]
        %v3571 = vstv %s3570
        %v3572 = vmul.f32 %v3367, %v3571
        %v3573 = vmul.f32 %v3368, %v3571
        %v3574 = vmul.f32 %v3369, %v3571
        %v3575 = vmul.f32 %v3370, %v3571
        %v3576 = vmul.f32 %v3371, %v3571
        %v3577 = vmul.f32 %v3372, %v3571
        %v3584 = vrot.slane %v3556, 1
        %v3585 = vrot.slane %v3559, 1
        %v3586 = vsel %vm788, %v3584, %v3585
        %v3587 = vrot.slane %v3557, 1
        %v3588 = vrot.slane %v3560, 1
        %v3589 = vsel %vm788, %v3587, %v3588
        %v3590 = vrot.slane %v3558, 1
        %v3591 = vrot.slane %v3561, 1
        %v3592 = vsel %vm788, %v3590, %v3591
        %3593 = vrot.lane.b32.xlu0 %v3586, 96
        %v3594 = vpop.permute.xlu0 %3593
        %3595 = vrot.lane.b32.xlu0 %v3589, 96
        %v3596 = vpop.permute.xlu0 %3595
        %3597 = vrot.lane.b32.xlu0 %v3592, 96
        %v3598 = vpop.permute.xlu0 %3597
        %v3599 = vsel %vm711, %v3594, %v3596
        %v3600 = vsel %vm711, %v3596, %v3598
        %v3603 = vadd.f32 %v3494, %v3599
        %v3604 = vadd.f32 %v3495, %v3600
        %v3611 = vrot.slane %v3564, 1
        %v3612 = vrot.slane %v3567, 1
        %v3613 = vsel %vm788, %v3611, %v3612
        %v3614 = vrot.slane %v3565, 1
        %v3615 = vrot.slane %v3568, 1
        %v3616 = vsel %vm788, %v3614, %v3615
        %v3617 = vrot.slane %v3566, 1
        %v3618 = vrot.slane %v3569, 1
        %v3619 = vsel %vm788, %v3617, %v3618
        %3620 = vrot.lane.b32.xlu0 %v3613, 96
        %v3621 = vpop.permute.xlu0 %3620
        %3622 = vrot.lane.b32.xlu0 %v3616, 96
        %v3623 = vpop.permute.xlu0 %3622
        %3624 = vrot.lane.b32.xlu0 %v3619, 96
        %v3625 = vpop.permute.xlu0 %3624
        %v3626 = vsel %vm711, %v3621, %v3623
        %v3627 = vsel %vm711, %v3623, %v3625
        %v3631 = vadd.f32 %v3522, %v3626
        %v3632 = vadd.f32 %v3523, %v3627
        %v3633 = vadd.f32 %v3524, %v3625
        %v3640 = vrot.slane %v3572, 1
        %v3641 = vrot.slane %v3575, 1
        %v3642 = vsel %vm788, %v3640, %v3641
        %v3643 = vrot.slane %v3573, 1
        %v3644 = vrot.slane %v3576, 1
        %v3645 = vsel %vm788, %v3643, %v3644
        %v3646 = vrot.slane %v3574, 1
        %v3647 = vrot.slane %v3577, 1
        %v3648 = vsel %vm788, %v3646, %v3647
        %3649 = vrot.lane.b32.xlu0 %v3642, 96
        %v3650 = vpop.permute.xlu0 %3649
        %3651 = vrot.lane.b32.xlu0 %v3645, 96
        %v3652 = vpop.permute.xlu0 %3651
        %3653 = vrot.lane.b32.xlu0 %v3648, 96
        %v3654 = vpop.permute.xlu0 %3653
        %v3655 = vsel %vm711, %v3650, %v3652
        %v3656 = vsel %vm711, %v3652, %v3654
        %v3660 = vadd.f32 %v3551, %v3655
        %v3661 = vadd.f32 %v3552, %v3656
        %v3662 = vadd.f32 %v3553, %v3654
        %v3663 = vld [vmem:[%s3209] sm:$0xfc]
        %v3664 = vld [vmem:[%s3209 + $0x8] sm:$0xfc]
        %v3665 = vld [vmem:[%s3209 + $0x18] sm:$0x3]
        %v3666 = vld [vmem:[%s3209 + $0x20] sm:$0x3]
        %s3667 = sld [smem:[#allocation9 + $0x192]]
        %v3668 = vstv %s3667
        %v3669 = vmul.f32 %v3663, %v3668
        %v3670 = vmul.f32 %v3664, %v3668
        %v3671 = vmul.f32 %v3665, %v3668
        %v3672 = vmul.f32 %v3666, %v3668
        %v3673 = vld [vmem:[%s3209] sm:$0xfc]
        %v3674 = vld [vmem:[%s3209 + $0x8] sm:$0xfc]
        %v3675 = vld [vmem:[%s3209 + $0x10] sm:$0xfc]
        %v3676 = vld [vmem:[%s3209 + $0x18] sm:$0x3]
        %v3677 = vld [vmem:[%s3209 + $0x20] sm:$0x3]
        %v3678 = vld [vmem:[%s3209 + $0x28] sm:$0x3]
        %s3679 = sld [smem:[#allocation9 + $0x193]]
        %v3680 = vstv %s3679
        %v3681 = vmul.f32 %v3673, %v3680
        %v3682 = vmul.f32 %v3674, %v3680
        %v3683 = vmul.f32 %v3675, %v3680
        %v3684 = vmul.f32 %v3676, %v3680
        %v3685 = vmul.f32 %v3677, %v3680
        %v3686 = vmul.f32 %v3678, %v3680
        %s3687 = sld [smem:[#allocation9 + $0x194]]
        %v3688 = vstv %s3687
        %v3689 = vmul.f32 %v3673, %v3688
        %v3690 = vmul.f32 %v3674, %v3688
        %v3691 = vmul.f32 %v3675, %v3688
        %v3692 = vmul.f32 %v3676, %v3688
        %v3693 = vmul.f32 %v3677, %v3688
        %v3694 = vmul.f32 %v3678, %v3688
        %v3699 = vrot.slane %v3669, 2
        %v3700 = vrot.slane %v3671, 2
        %v3701 = vsel %vm1095, %v3699, %v3700
        %v3702 = vrot.slane %v3670, 2
        %v3703 = vrot.slane %v3672, 2
        %v3704 = vsel %vm1095, %v3702, %v3703
        %v3707 = vadd.f32 %v3603, %v3701
        %v3708 = vadd.f32 %v3604, %v3704
        %v3715 = vrot.slane %v3681, 2
        %v3716 = vrot.slane %v3684, 2
        %v3717 = vsel %vm1095, %v3715, %v3716
        %v3718 = vrot.slane %v3682, 2
        %v3719 = vrot.slane %v3685, 2
        %v3720 = vsel %vm1095, %v3718, %v3719
        %v3721 = vrot.slane %v3683, 2
        %v3722 = vrot.slane %v3686, 2
        %v3723 = vsel %vm1095, %v3721, %v3722
        %v3727 = vadd.f32 %v3631, %v3717
        %v3728 = vadd.f32 %v3632, %v3720
        %v3729 = vadd.f32 %v3633, %v3723
        %v3736 = vrot.slane %v3689, 2
        %v3737 = vrot.slane %v3692, 2
        %v3738 = vsel %vm1095, %v3736, %v3737
        %v3739 = vrot.slane %v3690, 2
        %v3740 = vrot.slane %v3693, 2
        %v3741 = vsel %vm1095, %v3739, %v3740
        %v3742 = vrot.slane %v3691, 2
        %v3743 = vrot.slane %v3694, 2
        %v3744 = vsel %vm1095, %v3742, %v3743
        %v3748 = vadd.f32 %v3660, %v3738
        %v3749 = vadd.f32 %v3661, %v3741
        %v3750 = vadd.f32 %v3662, %v3744
        %s3751 = sld [smem:[#allocation9 + $0x195]]
        %v3752 = vstv %s3751
        %v3753 = vmul.f32 %v3673, %v3752
        %v3754 = vmul.f32 %v3674, %v3752
        %v3755 = vmul.f32 %v3675, %v3752
        %v3756 = vmul.f32 %v3676, %v3752
        %v3757 = vmul.f32 %v3677, %v3752
        %v3758 = vmul.f32 %v3678, %v3752
        %s3759 = sld [smem:[#allocation9 + $0x196]]
        %v3760 = vstv %s3759
        %v3761 = vmul.f32 %v3673, %v3760
        %v3762 = vmul.f32 %v3674, %v3760
        %v3763 = vmul.f32 %v3675, %v3760
        %v3764 = vmul.f32 %v3676, %v3760
        %v3765 = vmul.f32 %v3677, %v3760
        %v3766 = vmul.f32 %v3678, %v3760
        %s3767 = sld [smem:[#allocation9 + $0x197]]
        %v3768 = vstv %s3767
        %v3769 = vmul.f32 %v3673, %v3768
        %v3770 = vmul.f32 %v3674, %v3768
        %v3771 = vmul.f32 %v3675, %v3768
        %v3772 = vmul.f32 %v3676, %v3768
        %v3773 = vmul.f32 %v3677, %v3768
        %v3774 = vmul.f32 %v3678, %v3768
        %v3781 = vrot.slane %v3753, 2
        %v3782 = vrot.slane %v3756, 2
        %v3783 = vsel %vm1095, %v3781, %v3782
        %v3784 = vrot.slane %v3754, 2
        %v3785 = vrot.slane %v3757, 2
        %v3786 = vsel %vm1095, %v3784, %v3785
        %v3787 = vrot.slane %v3755, 2
        %v3788 = vrot.slane %v3758, 2
        %v3789 = vsel %vm1095, %v3787, %v3788
        %3790 = vrot.lane.b32.xlu0 %v3783, 112
        %v3791 = vpop.permute.xlu0 %3790
        %3792 = vrot.lane.b32.xlu0 %v3786, 112
        %v3793 = vpop.permute.xlu0 %3792
        %3794 = vrot.lane.b32.xlu0 %v3789, 112
        %v3795 = vpop.permute.xlu0 %3794
        %v3796 = vsel %vm646, %v3791, %v3793
        %v3797 = vsel %vm646, %v3793, %v3795
        %v3800 = vadd.f32 %v3707, %v3796
        %v3801 = vadd.f32 %v3708, %v3797
        %v3808 = vrot.slane %v3761, 2
        %v3809 = vrot.slane %v3764, 2
        %v3810 = vsel %vm1095, %v3808, %v3809
        %v3811 = vrot.slane %v3762, 2
        %v3812 = vrot.slane %v3765, 2
        %v3813 = vsel %vm1095, %v3811, %v3812
        %v3814 = vrot.slane %v3763, 2
        %v3815 = vrot.slane %v3766, 2
        %v3816 = vsel %vm1095, %v3814, %v3815
        %3817 = vrot.lane.b32.xlu0 %v3810, 112
        %v3818 = vpop.permute.xlu0 %3817
        %3819 = vrot.lane.b32.xlu0 %v3813, 112
        %v3820 = vpop.permute.xlu0 %3819
        %3821 = vrot.lane.b32.xlu0 %v3816, 112
        %v3822 = vpop.permute.xlu0 %3821
        %v3823 = vsel %vm646, %v3818, %v3820
        %v3824 = vsel %vm646, %v3820, %v3822
        %v3828 = vadd.f32 %v3727, %v3823
        %v3829 = vadd.f32 %v3728, %v3824
        %v3830 = vadd.f32 %v3729, %v3822
        %v3837 = vrot.slane %v3769, 2
        %v3838 = vrot.slane %v3772, 2
        %v3839 = vsel %vm1095, %v3837, %v3838
        %v3840 = vrot.slane %v3770, 2
        %v3841 = vrot.slane %v3773, 2
        %v3842 = vsel %vm1095, %v3840, %v3841
        %v3843 = vrot.slane %v3771, 2
        %v3844 = vrot.slane %v3774, 2
        %v3845 = vsel %vm1095, %v3843, %v3844
        %3846 = vrot.lane.b32.xlu0 %v3839, 112
        %v3847 = vpop.permute.xlu0 %3846
        %3848 = vrot.lane.b32.xlu0 %v3842, 112
        %v3849 = vpop.permute.xlu0 %3848
        %3850 = vrot.lane.b32.xlu0 %v3845, 112
        %v3851 = vpop.permute.xlu0 %3850
        %v3852 = vsel %vm646, %v3847, %v3849
        %v3853 = vsel %vm646, %v3849, %v3851
        %v3857 = vadd.f32 %v3748, %v3852
        %v3858 = vadd.f32 %v3749, %v3853
        %v3859 = vadd.f32 %v3750, %v3851
        %s3860 = sld [smem:[#allocation9 + $0x198]]
        %v3861 = vstv %s3860
        %v3862 = vmul.f32 %v3673, %v3861
        %v3863 = vmul.f32 %v3674, %v3861
        %v3864 = vmul.f32 %v3675, %v3861
        %v3865 = vmul.f32 %v3676, %v3861
        %v3866 = vmul.f32 %v3677, %v3861
        %v3867 = vmul.f32 %v3678, %v3861
        %s3868 = sld [smem:[#allocation9 + $0x199]]
        %v3869 = vstv %s3868
        %v3870 = vmul.f32 %v3673, %v3869
        %v3871 = vmul.f32 %v3674, %v3869
        %v3872 = vmul.f32 %v3675, %v3869
        %v3873 = vmul.f32 %v3676, %v3869
        %v3874 = vmul.f32 %v3677, %v3869
        %v3875 = vmul.f32 %v3678, %v3869
        %s3876 = sld [smem:[#allocation9 + $0x19a]]
        %v3877 = vstv %s3876
        %v3878 = vmul.f32 %v3673, %v3877
        %v3879 = vmul.f32 %v3674, %v3877
        %v3880 = vmul.f32 %v3675, %v3877
        %v3881 = vmul.f32 %v3676, %v3877
        %v3882 = vmul.f32 %v3677, %v3877
        %v3883 = vmul.f32 %v3678, %v3877
        %v3890 = vrot.slane %v3862, 2
        %v3891 = vrot.slane %v3865, 2
        %v3892 = vsel %vm1095, %v3890, %v3891
        %v3893 = vrot.slane %v3863, 2
        %v3894 = vrot.slane %v3866, 2
        %v3895 = vsel %vm1095, %v3893, %v3894
        %v3896 = vrot.slane %v3864, 2
        %v3897 = vrot.slane %v3867, 2
        %v3898 = vsel %vm1095, %v3896, %v3897
        %3899 = vrot.lane.b32.xlu0 %v3892, 96
        %v3900 = vpop.permute.xlu0 %3899
        %3901 = vrot.lane.b32.xlu0 %v3895, 96
        %v3902 = vpop.permute.xlu0 %3901
        %3903 = vrot.lane.b32.xlu0 %v3898, 96
        %v3904 = vpop.permute.xlu0 %3903
        %v3905 = vsel %vm711, %v3900, %v3902
        %v3906 = vsel %vm711, %v3902, %v3904
        %v3909 = vadd.f32 %v3800, %v3905
        %v3910 = vadd.f32 %v3801, %v3906
        %v3917 = vrot.slane %v3870, 2
        %v3918 = vrot.slane %v3873, 2
        %v3919 = vsel %vm1095, %v3917, %v3918
        %v3920 = vrot.slane %v3871, 2
        %v3921 = vrot.slane %v3874, 2
        %v3922 = vsel %vm1095, %v3920, %v3921
        %v3923 = vrot.slane %v3872, 2
        %v3924 = vrot.slane %v3875, 2
        %v3925 = vsel %vm1095, %v3923, %v3924
        %3926 = vrot.lane.b32.xlu0 %v3919, 96
        %v3927 = vpop.permute.xlu0 %3926
        %3928 = vrot.lane.b32.xlu0 %v3922, 96
        %v3929 = vpop.permute.xlu0 %3928
        %3930 = vrot.lane.b32.xlu0 %v3925, 96
        %v3931 = vpop.permute.xlu0 %3930
        %v3932 = vsel %vm711, %v3927, %v3929
        %v3933 = vsel %vm711, %v3929, %v3931
        %v3937 = vadd.f32 %v3828, %v3932
        %v3938 = vadd.f32 %v3829, %v3933
        %v3939 = vadd.f32 %v3830, %v3931
        %v3946 = vrot.slane %v3878, 2
        %v3947 = vrot.slane %v3881, 2
        %v3948 = vsel %vm1095, %v3946, %v3947
        %v3949 = vrot.slane %v3879, 2
        %v3950 = vrot.slane %v3882, 2
        %v3951 = vsel %vm1095, %v3949, %v3950
        %v3952 = vrot.slane %v3880, 2
        %v3953 = vrot.slane %v3883, 2
        %v3954 = vsel %vm1095, %v3952, %v3953
        %3955 = vrot.lane.b32.xlu0 %v3948, 96
        %v3956 = vpop.permute.xlu0 %3955
        %3957 = vrot.lane.b32.xlu0 %v3951, 96
        %v3958 = vpop.permute.xlu0 %3957
        %3959 = vrot.lane.b32.xlu0 %v3954, 96
        %v3960 = vpop.permute.xlu0 %3959
        %v3961 = vsel %vm711, %v3956, %v3958
        %v3962 = vsel %vm711, %v3958, %v3960
        %v3966 = vadd.f32 %v3857, %v3961
        %v3967 = vadd.f32 %v3858, %v3962
        %v3968 = vadd.f32 %v3859, %v3960
        %v3969 = vmul.f32 %v567, %v3909
        %v3970 = vmul.f32 %v571, %v3910
        %3973 = vrot.lane.b32.xlu0 %v3969, 1
        %v3974 = vpop.permute.xlu0 %3973
        %3975 = vrot.lane.b32.xlu0 %v3970, 1
        %v3976 = vpop.permute.xlu0 %3975
        %v3977 = vsel %vm1374, %v3974, %v3976
        %v3981 = vadd.f32 %v3937, %v3974
        %v3982 = vadd.f32 %v3938, %v3977
        %v3983 = vadd.f32 %v3939, %v3976
        %3987 = vrot.lane.b32.xlu0 %v3966, 126
        %v3988 = vpop.permute.xlu0 %3987
        %3989 = vrot.lane.b32.xlu0 %v3967, 126
        %v3990 = vpop.permute.xlu0 %3989
        %3991 = vrot.lane.b32.xlu0 %v3968, 126
        %v3992 = vpop.permute.xlu0 %3991
        %v3993 = vsel %vm1391, %v3988, %v3990
        %v3994 = vsel %vm1391, %v3990, %v3992
        %v3997 = vmul.f32 %v580, %v3993
        %v3998 = vmul.f32 %v584, %v3994
        %4001 = vrot.lane.b32.xlu0 %v3997, 1
        %v4002 = vpop.permute.xlu0 %4001
        %4003 = vrot.lane.b32.xlu0 %v3998, 1
        %v4004 = vpop.permute.xlu0 %4003
        %v4005 = vsel %vm1374, %v4002, %v4004
        %v4009 = vadd.f32 %v3981, %v4002
        %v4010 = vadd.f32 %v3982, %v4005
        %v4011 = vadd.f32 %v3983, %v4004
        %s4012 = sld [smem:[#allocation10 + $0x180]]
        %v4013 = vstv %s4012
        %v4014 = vmul.f32 %v4009, %v4013
        %v4015 = vmul.f32 %v4010, %v4013
        %v4016 = vmul.f32 %v4011, %v4013
        %v4017 = vadd.f32 %v3150, %v4014
        %v4018 = vadd.f32 %v3151, %v4015
        %v4019 = vadd.f32 %v3152, %v4016
        %s4020 = sld [smem:[#allocation10 + $0x181]]
        %v4021 = vstv %s4020
        %v4022 = vmul.f32 %v4009, %v4021
        %v4023 = vmul.f32 %v4010, %v4021
        %v4024 = vmul.f32 %v4011, %v4021
        %v4025 = vadd.f32 %v3158, %v4022
        %v4026 = vadd.f32 %v3159, %v4023
        %v4027 = vadd.f32 %v3160, %v4024
        %s4028 = sld [smem:[#allocation10 + $0x182]]
        %v4029 = vstv %s4028
        %v4030 = vmul.f32 %v4009, %v4029
        %v4031 = vmul.f32 %v4010, %v4029
        %v4032 = vmul.f32 %v4011, %v4029
        %v4033 = vadd.f32 %v3166, %v4030
        %v4034 = vadd.f32 %v3167, %v4031
        %v4035 = vadd.f32 %v3168, %v4032
        %s4036 = sld [smem:[#allocation10 + $0x183]]
        %v4037 = vstv %s4036
        %v4038 = vmul.f32 %v4009, %v4037
        %v4039 = vmul.f32 %v4010, %v4037
        %v4040 = vmul.f32 %v4011, %v4037
        %v4041 = vadd.f32 %v3174, %v4038
        %v4042 = vadd.f32 %v3175, %v4039
        %v4043 = vadd.f32 %v3176, %v4040
        %s4044 = sld [smem:[#allocation10 + $0x184]]
        %v4045 = vstv %s4044
        %v4046 = vmul.f32 %v4009, %v4045
        %v4047 = vmul.f32 %v4010, %v4045
        %v4048 = vmul.f32 %v4011, %v4045
        %v4049 = vadd.f32 %v3182, %v4046
        %v4050 = vadd.f32 %v3183, %v4047
        %v4051 = vadd.f32 %v3184, %v4048
        %s4052 = sld [smem:[#allocation10 + $0x185]]
        %v4053 = vstv %s4052
        %v4054 = vmul.f32 %v4009, %v4053
        %v4055 = vmul.f32 %v4010, %v4053
        %v4056 = vmul.f32 %v4011, %v4053
        %v4057 = vadd.f32 %v3190, %v4054
        %v4058 = vadd.f32 %v3191, %v4055
        %v4059 = vadd.f32 %v3192, %v4056
        %s4060 = sld [smem:[#allocation10 + $0x186]]
        %v4061 = vstv %s4060
        %v4062 = vmul.f32 %v4009, %v4061
        %v4063 = vmul.f32 %v4010, %v4061
        %v4064 = vmul.f32 %v4011, %v4061
        %v4065 = vadd.f32 %v3198, %v4062
        %v4066 = vadd.f32 %v3199, %v4063
        %v4067 = vadd.f32 %v3200, %v4064
        %s4068 = sld [smem:[#allocation10 + $0x187]]
        %v4069 = vstv %s4068
        %v4070 = vmul.f32 %v4009, %v4069
        %v4071 = vmul.f32 %v4010, %v4069
        %v4072 = vmul.f32 %v4011, %v4069
        %v4073 = vadd.f32 %v3206, %v4070
        %v4074 = vadd.f32 %v3207, %v4071
        %v4075 = vadd.f32 %v3208, %v4072
        %4079 = vrot.lane.b32.xlu0 %v4017, 127
        %v4080 = vpop.permute.xlu0 %4079
        %4081 = vrot.lane.b32.xlu0 %v4018, 127
        %v4082 = vpop.permute.xlu0 %4081
        %4083 = vrot.lane.b32.xlu0 %v4019, 127
        %v4084 = vpop.permute.xlu0 %4083
        %vm4085 = vcmask 1039360
        %v4086 = vsel %vm4085, %v4080, %v4082
        %v4087 = vsel %vm4085, %v4082, %v4084
        %4090 = vst [vmem:[%s302] sm:$0xff] %v4086
        %4091 = vst [vmem:[%s302 + $0x8] sm:$0xff] %v4087
        %4095 = vrot.lane.b32.xlu0 %v4025, 127
        %v4096 = vpop.permute.xlu0 %4095
        %4097 = vrot.lane.b32.xlu0 %v4026, 127
        %v4098 = vpop.permute.xlu0 %4097
        %4099 = vrot.lane.b32.xlu0 %v4027, 127
        %v4100 = vpop.permute.xlu0 %4099
        %v4101 = vsel %vm4085, %v4096, %v4098
        %v4102 = vsel %vm4085, %v4098, %v4100
        %s4105 = scalar_lea.vmem %s302, 16 [#allocation13]
        %4106 = vst [vmem:[%s4105] sm:$0xff] %v4101
        %4107 = vst [vmem:[%s4105 + $0x8] sm:$0xff] %v4102
        %4111 = vrot.lane.b32.xlu0 %v4033, 127
        %v4112 = vpop.permute.xlu0 %4111
        %4113 = vrot.lane.b32.xlu0 %v4034, 127
        %v4114 = vpop.permute.xlu0 %4113
        %4115 = vrot.lane.b32.xlu0 %v4035, 127
        %v4116 = vpop.permute.xlu0 %4115
        %v4117 = vsel %vm4085, %v4112, %v4114
        %v4118 = vsel %vm4085, %v4114, %v4116
        %s4121 = scalar_lea.vmem %s302, 32 [#allocation13]
        %4122 = vst [vmem:[%s4121] sm:$0xff] %v4117
        %4123 = vst [vmem:[%s4121 + $0x8] sm:$0xff] %v4118
        %4127 = vrot.lane.b32.xlu0 %v4041, 127
        %v4128 = vpop.permute.xlu0 %4127
        %4129 = vrot.lane.b32.xlu0 %v4042, 127
        %v4130 = vpop.permute.xlu0 %4129
        %4131 = vrot.lane.b32.xlu0 %v4043, 127
        %v4132 = vpop.permute.xlu0 %4131
        %v4133 = vsel %vm4085, %v4128, %v4130
        %v4134 = vsel %vm4085, %v4130, %v4132
        %s4137 = scalar_lea.vmem %s302, 48 [#allocation13]
        %4138 = vst [vmem:[%s4137] sm:$0xff] %v4133
        %4139 = vst [vmem:[%s4137 + $0x8] sm:$0xff] %v4134
        %4143 = vrot.lane.b32.xlu0 %v4049, 127
        %v4144 = vpop.permute.xlu0 %4143
        %4145 = vrot.lane.b32.xlu0 %v4050, 127
        %v4146 = vpop.permute.xlu0 %4145
        %4147 = vrot.lane.b32.xlu0 %v4051, 127
        %v4148 = vpop.permute.xlu0 %4147
        %v4149 = vsel %vm4085, %v4144, %v4146
        %v4150 = vsel %vm4085, %v4146, %v4148
        %s4153 = scalar_lea.vmem %s302, 64 [#allocation13]
        %4154 = vst [vmem:[%s4153] sm:$0xff] %v4149
        %4155 = vst [vmem:[%s4153 + $0x8] sm:$0xff] %v4150
        %4159 = vrot.lane.b32.xlu0 %v4057, 127
        %v4160 = vpop.permute.xlu0 %4159
        %4161 = vrot.lane.b32.xlu0 %v4058, 127
        %v4162 = vpop.permute.xlu0 %4161
        %4163 = vrot.lane.b32.xlu0 %v4059, 127
        %v4164 = vpop.permute.xlu0 %4163
        %v4165 = vsel %vm4085, %v4160, %v4162
        %v4166 = vsel %vm4085, %v4162, %v4164
        %s4169 = scalar_lea.vmem %s302, 80 [#allocation13]
        %4170 = vst [vmem:[%s4169] sm:$0xff] %v4165
        %4171 = vst [vmem:[%s4169 + $0x8] sm:$0xff] %v4166
        %4175 = vrot.lane.b32.xlu0 %v4065, 127
        %v4176 = vpop.permute.xlu0 %4175
        %4177 = vrot.lane.b32.xlu0 %v4066, 127
        %v4178 = vpop.permute.xlu0 %4177
        %4179 = vrot.lane.b32.xlu0 %v4067, 127
        %v4180 = vpop.permute.xlu0 %4179
        %v4181 = vsel %vm4085, %v4176, %v4178
        %v4182 = vsel %vm4085, %v4178, %v4180
        %s4185 = scalar_lea.vmem %s302, 96 [#allocation13]
        %4186 = vst [vmem:[%s4185] sm:$0xff] %v4181
        %4187 = vst [vmem:[%s4185 + $0x8] sm:$0xff] %v4182
        %4191 = vrot.lane.b32.xlu0 %v4073, 127
        %v4192 = vpop.permute.xlu0 %4191
        %4193 = vrot.lane.b32.xlu0 %v4074, 127
        %v4194 = vpop.permute.xlu0 %4193
        %4195 = vrot.lane.b32.xlu0 %v4075, 127
        %v4196 = vpop.permute.xlu0 %4195
        %v4197 = vsel %vm4085, %v4192, %v4194
        %v4198 = vsel %vm4085, %v4194, %v4196
        %s4201 = scalar_lea.vmem %s302, 112 [#allocation13]
        %4202 = vst [vmem:[%s4201] sm:$0xff] %v4197
        %4203 = vst [vmem:[%s4201 + $0x8] sm:$0xff] %v4198
        %s4204 = sand.u32 %s157, 1
        %s4205 = scalar_lea.sflag [#allocation5], %s4204
        %s4206 = sand.u32 %s157, 1
        %s4207 = smul.addr %s4206, 128
        %s4208 = scalar_lea.vmem [#allocation13], %s4207
        // Predicated region
        $region61: #{tpu_custom_call.1} parent=39 // pred_check
          %p4209 = pneg %p167
        $region62: #{tpu_custom_call.1} parent=39 // pred_check_branch
          %4211 = sbr.rel (%p4209) target = $region64
        $region63: #{tpu_custom_call.1} parent=39 // pred_region
          %s4213 = ssub.s32 2048, 2048
          %4214 = vsyncadd %s4205, %s4213
          %s4215 = smul.addr %s30, 2
          %s4216 = smul.addr %s29, 32
          %s4217 = sadd.s32 %s4215, %s4216
          %s4218 = smul.addr %s4217, 128
          %s4219 = scalar_lea.hbm %s5, %s4218
          %s4220 = sshll.u32 %s4208, 4
          %s4221 = int_to_ptr.vmem [resolvable:$true] %s4220
          %4226 = dma.vmem_to_hbm [thread:$0]  %s4221, 2048, %s4219, %s4205, 256, 512, 16
        $region64: #{tpu_custom_call.1} parent=39 // pred_fallthru
          _
      $region40: #{tpu_custom_call.1} parent=5 // pred_fallthru
        _
      %p4227 = scmp.le.s32.totalorder 2, %s20
      // Predicated region
      $region65: #{tpu_custom_call.1} parent=5 // pred_check
        %p4228 = pneg %p4227
      $region66: #{tpu_custom_call.1} parent=5 // pred_check_branch
        %4230 = sbr.rel (%p4228) target = $region68
      $region67: #{tpu_custom_call.1} parent=5 // pred_region
        %s4231 = ssub.s32 %s20, 2
        // Predicated region
        $region69: #{tpu_custom_call.1} parent=67 // pred_check
          %p4232 = pneg %p173
        $region70: #{tpu_custom_call.1} parent=67 // pred_check_branch
          %4234 = sbr.rel (%p4232) target = $region72
        $region71: #{tpu_custom_call.1} parent=67 // pred_region
          %s4235 = sand.u32 %s158, 1
          %s4236 = scalar_lea.sflag [#allocation5], %s4235
          %s4237 = sand.u32 %s158, 1
          %s4238 = smul.addr %s4237, 128
          %s4239 = scalar_lea.vmem [#allocation13], %s4238
          %4240 = dma.done %s4236, 2048
        $region72: #{tpu_custom_call.1} parent=67 // pred_fallthru
          _
      $region68: #{tpu_custom_call.1} parent=5 // pred_fallthru
        _
    $region6: #{tpu_custom_call.1} parent=1 // loop_footer
      %s24 = sadd.s32 1, %s20
    $region7: #{tpu_custom_call.1} parent=1 // loop_footer_branch
      %19 = sbr.rel target = $region3
    $region8: #{tpu_custom_call.1} parent=1 // loop_exit
      _
    %4241 = vsyncpa [#allocation4], 1
    %s4242 = scalar_lea.sflag [#allocation4], 1
    %4243 = vsyncpa %s4242, 1
    %4244 = vsyncpa [#allocation8], 1
    %4245 = vsyncpa [#allocation5], 1
    %s4246 = scalar_lea.sflag [#allocation5], 1
    %4247 = vsyncpa %s4246, 1
    %4248 = vsyncpa [#allocation6], 1
    %s4249 = scalar_lea.sflag [#allocation6], 1
    %4250 = vsyncpa %s4249, 1
    %4251 = vsyncpa [#allocation11], 1

</llo_original>
